<compile_context>
chip_gen: v6e
topology: v6e:2x2x1
jax: 0.10.0
libtpu: 0.0.40
codegen_flags: <defaults>
</compile_context>

<pallas_src>
import jax
import jax.numpy as jnp
from jax.experimental import pallas as pl
from jax.experimental.pallas import tpu as pltpu


# --------------------------------------------------------------------------
# Fused batched kernel: conv1+BN+ReLU -> pool -> conv2 -> conv3 -> LSTM -> FC
# --------------------------------------------------------------------------
def _cnn_lstm_kernel(x_ref, w1_ref, b1_ref, w2_ref, b2_ref, w3_ref, b3_ref,
                     wih_ref, whh_ref, bl_ref, wfc_ref, bfc_ref,
                     o_ref,
                     y1_ref, gx_ref):
    f32, bf16 = jnp.float32, jnp.bfloat16

    MB = x_ref.shape[0]            # B_blk * W   (conv1 rows, sample-major)
    bblk = o_ref.shape[0]          # samples per grid step
    W = MB // bblk                 # conv width
    T = W // 2                     # post-pool width == LSTM sequence length
    MT = bblk * T                  # conv2/3 & LSTM-projection rows
    H = whh_ref.shape[0]           # LSTM hidden size

    def conv_bn_relu(a, w_ref, b_ref, first_m, last_m):
        """Conv1d(k=3, pad=1) + folded BN + ReLU as 3 per-tap matmuls.

        a: (M, Cin) f32, samples stacked along rows.  Shifted taps are built with
        sublane rolls (XLU slot); first_m / last_m zero the rows that would leak
        across per-sample boundaries (including the block-circular wrap)."""
        a_prev = jnp.where(first_m, 0.0, pltpu.roll(a, shift=1, axis=0))
        a_next = jnp.where(last_m, 0.0,
                           pltpu.roll(a, shift=a.shape[0] - 1, axis=0))
        y = jnp.dot(a_prev.astype(bf16), w_ref[0], preferred_element_type=f32)
        y = y + jnp.dot(a.astype(bf16), w_ref[1], preferred_element_type=f32)
        y = y + jnp.dot(a_next.astype(bf16), w_ref[2], preferred_element_type=f32)
        return jnp.maximum(y + b_ref[...], 0.0)

    # per-sample boundary masks (row index modulo the per-sample width)
    posW = jax.lax.broadcasted_iota(jnp.int32, (MB, 1), 0) % W
    posT = jax.lax.broadcasted_iota(jnp.int32, (MT, 1), 0) % T

    # ---- conv1 + folded-BN + ReLU -------------------------------------------
    y1_ref[...] = conv_bn_relu(x_ref[...], w1_ref, b1_ref,
                               posW == 0, posW == W - 1)

    # ---- maxpool(2,2): one vectorized max of two stride-2 strided loads -----
    pooled = jnp.maximum(y1_ref[pl.ds(0, MT, stride=2), :],
                         y1_ref[pl.ds(1, MT, stride=2), :])

    # ---- conv2 / conv3 + folded-BN + ReLU ------------------------------------
    y2 = conv_bn_relu(pooled, w2_ref, b2_ref, posT == 0, posT == T - 1)
    y3 = conv_bn_relu(y2, w3_ref, b3_ref, posT == 0, posT == T - 1)

    # ---- LSTM: hoisted input projection for every (sample, timestep) ---------
    gx_ref[...] = (jnp.dot(y3.astype(bf16), wih_ref[...],
                           preferred_element_type=f32) + bl_ref[...])

    whh = whh_ref[...]                                  # (H, 4H) f32 recurrence weight
    h = jnp.zeros((bblk, H), f32)
    c = jnp.zeros((bblk, H), f32)
    o_acc = jnp.zeros(o_ref.shape, f32)
    for t in range(T):                                  # fully unrolled recurrence
        g = gx_ref[pl.ds(t, bblk, stride=T), :] + jnp.dot(
            h, whh, preferred_element_type=f32)
        i_g = jax.nn.sigmoid(g[:, 0:H])
        f_g = jax.nn.sigmoid(g[:, H:2 * H])
        g_g = jnp.tanh(g[:, 2 * H:3 * H])
        o_g = jax.nn.sigmoid(g[:, 3 * H:4 * H])
        c = f_g * c + i_g * g_g
        h = o_g * jnp.tanh(c)
        # FC head folded into the recurrence: lane-aligned accumulate, no hflat scatter
        o_acc = o_acc + jnp.dot(h.astype(bf16), wfc_ref[pl.ds(t * H, H), :],
                                preferred_element_type=f32)

    o_ref[...] = (o_acc + bfc_ref[...]).astype(o_ref.dtype)


# --------------------------------------------------------------------------
# Wrapper: fold BN into conv weights, pick batching, launch fused kernel
# --------------------------------------------------------------------------
def _fold_conv_bn(w, b, gamma, beta, mean, var, eps=1e-5):
    # w: (Cout, Cin, 3) PyTorch layout -> per-tap (3, Cin, Cout), BN folded in.
    scale = gamma / jnp.sqrt(var + eps)                               # (Cout,)
    wt = jnp.transpose(w, (2, 1, 0)) * scale[None, None, :]           # (3, Cin, Cout)
    bb = ((b - mean) * scale + beta).reshape(1, -1)
    return wt.astype(jnp.bfloat16), bb.astype(jnp.float32)


def _pick_blocking(B, W, C0):
    """Samples per grid step: multiple of 8 (sublanes), big enough to fill the MXU M
    dimension (target 256), VMEM-capped, while keeping >= 2 grid steps so both v7x
    TensorCores get work.  Blocks stay well under the 32 MiB default scoped VMEM."""
    per_sample_bytes = W * C0 * 4
    vmem_cap = max(8, (4 << 20) // per_sample_bytes)      # keep the x block <~ 4 MiB
    bblk_max = max(8, (min(256, vmem_cap) // 8) * 8)
    nblk = max(2 if B > 1 else 1, pl.cdiv(B, bblk_max))
    bblk = ((pl.cdiv(B, nblk) + 7) // 8) * 8
    return nblk, bblk


def cnn_lstm_forward(params, x, *, hidden, channels, image_height, image_width):
    B = x.shape[0]
    if channels == 1:
        x = x[:, None, :, :]                                          # torch unsqueeze(1)
    C0 = channels * image_height
    W = image_width
    assert W % 2 == 0, "image_width must be even (MaxPool1d(2, 2))"
    T = W // 2
    H = hidden
    NC = params["fc_w"].shape[0]
    NCp = ((NC + 127) // 128) * 128                                   # lane-dense output

    # rearrange 'b c h w -> b (c h) w', channels-last, samples stacked along rows
    xc = jnp.transpose(x.reshape(B, C0, W), (0, 2, 1)).astype(jnp.float32)   # (B, W, C0)

    nblk, bblk = _pick_blocking(B, W, C0)
    B_pad = nblk * bblk
    if B_pad > B:
        xc = jnp.concatenate(
            [xc, jnp.zeros((B_pad - B, W, C0), jnp.float32)], axis=0)
    x_flat = xc.reshape(B_pad * W, C0)                                # row = b * W + w

    w1, b1 = _fold_conv_bn(params["conv1_w"], params["conv1_b"],
                           params["bn1_gamma"], params["bn1_beta"],
                           params["bn1_mean"], params["bn1_var"])
    w2, b2 = _fold_conv_bn(params["conv2_w"], params["conv2_b"],
                           params["bn2_gamma"], params["bn2_beta"],
                           params["bn2_mean"], params["bn2_var"])
    w3, b3 = _fold_conv_bn(params["conv3_w"], params["conv3_b"],
                           params["bn3_gamma"], params["bn3_beta"],
                           params["bn3_mean"], params["bn3_var"])
    wih = jnp.transpose(params["lstm_w_ih"]).astype(jnp.bfloat16)     # (4H, 4H)
    whh = jnp.transpose(params["lstm_w_hh"]).astype(jnp.float32)      # (H, 4H) f32
    bl = (params["lstm_b_ih"] + params["lstm_b_hh"]).reshape(1, 4 * H).astype(jnp.float32)
    wfc = jnp.transpose(params["fc_w"]).astype(jnp.bfloat16)          # (T*H, NC)
    wfc = jnp.pad(wfc, ((0, 0), (0, NCp - NC)))                       # lane-dense pad
    bfc = jnp.pad(params["fc_b"], (0, NCp - NC)).reshape(1, NCp).astype(jnp.float32)

    C1, C2, C3 = H, 2 * H, 4 * H

    out = pl.pallas_call(
        _cnn_lstm_kernel,
        out_shape=jax.ShapeDtypeStruct((B_pad, NCp), jnp.float32),
        grid=(nblk,),
        in_specs=[
            pl.BlockSpec((bblk * W, C0), lambda i: (i, 0)),           # x rows (per block)
            pl.BlockSpec((3, C0, C1), lambda i: (0, 0, 0)),           # conv1 taps (BN folded)
            pl.BlockSpec((1, C1), lambda i: (0, 0)),                  # conv1 bias
            pl.BlockSpec((3, C1, C2), lambda i: (0, 0, 0)),           # conv2 taps
            pl.BlockSpec((1, C2), lambda i: (0, 0)),                  # conv2 bias
            pl.BlockSpec((3, C2, C3), lambda i: (0, 0, 0)),           # conv3 taps
            pl.BlockSpec((1, C3), lambda i: (0, 0)),                  # conv3 bias
            pl.BlockSpec((C3, 4 * H), lambda i: (0, 0)),              # lstm W_ih^T (bf16)
            pl.BlockSpec((H, 4 * H), lambda i: (0, 0)),               # lstm W_hh^T (f32)
            pl.BlockSpec((1, 4 * H), lambda i: (0, 0)),               # lstm bias (ih+hh)
            pl.BlockSpec((T * H, NCp), lambda i: (0, 0)),             # fc W^T (lane-padded)
            pl.BlockSpec((1, NCp), lambda i: (0, 0)),                 # fc bias (lane-padded)
        ],
        out_specs=pl.BlockSpec((bblk, NCp), lambda i: (i, 0)),
        scratch_shapes=[
            pltpu.VMEM((bblk * W, C1), jnp.float32),      # conv1 output (pre-pool)
            pltpu.VMEM((bblk * T, 4 * H), jnp.float32),   # hoisted all-step LSTM gates_x
        ],
        compiler_params=pltpu.CompilerParams(
            dimension_semantics=("parallel",)),
    )(x_flat, w1, b1, w2, b2, w3, b3, wih, whh, bl, wfc, bfc)

    return out[:B, :NC]


# --------------------------------------------------------------------------
# Deterministic parameter init (mirrors _initialize_weights + LSTM defaults)
# --------------------------------------------------------------------------
def init_params(key, hidden, channels, image_height, image_width, num_classes):
    cin0 = channels * image_height
    keys = jax.random.split(key, 8)

    def kaiming(k, cout, cin, ksz):                                   # fan_out, relu
        std = (2.0 / (cout * ksz)) ** 0.5
        return std * jax.random.normal(k, (cout, cin, ksz), jnp.float32)

    p = {}
    p["conv1_w"] = kaiming(keys[0], hidden, cin0, 3)
    p["conv1_b"] = jnp.zeros((hidden,), jnp.float32)
    p["conv2_w"] = kaiming(keys[1], 2 * hidden, hidden, 3)
    p["conv2_b"] = jnp.zeros((2 * hidden,), jnp.float32)
    p["conv3_w"] = kaiming(keys[2], 4 * hidden, 2 * hidden, 3)
    p["conv3_b"] = jnp.zeros((4 * hidden,), jnp.float32)
    for i, c in ((1, hidden), (2, 2 * hidden), (3, 4 * hidden)):
        p[f"bn{i}_gamma"] = jnp.ones((c,), jnp.float32)
        p[f"bn{i}_beta"] = jnp.zeros((c,), jnp.float32)
        p[f"bn{i}_mean"] = jnp.zeros((c,), jnp.float32)
        p[f"bn{i}_var"] = jnp.ones((c,), jnp.float32)
    stdv = 1.0 / (hidden ** 0.5)
    p["lstm_w_ih"] = jax.random.uniform(keys[3], (4 * hidden, 4 * hidden),
                                        jnp.float32, -stdv, stdv)
    p["lstm_w_hh"] = jax.random.uniform(keys[4], (4 * hidden, hidden),
                                        jnp.float32, -stdv, stdv)
    p["lstm_b_ih"] = jax.random.uniform(keys[5], (4 * hidden,), jnp.float32, -stdv, stdv)
    p["lstm_b_hh"] = jax.random.uniform(keys[6], (4 * hidden,), jnp.float32, -stdv, stdv)
    p["fc_w"] = 0.01 * jax.random.normal(
        keys[7], (num_classes, (image_width // 2) * hidden), jnp.float32)
    p["fc_b"] = jnp.zeros((num_classes,), jnp.float32)
    return p


# --------------------------------------------------------------------------
# Pure-JAX f32 reference (no Pallas) for numerical validation
# --------------------------------------------------------------------------
def reference_forward(params, x, *, hidden, channels, image_height, image_width):
    B = x.shape[0]
    if channels == 1:
        x = x[:, None, :, :]
    x = x.reshape(B, channels * image_height, image_width).astype(jnp.float32)
    hp = jax.lax.Precision.HIGHEST

    def cbr(x, w, b, gamma, beta, mean, var, eps=1e-5):
        xp = jnp.pad(x, ((0, 0), (0, 0), (1, 1)))
        y = jax.lax.conv_general_dilated(
            xp, w.astype(jnp.float32), (1,), "VALID",
            dimension_numbers=("NCH", "OIH", "NCH"), precision=hp)
        y = y + b[None, :, None]
        y = (y - mean[None, :, None]) / jnp.sqrt(var[None, :, None] + eps)
        y = y * gamma[None, :, None] + beta[None, :, None]
        return jnp.maximum(y, 0.0)

    x = cbr(x, params["conv1_w"], params["conv1_b"], params["bn1_gamma"],
            params["bn1_beta"], params["bn1_mean"], params["bn1_var"])
    Bc, C, Wd = x.shape
    x = jnp.max(x.reshape(Bc, C, Wd // 2, 2), axis=-1)
    x = cbr(x, params["conv2_w"], params["conv2_b"], params["bn2_gamma"],
            params["bn2_beta"], params["bn2_mean"], params["bn2_var"])
    x = cbr(x, params["conv3_w"], params["conv3_b"], params["bn3_gamma"],
            params["bn3_beta"], params["bn3_mean"], params["bn3_var"])
    x = jnp.transpose(x, (0, 2, 1))                                   # (B, T, 4H)

    H = hidden
    wih, whh = params["lstm_w_ih"], params["lstm_w_hh"]
    b = params["lstm_b_ih"] + params["lstm_b_hh"]

    def step(carry, x_t):
        h, c = carry
        gates = (jnp.dot(x_t, wih.T, precision=hp)
                 + jnp.dot(h, whh.T, precision=hp) + b)
        i = jax.nn.sigmoid(gates[:, :H])
        f = jax.nn.sigmoid(gates[:, H:2 * H])
        g = jnp.tanh(gates[:, 2 * H:3 * H])
        o = jax.nn.sigmoid(gates[:, 3 * H:])
        c = f * c + i * g
        h = o * jnp.tanh(c)
        return (h, c), h

    h0 = jnp.zeros((B, H), jnp.float32)
    c0 = jnp.zeros((B, H), jnp.float32)
    _, hs = jax.lax.scan(step, (h0, c0), jnp.transpose(x, (1, 0, 2)))
    hs = jnp.transpose(hs, (1, 0, 2)).reshape(B, -1)
    return jnp.dot(hs, params["fc_w"].T, precision=hp) + params["fc_b"]


if __name__ == "__main__":
    hidden, channels, image_height, image_width, num_classes = 32, 1, 16, 16, 6
    B = 2
    key = jax.random.PRNGKey(0)
    pkey, xkey = jax.random.split(key)
    params = init_params(pkey, hidden, channels, image_height, image_width, num_classes)
    # channels == 1 -> torch forward unsqueezes, so the input is (B, img_h, img_w)
    x = jax.random.normal(xkey, (B, image_height, image_width), jnp.float32)

    fwd = jax.jit(cnn_lstm_forward,
                  static_argnames=("hidden", "channels", "image_height", "image_width"))
    out = jax.block_until_ready(fwd(params, x, hidden=hidden, channels=channels,
                                    image_height=image_height, image_width=image_width))

    ref = reference_forward(params, x, hidden=hidden, channels=channels,
                            image_height=image_height, image_width=image_width)
    assert out.shape == (B, num_classes), out.shape
    assert bool(jnp.all(jnp.isfinite(out)))
    # bf16 MXU operands with f32 accumulation vs. f32 reference -> loose tolerance
    assert jnp.allclose(out, ref, atol=2e-2, rtol=5e-2), (out, ref)
    print("KERNEL_OK")
</pallas_src>

<mosaic_0001>
module attributes {stable_mosaic.version = 11 : i64} {
  func.func @_cnn_lstm_kernel(%arg0: i32, %arg1: memref<128x16xf32, #tpu.memory_space<vmem>>, %arg2: memref<3x16x32xbf16, #tpu.memory_space<vmem>>, %arg3: memref<1x32xf32, #tpu.memory_space<vmem>>, %arg4: memref<3x32x64xbf16, #tpu.memory_space<vmem>>, %arg5: memref<1x64xf32, #tpu.memory_space<vmem>>, %arg6: memref<3x64x128xbf16, #tpu.memory_space<vmem>>, %arg7: memref<1x128xf32, #tpu.memory_space<vmem>>, %arg8: memref<128x128xbf16, #tpu.memory_space<vmem>>, %arg9: memref<32x128xf32, #tpu.memory_space<vmem>>, %arg10: memref<1x128xf32, #tpu.memory_space<vmem>>, %arg11: memref<256x128xbf16, #tpu.memory_space<vmem>>, %arg12: memref<1x128xf32, #tpu.memory_space<vmem>>, %arg13: memref<8x128xf32, #tpu.memory_space<vmem>>, %arg14: memref<128x32xf32, #tpu.memory_space<vmem>>, %arg15: memref<64x128xf32, #tpu.memory_space<vmem>>) attributes {dimension_semantics = [#tpu.dimension_semantics<parallel>], iteration_bounds = array<i64: 2>, scalar_prefetch = 0 : i64, scratch_operands = 2 : i64, tpu.core_type = #tpu.core_type<tc>, window_params = [{transform_indices = @transform_0, window_bounds = array<i64: 128, 16>}, {pipeline_mode = #tpu.pipeline_mode<synchronous>, transform_indices = @transform_1, window_bounds = array<i64: 3, 16, 32>}, {pipeline_mode = #tpu.pipeline_mode<synchronous>, transform_indices = @transform_2, window_bounds = array<i64: 1, 32>}, {pipeline_mode = #tpu.pipeline_mode<synchronous>, transform_indices = @transform_3, window_bounds = array<i64: 3, 32, 64>}, {pipeline_mode = #tpu.pipeline_mode<synchronous>, transform_indices = @transform_4, window_bounds = array<i64: 1, 64>}, {pipeline_mode = #tpu.pipeline_mode<synchronous>, transform_indices = @transform_5, window_bounds = array<i64: 3, 64, 128>}, {pipeline_mode = #tpu.pipeline_mode<synchronous>, transform_indices = @transform_6, window_bounds = array<i64: 1, 128>}, {pipeline_mode = #tpu.pipeline_mode<synchronous>, transform_indices = @transform_7, window_bounds = array<i64: 128, 128>}, {pipeline_mode = #tpu.pipeline_mode<synchronous>, transform_indices = @transform_8, window_bounds = array<i64: 32, 128>}, {pipeline_mode = #tpu.pipeline_mode<synchronous>, transform_indices = @transform_9, window_bounds = array<i64: 1, 128>}, {pipeline_mode = #tpu.pipeline_mode<synchronous>, transform_indices = @transform_10, window_bounds = array<i64: 256, 128>}, {pipeline_mode = #tpu.pipeline_mode<synchronous>, transform_indices = @transform_11, window_bounds = array<i64: 1, 128>}, {transform_indices = @transform_12, window_bounds = array<i64: 8, 128>}]} {
    %0 = tpu.iota {dimensions = array<i32: 0>} : vector<128x1xi32>
    %c16_i32 = arith.constant 16 : i32
    %c0_i32 = arith.constant 0 : i32
    %1 = arith.cmpi eq, %c16_i32, %c0_i32 : i32
    %c1_i32 = arith.constant 1 : i32
    %2 = arith.select %1, %c1_i32, %c16_i32 : i32
    %3 = vector.broadcast %2 : i32 to vector<128x1xi32>
    %4 = arith.remsi %0, %3 : vector<128x1xi32>
    %c0_i32_0 = arith.constant 0 : i32
    %5 = vector.broadcast %c0_i32_0 : i32 to vector<128x1xi32>
    %6 = arith.cmpi ne, %4, %5 : vector<128x1xi32>
    %c0_i32_1 = arith.constant 0 : i32
    %7 = vector.broadcast %c0_i32_1 : i32 to vector<128x1xi32>
    %8 = arith.cmpi slt, %4, %7 : vector<128x1xi32>
    %c0_i32_2 = arith.constant 0 : i32
    %9 = arith.cmpi slt, %2, %c0_i32_2 : i32
    %10 = vector.broadcast %9 : i1 to vector<128x1xi1>
    %11 = vector.broadcast %10 : vector<128x1xi1> to vector<128x1xi1>
    %12 = arith.xori %8, %11 : vector<128x1xi1>
    %13 = arith.andi %12, %6 : vector<128x1xi1>
    %14 = vector.broadcast %2 : i32 to vector<128x1xi32>
    %15 = arith.addi %4, %14 : vector<128x1xi32>
    %16 = arith.select %13, %15, %4 : vector<128x1xi1>, vector<128x1xi32>
    %17 = tpu.iota {dimensions = array<i32: 0>} : vector<64x1xi32>
    %c8_i32 = arith.constant 8 : i32
    %c0_i32_3 = arith.constant 0 : i32
    %18 = arith.cmpi eq, %c8_i32, %c0_i32_3 : i32
    %c1_i32_4 = arith.constant 1 : i32
    %19 = arith.select %18, %c1_i32_4, %c8_i32 : i32
    %20 = vector.broadcast %19 : i32 to vector<64x1xi32>
    %21 = arith.remsi %17, %20 : vector<64x1xi32>
    %c0_i32_5 = arith.constant 0 : i32
    %22 = vector.broadcast %c0_i32_5 : i32 to vector<64x1xi32>
    %23 = arith.cmpi ne, %21, %22 : vector<64x1xi32>
    %c0_i32_6 = arith.constant 0 : i32
    %24 = vector.broadcast %c0_i32_6 : i32 to vector<64x1xi32>
    %25 = arith.cmpi slt, %21, %24 : vector<64x1xi32>
    %c0_i32_7 = arith.constant 0 : i32
    %26 = arith.cmpi slt, %19, %c0_i32_7 : i32
    %27 = vector.broadcast %26 : i1 to vector<64x1xi1>
    %28 = vector.broadcast %27 : vector<64x1xi1> to vector<64x1xi1>
    %29 = arith.xori %25, %28 : vector<64x1xi1>
    %30 = arith.andi %29, %23 : vector<64x1xi1>
    %31 = vector.broadcast %19 : i32 to vector<64x1xi32>
    %32 = arith.addi %21, %31 : vector<64x1xi32>
    %33 = arith.select %30, %32, %21 : vector<64x1xi1>, vector<64x1xi32>
    %c0 = arith.constant 0 : index
    %c0_8 = arith.constant 0 : index
    %34 = vector.load %arg1[%c0, %c0_8] : memref<128x16xf32, #tpu.memory_space<vmem>>, vector<128x16xf32>
    %c0_i32_9 = arith.constant 0 : i32
    %35 = vector.broadcast %c0_i32_9 : i32 to vector<128x1xi32>
    %36 = arith.cmpi eq, %16, %35 : vector<128x1xi32>
    %c15_i32 = arith.constant 15 : i32
    %37 = vector.broadcast %c15_i32 : i32 to vector<128x1xi32>
    %38 = arith.cmpi eq, %16, %37 : vector<128x1xi32>
    %c1_i32_10 = arith.constant 1 : i32
    %39 = tpu.dynamic_rotate %34 by %c1_i32_10 dim 0 : vector<128x16xf32>, i32 -> vector<128x16xf32>
    %cst = arith.constant 0.000000e+00 : f32
    %40 = vector.shape_cast %36 : vector<128x1xi1> to vector<128x1xi1>
    %41 = vector.broadcast %40 : vector<128x1xi1> to vector<128x16xi1>
    %42 = vector.broadcast %cst : f32 to vector<128x16xf32>
    %43 = arith.select %41, %42, %39 : vector<128x16xi1>, vector<128x16xf32>
    %c127_i32 = arith.constant 127 : i32
    %44 = tpu.dynamic_rotate %34 by %c127_i32 dim 0 : vector<128x16xf32>, i32 -> vector<128x16xf32>
    %cst_11 = arith.constant 0.000000e+00 : f32
    %45 = vector.shape_cast %38 : vector<128x1xi1> to vector<128x1xi1>
    %46 = vector.broadcast %45 : vector<128x1xi1> to vector<128x16xi1>
    %47 = vector.broadcast %cst_11 : f32 to vector<128x16xf32>
    %48 = arith.select %46, %47, %44 : vector<128x16xi1>, vector<128x16xf32>
    %49 = arith.truncf %43 : vector<128x16xf32> to vector<128x16xbf16>
    %c0_12 = arith.constant 0 : index
    %c0_13 = arith.constant 0 : index
    %c0_14 = arith.constant 0 : index
    %50 = vector.load %arg2[%c0_12, %c0_13, %c0_14] : memref<3x16x32xbf16, #tpu.memory_space<vmem>>, vector<1x16x32xbf16>
    %51 = vector.shape_cast %50 : vector<1x16x32xbf16> to vector<16x32xbf16>
    %cst_15 = arith.constant dense<0.000000e+00> : vector<128x32xf32>
    %52 = tpu.matmul %49, %51, %cst_15 {dimension_numbers = #tpu.dot_dimension_numbers<[1], [0], [0], [1], [0, 0, 1, 1], [], []>} : vector<128x16xbf16>, vector<16x32xbf16>, vector<128x32xf32> -> vector<128x32xf32>
    %53 = arith.truncf %34 : vector<128x16xf32> to vector<128x16xbf16>
    %c1 = arith.constant 1 : index
    %c0_16 = arith.constant 0 : index
    %c0_17 = arith.constant 0 : index
    %54 = vector.load %arg2[%c1, %c0_16, %c0_17] : memref<3x16x32xbf16, #tpu.memory_space<vmem>>, vector<1x16x32xbf16>
    %55 = vector.shape_cast %54 : vector<1x16x32xbf16> to vector<16x32xbf16>
    %cst_18 = arith.constant dense<0.000000e+00> : vector<128x32xf32>
    %56 = tpu.matmul %53, %55, %cst_18 {dimension_numbers = #tpu.dot_dimension_numbers<[1], [0], [0], [1], [0, 0, 1, 1], [], []>} : vector<128x16xbf16>, vector<16x32xbf16>, vector<128x32xf32> -> vector<128x32xf32>
    %57 = arith.addf %52, %56 : vector<128x32xf32>
    %58 = arith.truncf %48 : vector<128x16xf32> to vector<128x16xbf16>
    %c2 = arith.constant 2 : index
    %c0_19 = arith.constant 0 : index
    %c0_20 = arith.constant 0 : index
    %59 = vector.load %arg2[%c2, %c0_19, %c0_20] : memref<3x16x32xbf16, #tpu.memory_space<vmem>>, vector<1x16x32xbf16>
    %60 = vector.shape_cast %59 : vector<1x16x32xbf16> to vector<16x32xbf16>
    %cst_21 = arith.constant dense<0.000000e+00> : vector<128x32xf32>
    %61 = tpu.matmul %58, %60, %cst_21 {dimension_numbers = #tpu.dot_dimension_numbers<[1], [0], [0], [1], [0, 0, 1, 1], [], []>} : vector<128x16xbf16>, vector<16x32xbf16>, vector<128x32xf32> -> vector<128x32xf32>
    %62 = arith.addf %57, %61 : vector<128x32xf32>
    %c0_22 = arith.constant 0 : index
    %c0_23 = arith.constant 0 : index
    %63 = vector.load %arg3[%c0_22, %c0_23] : memref<1x32xf32, #tpu.memory_space<vmem>>, vector<1x32xf32>
    %64 = vector.broadcast %63 : vector<1x32xf32> to vector<128x32xf32>
    %65 = arith.addf %62, %64 : vector<128x32xf32>
    %cst_24 = arith.constant 0.000000e+00 : f32
    %66 = vector.broadcast %cst_24 : f32 to vector<128x32xf32>
    %67 = arith.maximumf %65, %66 : vector<128x32xf32>
    %c0_25 = arith.constant 0 : index
    %c0_26 = arith.constant 0 : index
    %68 = vector.load %arg14[%c0_25, %c0_26] : memref<128x32xf32, #tpu.memory_space<vmem>>, vector<128x32xf32>
    tpu.vector_store %arg14[%c0_25, %c0_26], %67 {strides = array<i32>} : memref<128x32xf32, #tpu.memory_space<vmem>>, vector<128x32xf32>,
    %c0_27 = arith.constant 0 : index
    %c0_28 = arith.constant 0 : index
    %69 = tpu.strided_load %arg14[%c0_27, %c0_28] {strides = array<i32: 2, 1>} : memref<128x32xf32, #tpu.memory_space<vmem>>, vector<64x32xf32>
    %c1_29 = arith.constant 1 : index
    %c0_30 = arith.constant 0 : index
    %70 = tpu.strided_load %arg14[%c1_29, %c0_30] {strides = array<i32: 2, 1>} : memref<128x32xf32, #tpu.memory_space<vmem>>, vector<64x32xf32>
    %71 = arith.maximumf %69, %70 : vector<64x32xf32>
    %c0_i32_31 = arith.constant 0 : i32
    %72 = vector.broadcast %c0_i32_31 : i32 to vector<64x1xi32>
    %73 = arith.cmpi eq, %33, %72 : vector<64x1xi32>
    %c7_i32 = arith.constant 7 : i32
    %74 = vector.broadcast %c7_i32 : i32 to vector<64x1xi32>
    %75 = arith.cmpi eq, %33, %74 : vector<64x1xi32>
    %c1_i32_32 = arith.constant 1 : i32
    %76 = tpu.dynamic_rotate %71 by %c1_i32_32 dim 0 : vector<64x32xf32>, i32 -> vector<64x32xf32>
    %cst_33 = arith.constant 0.000000e+00 : f32
    %77 = vector.shape_cast %73 : vector<64x1xi1> to vector<64x1xi1>
    %78 = vector.broadcast %77 : vector<64x1xi1> to vector<64x32xi1>
    %79 = vector.broadcast %cst_33 : f32 to vector<64x32xf32>
    %80 = arith.select %78, %79, %76 : vector<64x32xi1>, vector<64x32xf32>
    %c63_i32 = arith.constant 63 : i32
    %81 = tpu.dynamic_rotate %71 by %c63_i32 dim 0 : vector<64x32xf32>, i32 -> vector<64x32xf32>
    %cst_34 = arith.constant 0.000000e+00 : f32
    %82 = vector.shape_cast %75 : vector<64x1xi1> to vector<64x1xi1>
    %83 = vector.broadcast %82 : vector<64x1xi1> to vector<64x32xi1>
    %84 = vector.broadcast %cst_34 : f32 to vector<64x32xf32>
    %85 = arith.select %83, %84, %81 : vector<64x32xi1>, vector<64x32xf32>
    %86 = arith.truncf %80 : vector<64x32xf32> to vector<64x32xbf16>
    %c0_35 = arith.constant 0 : index
    %c0_36 = arith.constant 0 : index
    %c0_37 = arith.constant 0 : index
    %87 = vector.load %arg4[%c0_35, %c0_36, %c0_37] : memref<3x32x64xbf16, #tpu.memory_space<vmem>>, vector<1x32x64xbf16>
    %88 = vector.shape_cast %87 : vector<1x32x64xbf16> to vector<32x64xbf16>
    %cst_38 = arith.constant dense<0.000000e+00> : vector<64x64xf32>
    %89 = tpu.matmul %86, %88, %cst_38 {dimension_numbers = #tpu.dot_dimension_numbers<[1], [0], [0], [1], [0, 0, 1, 1], [], []>} : vector<64x32xbf16>, vector<32x64xbf16>, vector<64x64xf32> -> vector<64x64xf32>
    %90 = arith.truncf %71 : vector<64x32xf32> to vector<64x32xbf16>
    %c1_39 = arith.constant 1 : index
    %c0_40 = arith.constant 0 : index
    %c0_41 = arith.constant 0 : index
    %91 = vector.load %arg4[%c1_39, %c0_40, %c0_41] : memref<3x32x64xbf16, #tpu.memory_space<vmem>>, vector<1x32x64xbf16>
    %92 = vector.shape_cast %91 : vector<1x32x64xbf16> to vector<32x64xbf16>
    %cst_42 = arith.constant dense<0.000000e+00> : vector<64x64xf32>
    %93 = tpu.matmul %90, %92, %cst_42 {dimension_numbers = #tpu.dot_dimension_numbers<[1], [0], [0], [1], [0, 0, 1, 1], [], []>} : vector<64x32xbf16>, vector<32x64xbf16>, vector<64x64xf32> -> vector<64x64xf32>
    %94 = arith.addf %89, %93 : vector<64x64xf32>
    %95 = arith.truncf %85 : vector<64x32xf32> to vector<64x32xbf16>
    %c2_43 = arith.constant 2 : index
    %c0_44 = arith.constant 0 : index
    %c0_45 = arith.constant 0 : index
    %96 = vector.load %arg4[%c2_43, %c0_44, %c0_45] : memref<3x32x64xbf16, #tpu.memory_space<vmem>>, vector<1x32x64xbf16>
    %97 = vector.shape_cast %96 : vector<1x32x64xbf16> to vector<32x64xbf16>
    %cst_46 = arith.constant dense<0.000000e+00> : vector<64x64xf32>
    %98 = tpu.matmul %95, %97, %cst_46 {dimension_numbers = #tpu.dot_dimension_numbers<[1], [0], [0], [1], [0, 0, 1, 1], [], []>} : vector<64x32xbf16>, vector<32x64xbf16>, vector<64x64xf32> -> vector<64x64xf32>
    %99 = arith.addf %94, %98 : vector<64x64xf32>
    %c0_47 = arith.constant 0 : index
    %c0_48 = arith.constant 0 : index
    %100 = vector.load %arg5[%c0_47, %c0_48] : memref<1x64xf32, #tpu.memory_space<vmem>>, vector<1x64xf32>
    %101 = vector.broadcast %100 : vector<1x64xf32> to vector<64x64xf32>
    %102 = arith.addf %99, %101 : vector<64x64xf32>
    %cst_49 = arith.constant 0.000000e+00 : f32
    %103 = vector.broadcast %cst_49 : f32 to vector<64x64xf32>
    %104 = arith.maximumf %102, %103 : vector<64x64xf32>
    %c0_i32_50 = arith.constant 0 : i32
    %105 = vector.broadcast %c0_i32_50 : i32 to vector<64x1xi32>
    %106 = arith.cmpi eq, %33, %105 : vector<64x1xi32>
    %c7_i32_51 = arith.constant 7 : i32
    %107 = vector.broadcast %c7_i32_51 : i32 to vector<64x1xi32>
    %108 = arith.cmpi eq, %33, %107 : vector<64x1xi32>
    %c1_i32_52 = arith.constant 1 : i32
    %109 = tpu.dynamic_rotate %104 by %c1_i32_52 dim 0 : vector<64x64xf32>, i32 -> vector<64x64xf32>
    %cst_53 = arith.constant 0.000000e+00 : f32
    %110 = vector.shape_cast %106 : vector<64x1xi1> to vector<64x1xi1>
    %111 = vector.broadcast %110 : vector<64x1xi1> to vector<64x64xi1>
    %112 = vector.broadcast %cst_53 : f32 to vector<64x64xf32>
    %113 = arith.select %111, %112, %109 : vector<64x64xi1>, vector<64x64xf32>
    %c63_i32_54 = arith.constant 63 : i32
    %114 = tpu.dynamic_rotate %104 by %c63_i32_54 dim 0 : vector<64x64xf32>, i32 -> vector<64x64xf32>
    %cst_55 = arith.constant 0.000000e+00 : f32
    %115 = vector.shape_cast %108 : vector<64x1xi1> to vector<64x1xi1>
    %116 = vector.broadcast %115 : vector<64x1xi1> to vector<64x64xi1>
    %117 = vector.broadcast %cst_55 : f32 to vector<64x64xf32>
    %118 = arith.select %116, %117, %114 : vector<64x64xi1>, vector<64x64xf32>
    %119 = arith.truncf %113 : vector<64x64xf32> to vector<64x64xbf16>
    %c0_56 = arith.constant 0 : index
    %c0_57 = arith.constant 0 : index
    %c0_58 = arith.constant 0 : index
    %120 = vector.load %arg6[%c0_56, %c0_57, %c0_58] : memref<3x64x128xbf16, #tpu.memory_space<vmem>>, vector<1x64x128xbf16>
    %121 = vector.shape_cast %120 : vector<1x64x128xbf16> to vector<64x128xbf16>
    %cst_59 = arith.constant dense<0.000000e+00> : vector<64x128xf32>
    %122 = tpu.matmul %119, %121, %cst_59 {dimension_numbers = #tpu.dot_dimension_numbers<[1], [0], [0], [1], [0, 0, 1, 1], [], []>} : vector<64x64xbf16>, vector<64x128xbf16>, vector<64x128xf32> -> vector<64x128xf32>
    %123 = arith.truncf %104 : vector<64x64xf32> to vector<64x64xbf16>
    %c1_60 = arith.constant 1 : index
    %c0_61 = arith.constant 0 : index
    %c0_62 = arith.constant 0 : index
    %124 = vector.load %arg6[%c1_60, %c0_61, %c0_62] : memref<3x64x128xbf16, #tpu.memory_space<vmem>>, vector<1x64x128xbf16>
    %125 = vector.shape_cast %124 : vector<1x64x128xbf16> to vector<64x128xbf16>
    %cst_63 = arith.constant dense<0.000000e+00> : vector<64x128xf32>
    %126 = tpu.matmul %123, %125, %cst_63 {dimension_numbers = #tpu.dot_dimension_numbers<[1], [0], [0], [1], [0, 0, 1, 1], [], []>} : vector<64x64xbf16>, vector<64x128xbf16>, vector<64x128xf32> -> vector<64x128xf32>
    %127 = arith.addf %122, %126 : vector<64x128xf32>
    %128 = arith.truncf %118 : vector<64x64xf32> to vector<64x64xbf16>
    %c2_64 = arith.constant 2 : index
    %c0_65 = arith.constant 0 : index
    %c0_66 = arith.constant 0 : index
    %129 = vector.load %arg6[%c2_64, %c0_65, %c0_66] : memref<3x64x128xbf16, #tpu.memory_space<vmem>>, vector<1x64x128xbf16>
    %130 = vector.shape_cast %129 : vector<1x64x128xbf16> to vector<64x128xbf16>
    %cst_67 = arith.constant dense<0.000000e+00> : vector<64x128xf32>
    %131 = tpu.matmul %128, %130, %cst_67 {dimension_numbers = #tpu.dot_dimension_numbers<[1], [0], [0], [1], [0, 0, 1, 1], [], []>} : vector<64x64xbf16>, vector<64x128xbf16>, vector<64x128xf32> -> vector<64x128xf32>
    %132 = arith.addf %127, %131 : vector<64x128xf32>
    %c0_68 = arith.constant 0 : index
    %c0_69 = arith.constant 0 : index
    %133 = vector.load %arg7[%c0_68, %c0_69] : memref<1x128xf32, #tpu.memory_space<vmem>>, vector<1x128xf32>
    %134 = vector.broadcast %133 : vector<1x128xf32> to vector<64x128xf32>
    %135 = arith.addf %132, %134 : vector<64x128xf32>
    %cst_70 = arith.constant 0.000000e+00 : f32
    %136 = vector.broadcast %cst_70 : f32 to vector<64x128xf32>
    %137 = arith.maximumf %135, %136 : vector<64x128xf32>
    %138 = arith.truncf %137 : vector<64x128xf32> to vector<64x128xbf16>
    %c0_71 = arith.constant 0 : index
    %c0_72 = arith.constant 0 : index
    %139 = vector.load %arg8[%c0_71, %c0_72] : memref<128x128xbf16, #tpu.memory_space<vmem>>, vector<128x128xbf16>
    %cst_73 = arith.constant dense<0.000000e+00> : vector<64x128xf32>
    %140 = tpu.matmul %138, %139, %cst_73 {dimension_numbers = #tpu.dot_dimension_numbers<[1], [0], [0], [1], [0, 0, 1, 1], [], []>} : vector<64x128xbf16>, vector<128x128xbf16>, vector<64x128xf32> -> vector<64x128xf32>
    %c0_74 = arith.constant 0 : index
    %c0_75 = arith.constant 0 : index
    %141 = vector.load %arg10[%c0_74, %c0_75] : memref<1x128xf32, #tpu.memory_space<vmem>>, vector<1x128xf32>
    %142 = vector.broadcast %141 : vector<1x128xf32> to vector<64x128xf32>
    %143 = arith.addf %140, %142 : vector<64x128xf32>
    %c0_76 = arith.constant 0 : index
    %c0_77 = arith.constant 0 : index
    %144 = vector.load %arg15[%c0_76, %c0_77] : memref<64x128xf32, #tpu.memory_space<vmem>>, vector<64x128xf32>
    tpu.vector_store %arg15[%c0_76, %c0_77], %143 {strides = array<i32>} : memref<64x128xf32, #tpu.memory_space<vmem>>, vector<64x128xf32>,
    %c0_78 = arith.constant 0 : index
    %c0_79 = arith.constant 0 : index
    %145 = vector.load %arg9[%c0_78, %c0_79] : memref<32x128xf32, #tpu.memory_space<vmem>>, vector<32x128xf32>
    %cst_80 = arith.constant 0.000000e+00 : f32
    %146 = vector.broadcast %cst_80 : f32 to vector<8x32xf32>
    %cst_81 = arith.constant 0.000000e+00 : f32
    %147 = vector.broadcast %cst_81 : f32 to vector<8x32xf32>
    %cst_82 = arith.constant 0.000000e+00 : f32
    %148 = vector.broadcast %cst_82 : f32 to vector<8x128xf32>
    %c0_83 = arith.constant 0 : index
    %c0_84 = arith.constant 0 : index
    %149 = tpu.strided_load %arg15[%c0_83, %c0_84] {strides = array<i32: 8, 1>} : memref<64x128xf32, #tpu.memory_space<vmem>>, vector<8x128xf32>
    %cst_85 = arith.constant dense<0.000000e+00> : vector<8x128xf32>
    %150 = tpu.matmul %146, %145, %cst_85 {dimension_numbers = #tpu.dot_dimension_numbers<[1], [0], [0], [1], [0, 0, 1, 1], [], []>} : vector<8x32xf32>, vector<32x128xf32>, vector<8x128xf32> -> vector<8x128xf32>
    %151 = arith.addf %149, %150 : vector<8x128xf32>
    %152 = vector.extract_strided_slice %151 {offsets = [0, 0], sizes = [8, 32], strides = [1, 1]} : vector<8x128xf32> to vector<8x32xf32>
    %153 = arith.negf %152 : vector<8x32xf32>
    %154 = math.exp %153 : vector<8x32xf32>
    %cst_86 = arith.constant 1.000000e+00 : f32
    %155 = vector.broadcast %cst_86 : f32 to vector<8x32xf32>
    %156 = arith.addf %155, %154 : vector<8x32xf32>
    %157 = arith.divf %155, %156 : vector<8x32xf32>
    %158 = vector.extract_strided_slice %151 {offsets = [0, 32], sizes = [8, 32], strides = [1, 1]} : vector<8x128xf32> to vector<8x32xf32>
    %159 = arith.negf %158 : vector<8x32xf32>
    %160 = math.exp %159 : vector<8x32xf32>
    %cst_87 = arith.constant 1.000000e+00 : f32
    %161 = vector.broadcast %cst_87 : f32 to vector<8x32xf32>
    %162 = arith.addf %161, %160 : vector<8x32xf32>
    %163 = arith.divf %161, %162 : vector<8x32xf32>
    %164 = vector.extract_strided_slice %151 {offsets = [0, 64], sizes = [8, 32], strides = [1, 1]} : vector<8x128xf32> to vector<8x32xf32>
    %165 = math.tanh %164 : vector<8x32xf32>
    %166 = vector.extract_strided_slice %151 {offsets = [0, 96], sizes = [8, 32], strides = [1, 1]} : vector<8x128xf32> to vector<8x32xf32>
    %167 = arith.negf %166 : vector<8x32xf32>
    %168 = math.exp %167 : vector<8x32xf32>
    %cst_88 = arith.constant 1.000000e+00 : f32
    %169 = vector.broadcast %cst_88 : f32 to vector<8x32xf32>
    %170 = arith.addf %169, %168 : vector<8x32xf32>
    %171 = arith.divf %169, %170 : vector<8x32xf32>
    %172 = arith.mulf %163, %147 : vector<8x32xf32>
    %173 = arith.mulf %157, %165 : vector<8x32xf32>
    %174 = arith.addf %172, %173 : vector<8x32xf32>
    %175 = math.tanh %174 : vector<8x32xf32>
    %176 = arith.mulf %171, %175 : vector<8x32xf32>
    %177 = arith.truncf %176 : vector<8x32xf32> to vector<8x32xbf16>
    %c0_89 = arith.constant 0 : index
    %c0_90 = arith.constant 0 : index
    %178 = vector.load %arg11[%c0_89, %c0_90] : memref<256x128xbf16, #tpu.memory_space<vmem>>, vector<32x128xbf16>
    %cst_91 = arith.constant dense<0.000000e+00> : vector<8x128xf32>
    %179 = tpu.matmul %177, %178, %cst_91 {dimension_numbers = #tpu.dot_dimension_numbers<[1], [0], [0], [1], [0, 0, 1, 1], [], []>} : vector<8x32xbf16>, vector<32x128xbf16>, vector<8x128xf32> -> vector<8x128xf32>
    %180 = arith.addf %148, %179 : vector<8x128xf32>
    %c1_92 = arith.constant 1 : index
    %c0_93 = arith.constant 0 : index
    %181 = tpu.strided_load %arg15[%c1_92, %c0_93] {strides = array<i32: 8, 1>} : memref<64x128xf32, #tpu.memory_space<vmem>>, vector<8x128xf32>
    %cst_94 = arith.constant dense<0.000000e+00> : vector<8x128xf32>
    %182 = tpu.matmul %176, %145, %cst_94 {dimension_numbers = #tpu.dot_dimension_numbers<[1], [0], [0], [1], [0, 0, 1, 1], [], []>} : vector<8x32xf32>, vector<32x128xf32>, vector<8x128xf32> -> vector<8x128xf32>
    %183 = arith.addf %181, %182 : vector<8x128xf32>
    %184 = vector.extract_strided_slice %183 {offsets = [0, 0], sizes = [8, 32], strides = [1, 1]} : vector<8x128xf32> to vector<8x32xf32>
    %185 = arith.negf %184 : vector<8x32xf32>
    %186 = math.exp %185 : vector<8x32xf32>
    %cst_95 = arith.constant 1.000000e+00 : f32
    %187 = vector.broadcast %cst_95 : f32 to vector<8x32xf32>
    %188 = arith.addf %187, %186 : vector<8x32xf32>
    %189 = arith.divf %187, %188 : vector<8x32xf32>
    %190 = vector.extract_strided_slice %183 {offsets = [0, 32], sizes = [8, 32], strides = [1, 1]} : vector<8x128xf32> to vector<8x32xf32>
    %191 = arith.negf %190 : vector<8x32xf32>
    %192 = math.exp %191 : vector<8x32xf32>
    %cst_96 = arith.constant 1.000000e+00 : f32
    %193 = vector.broadcast %cst_96 : f32 to vector<8x32xf32>
    %194 = arith.addf %193, %192 : vector<8x32xf32>
    %195 = arith.divf %193, %194 : vector<8x32xf32>
    %196 = vector.extract_strided_slice %183 {offsets = [0, 64], sizes = [8, 32], strides = [1, 1]} : vector<8x128xf32> to vector<8x32xf32>
    %197 = math.tanh %196 : vector<8x32xf32>
    %198 = vector.extract_strided_slice %183 {offsets = [0, 96], sizes = [8, 32], strides = [1, 1]} : vector<8x128xf32> to vector<8x32xf32>
    %199 = arith.negf %198 : vector<8x32xf32>
    %200 = math.exp %199 : vector<8x32xf32>
    %cst_97 = arith.constant 1.000000e+00 : f32
    %201 = vector.broadcast %cst_97 : f32 to vector<8x32xf32>
    %202 = arith.addf %201, %200 : vector<8x32xf32>
    %203 = arith.divf %201, %202 : vector<8x32xf32>
    %204 = arith.mulf %195, %174 : vector<8x32xf32>
    %205 = arith.mulf %189, %197 : vector<8x32xf32>
    %206 = arith.addf %204, %205 : vector<8x32xf32>
    %207 = math.tanh %206 : vector<8x32xf32>
    %208 = arith.mulf %203, %207 : vector<8x32xf32>
    %209 = arith.truncf %208 : vector<8x32xf32> to vector<8x32xbf16>
    %c32 = arith.constant 32 : index
    %c0_98 = arith.constant 0 : index
    %210 = vector.load %arg11[%c32, %c0_98] : memref<256x128xbf16, #tpu.memory_space<vmem>>, vector<32x128xbf16>
    %cst_99 = arith.constant dense<0.000000e+00> : vector<8x128xf32>
    %211 = tpu.matmul %209, %210, %cst_99 {dimension_numbers = #tpu.dot_dimension_numbers<[1], [0], [0], [1], [0, 0, 1, 1], [], []>} : vector<8x32xbf16>, vector<32x128xbf16>, vector<8x128xf32> -> vector<8x128xf32>
    %212 = arith.addf %180, %211 : vector<8x128xf32>
    %c2_100 = arith.constant 2 : index
    %c0_101 = arith.constant 0 : index
    %213 = tpu.strided_load %arg15[%c2_100, %c0_101] {strides = array<i32: 8, 1>} : memref<64x128xf32, #tpu.memory_space<vmem>>, vector<8x128xf32>
    %cst_102 = arith.constant dense<0.000000e+00> : vector<8x128xf32>
    %214 = tpu.matmul %208, %145, %cst_102 {dimension_numbers = #tpu.dot_dimension_numbers<[1], [0], [0], [1], [0, 0, 1, 1], [], []>} : vector<8x32xf32>, vector<32x128xf32>, vector<8x128xf32> -> vector<8x128xf32>
    %215 = arith.addf %213, %214 : vector<8x128xf32>
    %216 = vector.extract_strided_slice %215 {offsets = [0, 0], sizes = [8, 32], strides = [1, 1]} : vector<8x128xf32> to vector<8x32xf32>
    %217 = arith.negf %216 : vector<8x32xf32>
    %218 = math.exp %217 : vector<8x32xf32>
    %cst_103 = arith.constant 1.000000e+00 : f32
    %219 = vector.broadcast %cst_103 : f32 to vector<8x32xf32>
    %220 = arith.addf %219, %218 : vector<8x32xf32>
    %221 = arith.divf %219, %220 : vector<8x32xf32>
    %222 = vector.extract_strided_slice %215 {offsets = [0, 32], sizes = [8, 32], strides = [1, 1]} : vector<8x128xf32> to vector<8x32xf32>
    %223 = arith.negf %222 : vector<8x32xf32>
    %224 = math.exp %223 : vector<8x32xf32>
    %cst_104 = arith.constant 1.000000e+00 : f32
    %225 = vector.broadcast %cst_104 : f32 to vector<8x32xf32>
    %226 = arith.addf %225, %224 : vector<8x32xf32>
    %227 = arith.divf %225, %226 : vector<8x32xf32>
    %228 = vector.extract_strided_slice %215 {offsets = [0, 64], sizes = [8, 32], strides = [1, 1]} : vector<8x128xf32> to vector<8x32xf32>
    %229 = math.tanh %228 : vector<8x32xf32>
    %230 = vector.extract_strided_slice %215 {offsets = [0, 96], sizes = [8, 32], strides = [1, 1]} : vector<8x128xf32> to vector<8x32xf32>
    %231 = arith.negf %230 : vector<8x32xf32>
    %232 = math.exp %231 : vector<8x32xf32>
    %cst_105 = arith.constant 1.000000e+00 : f32
    %233 = vector.broadcast %cst_105 : f32 to vector<8x32xf32>
    %234 = arith.addf %233, %232 : vector<8x32xf32>
    %235 = arith.divf %233, %234 : vector<8x32xf32>
    %236 = arith.mulf %227, %206 : vector<8x32xf32>
    %237 = arith.mulf %221, %229 : vector<8x32xf32>
    %238 = arith.addf %236, %237 : vector<8x32xf32>
    %239 = math.tanh %238 : vector<8x32xf32>
    %240 = arith.mulf %235, %239 : vector<8x32xf32>
    %241 = arith.truncf %240 : vector<8x32xf32> to vector<8x32xbf16>
    %c64 = arith.constant 64 : index
    %c0_106 = arith.constant 0 : index
    %242 = vector.load %arg11[%c64, %c0_106] : memref<256x128xbf16, #tpu.memory_space<vmem>>, vector<32x128xbf16>
    %cst_107 = arith.constant dense<0.000000e+00> : vector<8x128xf32>
    %243 = tpu.matmul %241, %242, %cst_107 {dimension_numbers = #tpu.dot_dimension_numbers<[1], [0], [0], [1], [0, 0, 1, 1], [], []>} : vector<8x32xbf16>, vector<32x128xbf16>, vector<8x128xf32> -> vector<8x128xf32>
    %244 = arith.addf %212, %243 : vector<8x128xf32>
    %c3 = arith.constant 3 : index
    %c0_108 = arith.constant 0 : index
    %245 = tpu.strided_load %arg15[%c3, %c0_108] {strides = array<i32: 8, 1>} : memref<64x128xf32, #tpu.memory_space<vmem>>, vector<8x128xf32>
    %cst_109 = arith.constant dense<0.000000e+00> : vector<8x128xf32>
    %246 = tpu.matmul %240, %145, %cst_109 {dimension_numbers = #tpu.dot_dimension_numbers<[1], [0], [0], [1], [0, 0, 1, 1], [], []>} : vector<8x32xf32>, vector<32x128xf32>, vector<8x128xf32> -> vector<8x128xf32>
    %247 = arith.addf %245, %246 : vector<8x128xf32>
    %248 = vector.extract_strided_slice %247 {offsets = [0, 0], sizes = [8, 32], strides = [1, 1]} : vector<8x128xf32> to vector<8x32xf32>
    %249 = arith.negf %248 : vector<8x32xf32>
    %250 = math.exp %249 : vector<8x32xf32>
    %cst_110 = arith.constant 1.000000e+00 : f32
    %251 = vector.broadcast %cst_110 : f32 to vector<8x32xf32>
    %252 = arith.addf %251, %250 : vector<8x32xf32>
    %253 = arith.divf %251, %252 : vector<8x32xf32>
    %254 = vector.extract_strided_slice %247 {offsets = [0, 32], sizes = [8, 32], strides = [1, 1]} : vector<8x128xf32> to vector<8x32xf32>
    %255 = arith.negf %254 : vector<8x32xf32>
    %256 = math.exp %255 : vector<8x32xf32>
    %cst_111 = arith.constant 1.000000e+00 : f32
    %257 = vector.broadcast %cst_111 : f32 to vector<8x32xf32>
    %258 = arith.addf %257, %256 : vector<8x32xf32>
    %259 = arith.divf %257, %258 : vector<8x32xf32>
    %260 = vector.extract_strided_slice %247 {offsets = [0, 64], sizes = [8, 32], strides = [1, 1]} : vector<8x128xf32> to vector<8x32xf32>
    %261 = math.tanh %260 : vector<8x32xf32>
    %262 = vector.extract_strided_slice %247 {offsets = [0, 96], sizes = [8, 32], strides = [1, 1]} : vector<8x128xf32> to vector<8x32xf32>
    %263 = arith.negf %262 : vector<8x32xf32>
    %264 = math.exp %263 : vector<8x32xf32>
    %cst_112 = arith.constant 1.000000e+00 : f32
    %265 = vector.broadcast %cst_112 : f32 to vector<8x32xf32>
    %266 = arith.addf %265, %264 : vector<8x32xf32>
    %267 = arith.divf %265, %266 : vector<8x32xf32>
    %268 = arith.mulf %259, %238 : vector<8x32xf32>
    %269 = arith.mulf %253, %261 : vector<8x32xf32>
    %270 = arith.addf %268, %269 : vector<8x32xf32>
    %271 = math.tanh %270 : vector<8x32xf32>
    %272 = arith.mulf %267, %271 : vector<8x32xf32>
    %273 = arith.truncf %272 : vector<8x32xf32> to vector<8x32xbf16>
    %c96 = arith.constant 96 : index
    %c0_113 = arith.constant 0 : index
    %274 = vector.load %arg11[%c96, %c0_113] : memref<256x128xbf16, #tpu.memory_space<vmem>>, vector<32x128xbf16>
    %cst_114 = arith.constant dense<0.000000e+00> : vector<8x128xf32>
    %275 = tpu.matmul %273, %274, %cst_114 {dimension_numbers = #tpu.dot_dimension_numbers<[1], [0], [0], [1], [0, 0, 1, 1], [], []>} : vector<8x32xbf16>, vector<32x128xbf16>, vector<8x128xf32> -> vector<8x128xf32>
    %276 = arith.addf %244, %275 : vector<8x128xf32>
    %c4 = arith.constant 4 : index
    %c0_115 = arith.constant 0 : index
    %277 = tpu.strided_load %arg15[%c4, %c0_115] {strides = array<i32: 8, 1>} : memref<64x128xf32, #tpu.memory_space<vmem>>, vector<8x128xf32>
    %cst_116 = arith.constant dense<0.000000e+00> : vector<8x128xf32>
    %278 = tpu.matmul %272, %145, %cst_116 {dimension_numbers = #tpu.dot_dimension_numbers<[1], [0], [0], [1], [0, 0, 1, 1], [], []>} : vector<8x32xf32>, vector<32x128xf32>, vector<8x128xf32> -> vector<8x128xf32>
    %279 = arith.addf %277, %278 : vector<8x128xf32>
    %280 = vector.extract_strided_slice %279 {offsets = [0, 0], sizes = [8, 32], strides = [1, 1]} : vector<8x128xf32> to vector<8x32xf32>
    %281 = arith.negf %280 : vector<8x32xf32>
    %282 = math.exp %281 : vector<8x32xf32>
    %cst_117 = arith.constant 1.000000e+00 : f32
    %283 = vector.broadcast %cst_117 : f32 to vector<8x32xf32>
    %284 = arith.addf %283, %282 : vector<8x32xf32>
    %285 = arith.divf %283, %284 : vector<8x32xf32>
    %286 = vector.extract_strided_slice %279 {offsets = [0, 32], sizes = [8, 32], strides = [1, 1]} : vector<8x128xf32> to vector<8x32xf32>
    %287 = arith.negf %286 : vector<8x32xf32>
    %288 = math.exp %287 : vector<8x32xf32>
    %cst_118 = arith.constant 1.000000e+00 : f32
    %289 = vector.broadcast %cst_118 : f32 to vector<8x32xf32>
    %290 = arith.addf %289, %288 : vector<8x32xf32>
    %291 = arith.divf %289, %290 : vector<8x32xf32>
    %292 = vector.extract_strided_slice %279 {offsets = [0, 64], sizes = [8, 32], strides = [1, 1]} : vector<8x128xf32> to vector<8x32xf32>
    %293 = math.tanh %292 : vector<8x32xf32>
    %294 = vector.extract_strided_slice %279 {offsets = [0, 96], sizes = [8, 32], strides = [1, 1]} : vector<8x128xf32> to vector<8x32xf32>
    %295 = arith.negf %294 : vector<8x32xf32>
    %296 = math.exp %295 : vector<8x32xf32>
    %cst_119 = arith.constant 1.000000e+00 : f32
    %297 = vector.broadcast %cst_119 : f32 to vector<8x32xf32>
    %298 = arith.addf %297, %296 : vector<8x32xf32>
    %299 = arith.divf %297, %298 : vector<8x32xf32>
    %300 = arith.mulf %291, %270 : vector<8x32xf32>
    %301 = arith.mulf %285, %293 : vector<8x32xf32>
    %302 = arith.addf %300, %301 : vector<8x32xf32>
    %303 = math.tanh %302 : vector<8x32xf32>
    %304 = arith.mulf %299, %303 : vector<8x32xf32>
    %305 = arith.truncf %304 : vector<8x32xf32> to vector<8x32xbf16>
    %c128 = arith.constant 128 : index
    %c0_120 = arith.constant 0 : index
    %306 = vector.load %arg11[%c128, %c0_120] : memref<256x128xbf16, #tpu.memory_space<vmem>>, vector<32x128xbf16>
    %cst_121 = arith.constant dense<0.000000e+00> : vector<8x128xf32>
    %307 = tpu.matmul %305, %306, %cst_121 {dimension_numbers = #tpu.dot_dimension_numbers<[1], [0], [0], [1], [0, 0, 1, 1], [], []>} : vector<8x32xbf16>, vector<32x128xbf16>, vector<8x128xf32> -> vector<8x128xf32>
    %308 = arith.addf %276, %307 : vector<8x128xf32>
    %c5 = arith.constant 5 : index
    %c0_122 = arith.constant 0 : index
    %309 = tpu.strided_load %arg15[%c5, %c0_122] {strides = array<i32: 8, 1>} : memref<64x128xf32, #tpu.memory_space<vmem>>, vector<8x128xf32>
    %cst_123 = arith.constant dense<0.000000e+00> : vector<8x128xf32>
    %310 = tpu.matmul %304, %145, %cst_123 {dimension_numbers = #tpu.dot_dimension_numbers<[1], [0], [0], [1], [0, 0, 1, 1], [], []>} : vector<8x32xf32>, vector<32x128xf32>, vector<8x128xf32> -> vector<8x128xf32>
    %311 = arith.addf %309, %310 : vector<8x128xf32>
    %312 = vector.extract_strided_slice %311 {offsets = [0, 0], sizes = [8, 32], strides = [1, 1]} : vector<8x128xf32> to vector<8x32xf32>
    %313 = arith.negf %312 : vector<8x32xf32>
    %314 = math.exp %313 : vector<8x32xf32>
    %cst_124 = arith.constant 1.000000e+00 : f32
    %315 = vector.broadcast %cst_124 : f32 to vector<8x32xf32>
    %316 = arith.addf %315, %314 : vector<8x32xf32>
    %317 = arith.divf %315, %316 : vector<8x32xf32>
    %318 = vector.extract_strided_slice %311 {offsets = [0, 32], sizes = [8, 32], strides = [1, 1]} : vector<8x128xf32> to vector<8x32xf32>
    %319 = arith.negf %318 : vector<8x32xf32>
    %320 = math.exp %319 : vector<8x32xf32>
    %cst_125 = arith.constant 1.000000e+00 : f32
    %321 = vector.broadcast %cst_125 : f32 to vector<8x32xf32>
    %322 = arith.addf %321, %320 : vector<8x32xf32>
    %323 = arith.divf %321, %322 : vector<8x32xf32>
    %324 = vector.extract_strided_slice %311 {offsets = [0, 64], sizes = [8, 32], strides = [1, 1]} : vector<8x128xf32> to vector<8x32xf32>
    %325 = math.tanh %324 : vector<8x32xf32>
    %326 = vector.extract_strided_slice %311 {offsets = [0, 96], sizes = [8, 32], strides = [1, 1]} : vector<8x128xf32> to vector<8x32xf32>
    %327 = arith.negf %326 : vector<8x32xf32>
    %328 = math.exp %327 : vector<8x32xf32>
    %cst_126 = arith.constant 1.000000e+00 : f32
    %329 = vector.broadcast %cst_126 : f32 to vector<8x32xf32>
    %330 = arith.addf %329, %328 : vector<8x32xf32>
    %331 = arith.divf %329, %330 : vector<8x32xf32>
    %332 = arith.mulf %323, %302 : vector<8x32xf32>
    %333 = arith.mulf %317, %325 : vector<8x32xf32>
    %334 = arith.addf %332, %333 : vector<8x32xf32>
    %335 = math.tanh %334 : vector<8x32xf32>
    %336 = arith.mulf %331, %335 : vector<8x32xf32>
    %337 = arith.truncf %336 : vector<8x32xf32> to vector<8x32xbf16>
    %c160 = arith.constant 160 : index
    %c0_127 = arith.constant 0 : index
    %338 = vector.load %arg11[%c160, %c0_127] : memref<256x128xbf16, #tpu.memory_space<vmem>>, vector<32x128xbf16>
    %cst_128 = arith.constant dense<0.000000e+00> : vector<8x128xf32>
    %339 = tpu.matmul %337, %338, %cst_128 {dimension_numbers = #tpu.dot_dimension_numbers<[1], [0], [0], [1], [0, 0, 1, 1], [], []>} : vector<8x32xbf16>, vector<32x128xbf16>, vector<8x128xf32> -> vector<8x128xf32>
    %340 = arith.addf %308, %339 : vector<8x128xf32>
    %c6 = arith.constant 6 : index
    %c0_129 = arith.constant 0 : index
    %341 = tpu.strided_load %arg15[%c6, %c0_129] {strides = array<i32: 8, 1>} : memref<64x128xf32, #tpu.memory_space<vmem>>, vector<8x128xf32>
    %cst_130 = arith.constant dense<0.000000e+00> : vector<8x128xf32>
    %342 = tpu.matmul %336, %145, %cst_130 {dimension_numbers = #tpu.dot_dimension_numbers<[1], [0], [0], [1], [0, 0, 1, 1], [], []>} : vector<8x32xf32>, vector<32x128xf32>, vector<8x128xf32> -> vector<8x128xf32>
    %343 = arith.addf %341, %342 : vector<8x128xf32>
    %344 = vector.extract_strided_slice %343 {offsets = [0, 0], sizes = [8, 32], strides = [1, 1]} : vector<8x128xf32> to vector<8x32xf32>
    %345 = arith.negf %344 : vector<8x32xf32>
    %346 = math.exp %345 : vector<8x32xf32>
    %cst_131 = arith.constant 1.000000e+00 : f32
    %347 = vector.broadcast %cst_131 : f32 to vector<8x32xf32>
    %348 = arith.addf %347, %346 : vector<8x32xf32>
    %349 = arith.divf %347, %348 : vector<8x32xf32>
    %350 = vector.extract_strided_slice %343 {offsets = [0, 32], sizes = [8, 32], strides = [1, 1]} : vector<8x128xf32> to vector<8x32xf32>
    %351 = arith.negf %350 : vector<8x32xf32>
    %352 = math.exp %351 : vector<8x32xf32>
    %cst_132 = arith.constant 1.000000e+00 : f32
    %353 = vector.broadcast %cst_132 : f32 to vector<8x32xf32>
    %354 = arith.addf %353, %352 : vector<8x32xf32>
    %355 = arith.divf %353, %354 : vector<8x32xf32>
    %356 = vector.extract_strided_slice %343 {offsets = [0, 64], sizes = [8, 32], strides = [1, 1]} : vector<8x128xf32> to vector<8x32xf32>
    %357 = math.tanh %356 : vector<8x32xf32>
    %358 = vector.extract_strided_slice %343 {offsets = [0, 96], sizes = [8, 32], strides = [1, 1]} : vector<8x128xf32> to vector<8x32xf32>
    %359 = arith.negf %358 : vector<8x32xf32>
    %360 = math.exp %359 : vector<8x32xf32>
    %cst_133 = arith.constant 1.000000e+00 : f32
    %361 = vector.broadcast %cst_133 : f32 to vector<8x32xf32>
    %362 = arith.addf %361, %360 : vector<8x32xf32>
    %363 = arith.divf %361, %362 : vector<8x32xf32>
    %364 = arith.mulf %355, %334 : vector<8x32xf32>
    %365 = arith.mulf %349, %357 : vector<8x32xf32>
    %366 = arith.addf %364, %365 : vector<8x32xf32>
    %367 = math.tanh %366 : vector<8x32xf32>
    %368 = arith.mulf %363, %367 : vector<8x32xf32>
    %369 = arith.truncf %368 : vector<8x32xf32> to vector<8x32xbf16>
    %c192 = arith.constant 192 : index
    %c0_134 = arith.constant 0 : index
    %370 = vector.load %arg11[%c192, %c0_134] : memref<256x128xbf16, #tpu.memory_space<vmem>>, vector<32x128xbf16>
    %cst_135 = arith.constant dense<0.000000e+00> : vector<8x128xf32>
    %371 = tpu.matmul %369, %370, %cst_135 {dimension_numbers = #tpu.dot_dimension_numbers<[1], [0], [0], [1], [0, 0, 1, 1], [], []>} : vector<8x32xbf16>, vector<32x128xbf16>, vector<8x128xf32> -> vector<8x128xf32>
    %372 = arith.addf %340, %371 : vector<8x128xf32>
    %c7 = arith.constant 7 : index
    %c0_136 = arith.constant 0 : index
    %373 = tpu.strided_load %arg15[%c7, %c0_136] {strides = array<i32: 8, 1>} : memref<64x128xf32, #tpu.memory_space<vmem>>, vector<8x128xf32>
    %cst_137 = arith.constant dense<0.000000e+00> : vector<8x128xf32>
    %374 = tpu.matmul %368, %145, %cst_137 {dimension_numbers = #tpu.dot_dimension_numbers<[1], [0], [0], [1], [0, 0, 1, 1], [], []>} : vector<8x32xf32>, vector<32x128xf32>, vector<8x128xf32> -> vector<8x128xf32>
    %375 = arith.addf %373, %374 : vector<8x128xf32>
    %376 = vector.extract_strided_slice %375 {offsets = [0, 0], sizes = [8, 32], strides = [1, 1]} : vector<8x128xf32> to vector<8x32xf32>
    %377 = arith.negf %376 : vector<8x32xf32>
    %378 = math.exp %377 : vector<8x32xf32>
    %cst_138 = arith.constant 1.000000e+00 : f32
    %379 = vector.broadcast %cst_138 : f32 to vector<8x32xf32>
    %380 = arith.addf %379, %378 : vector<8x32xf32>
    %381 = arith.divf %379, %380 : vector<8x32xf32>
    %382 = vector.extract_strided_slice %375 {offsets = [0, 32], sizes = [8, 32], strides = [1, 1]} : vector<8x128xf32> to vector<8x32xf32>
    %383 = arith.negf %382 : vector<8x32xf32>
    %384 = math.exp %383 : vector<8x32xf32>
    %cst_139 = arith.constant 1.000000e+00 : f32
    %385 = vector.broadcast %cst_139 : f32 to vector<8x32xf32>
    %386 = arith.addf %385, %384 : vector<8x32xf32>
    %387 = arith.divf %385, %386 : vector<8x32xf32>
    %388 = vector.extract_strided_slice %375 {offsets = [0, 64], sizes = [8, 32], strides = [1, 1]} : vector<8x128xf32> to vector<8x32xf32>
    %389 = math.tanh %388 : vector<8x32xf32>
    %390 = vector.extract_strided_slice %375 {offsets = [0, 96], sizes = [8, 32], strides = [1, 1]} : vector<8x128xf32> to vector<8x32xf32>
    %391 = arith.negf %390 : vector<8x32xf32>
    %392 = math.exp %391 : vector<8x32xf32>
    %cst_140 = arith.constant 1.000000e+00 : f32
    %393 = vector.broadcast %cst_140 : f32 to vector<8x32xf32>
    %394 = arith.addf %393, %392 : vector<8x32xf32>
    %395 = arith.divf %393, %394 : vector<8x32xf32>
    %396 = arith.mulf %387, %366 : vector<8x32xf32>
    %397 = arith.mulf %381, %389 : vector<8x32xf32>
    %398 = arith.addf %396, %397 : vector<8x32xf32>
    %399 = math.tanh %398 : vector<8x32xf32>
    %400 = arith.mulf %395, %399 : vector<8x32xf32>
    %401 = arith.truncf %400 : vector<8x32xf32> to vector<8x32xbf16>
    %c224 = arith.constant 224 : index
    %c0_141 = arith.constant 0 : index
    %402 = vector.load %arg11[%c224, %c0_141] : memref<256x128xbf16, #tpu.memory_space<vmem>>, vector<32x128xbf16>
    %cst_142 = arith.constant dense<0.000000e+00> : vector<8x128xf32>
    %403 = tpu.matmul %401, %402, %cst_142 {dimension_numbers = #tpu.dot_dimension_numbers<[1], [0], [0], [1], [0, 0, 1, 1], [], []>} : vector<8x32xbf16>, vector<32x128xbf16>, vector<8x128xf32> -> vector<8x128xf32>
    %404 = arith.addf %372, %403 : vector<8x128xf32>
    %c0_143 = arith.constant 0 : index
    %c0_144 = arith.constant 0 : index
    %405 = vector.load %arg12[%c0_143, %c0_144] : memref<1x128xf32, #tpu.memory_space<vmem>>, vector<1x128xf32>
    %406 = vector.broadcast %405 : vector<1x128xf32> to vector<8x128xf32>
    %407 = arith.addf %404, %406 : vector<8x128xf32>
    %c0_145 = arith.constant 0 : index
    %c0_146 = arith.constant 0 : index
    %408 = vector.load %arg13[%c0_145, %c0_146] : memref<8x128xf32, #tpu.memory_space<vmem>>, vector<8x128xf32>
    tpu.vector_store %arg13[%c0_145, %c0_146], %407 {strides = array<i32>} : memref<8x128xf32, #tpu.memory_space<vmem>>, vector<8x128xf32>,
    return
  }
  func.func @transform_0(%arg0: i32) -> (i32, i32) {
    %c0_i32 = arith.constant 0 : i32
    %c0_i32_0 = arith.constant 0 : i32
    return %arg0, %c0_i32 : i32, i32
  }
  func.func @transform_1(%arg0: i32) -> (i32, i32, i32) {
    %c0_i32 = arith.constant 0 : i32
    %c0_i32_0 = arith.constant 0 : i32
    %c0_i32_1 = arith.constant 0 : i32
    %c0_i32_2 = arith.constant 0 : i32
    return %c0_i32, %c0_i32_0, %c0_i32_1 : i32, i32, i32
  }
  func.func @transform_2(%arg0: i32) -> (i32, i32) {
    %c0_i32 = arith.constant 0 : i32
    %c0_i32_0 = arith.constant 0 : i32
    %c0_i32_1 = arith.constant 0 : i32
    return %c0_i32, %c0_i32_0 : i32, i32
  }
  func.func @transform_3(%arg0: i32) -> (i32, i32, i32) {
    %c0_i32 = arith.constant 0 : i32
    %c0_i32_0 = arith.constant 0 : i32
    %c0_i32_1 = arith.constant 0 : i32
    %c0_i32_2 = arith.constant 0 : i32
    return %c0_i32, %c0_i32_0, %c0_i32_1 : i32, i32, i32
  }
  func.func @transform_4(%arg0: i32) -> (i32, i32) {
    %c0_i32 = arith.constant 0 : i32
    %c0_i32_0 = arith.constant 0 : i32
    %c0_i32_1 = arith.constant 0 : i32
    return %c0_i32, %c0_i32_0 : i32, i32
  }
  func.func @transform_5(%arg0: i32) -> (i32, i32, i32) {
    %c0_i32 = arith.constant 0 : i32
    %c0_i32_0 = arith.constant 0 : i32
    %c0_i32_1 = arith.constant 0 : i32
    %c0_i32_2 = arith.constant 0 : i32
    return %c0_i32, %c0_i32_0, %c0_i32_1 : i32, i32, i32
  }
  func.func @transform_6(%arg0: i32) -> (i32, i32) {
    %c0_i32 = arith.constant 0 : i32
    %c0_i32_0 = arith.constant 0 : i32
    %c0_i32_1 = arith.constant 0 : i32
    return %c0_i32, %c0_i32_0 : i32, i32
  }
  func.func @transform_7(%arg0: i32) -> (i32, i32) {
    %c0_i32 = arith.constant 0 : i32
    %c0_i32_0 = arith.constant 0 : i32
    %c0_i32_1 = arith.constant 0 : i32
    return %c0_i32, %c0_i32_0 : i32, i32
  }
  func.func @transform_8(%arg0: i32) -> (i32, i32) {
    %c0_i32 = arith.constant 0 : i32
    %c0_i32_0 = arith.constant 0 : i32
    %c0_i32_1 = arith.constant 0 : i32
    return %c0_i32, %c0_i32_0 : i32, i32
  }
  func.func @transform_9(%arg0: i32) -> (i32, i32) {
    %c0_i32 = arith.constant 0 : i32
    %c0_i32_0 = arith.constant 0 : i32
    %c0_i32_1 = arith.constant 0 : i32
    return %c0_i32, %c0_i32_0 : i32, i32
  }
  func.func @transform_10(%arg0: i32) -> (i32, i32) {
    %c0_i32 = arith.constant 0 : i32
    %c0_i32_0 = arith.constant 0 : i32
    %c0_i32_1 = arith.constant 0 : i32
    return %c0_i32, %c0_i32_0 : i32, i32
  }
  func.func @transform_11(%arg0: i32) -> (i32, i32) {
    %c0_i32 = arith.constant 0 : i32
    %c0_i32_0 = arith.constant 0 : i32
    %c0_i32_1 = arith.constant 0 : i32
    return %c0_i32, %c0_i32_0 : i32, i32
  }
  func.func @transform_12(%arg0: i32) -> (i32, i32) {
    %c0_i32 = arith.constant 0 : i32
    %c0_i32_0 = arith.constant 0 : i32
    return %arg0, %c0_i32 : i32, i32
  }
}

</mosaic_0001>

<llo_original>
// kernel: cnn_lstm_forward.1
$region0: #{cnn_lstm_forward.1}
  #allocation0 [shape = 'u32[]', space=smem, size = 0x4, offset = 0x4, fixed_abs, tag = 'smem constant byte address 0x4 - core index']
  #allocation1 [shape = 'u32[144,128]{1,0:T(1,128)}', space=vmem, size = 0x12000, scoped, tag = 'internal scratch']
  #allocation2 [shape = 'f32[128,32]{1,0:T(8,128)}', space=vmem, size = 0x10000, scoped, tag = 'scratch operand']
  #allocation3 [shape = 'f32[64,128]{1,0:T(8,128)}', space=vmem, size = 0x8000, scoped, tag = 'scratch operand']
  %s0 = inlined_call_operand.vmem [shape: f32[256,16], index: 0, kind: input, shape index: {}]
  %s1 = inlined_call_operand.vmem [shape: bf16[3,16,32], index: 1, kind: input, shape index: {}]
  %s2 = inlined_call_operand.vmem [shape: f32[1,32], index: 2, kind: input, shape index: {}]
  %s3 = inlined_call_operand.vmem [shape: bf16[3,32,64], index: 3, kind: input, shape index: {}]
  %s4 = inlined_call_operand.vmem [shape: f32[1,64], index: 4, kind: input, shape index: {}]
  %s5 = inlined_call_operand.vmem [shape: bf16[3,64,128], index: 5, kind: input, shape index: {}]
  %s6 = inlined_call_operand.vmem [shape: f32[1,128], index: 6, kind: input, shape index: {}]
  %s7 = inlined_call_operand.vmem [shape: bf16[128,128], index: 7, kind: input, shape index: {}]
  %s8 = inlined_call_operand.vmem [shape: f32[32,128], index: 8, kind: input, shape index: {}]
  %s9 = inlined_call_operand.vmem [shape: f32[1,128], index: 9, kind: input, shape index: {}]
  %s10 = inlined_call_operand.vmem [shape: bf16[256,128], index: 10, kind: input, shape index: {}]
  %s11 = inlined_call_operand.vmem [shape: f32[1,128], index: 11, kind: input, shape index: {}]
  %s12 = inlined_call_operand.vmem [shape: f32[16,128], index: 12, kind: output, shape index: {}]
  %s13 = sld [smem:[#allocation0]]
  $region81: #{cnn_lstm_forward.1} parent=0
    _
  %s15 = ssub.s32 1, %s13
  %s16 = scalar_select 0, %s15, %s13
  loop: start=0, step=1, limit=4
  $region2: #{cnn_lstm_forward.1} parent=0 // loop_pre_header
    _
  $region3: #{cnn_lstm_forward.1} parent=0 // loop_header
    %s18 = sphi 0, %s22
    %p19 = scmp.ge.s32.totalorder %s18, 4
    %s28 = sphi 0, %s30
    %s31 = sphi 0, %s28
    %s32 = sphi 0, %s31
    %s48 = sphi 0, %s32
    %s52 = sphi 0, %s52
    %s54 = sphi 0, %s52
    %s55 = sphi 0, %s54
    %s69 = sphi 0, %s55
    %s73 = sphi 0, %s73
    %s75 = sphi 0, %s73
    %s76 = sphi 0, %s75
    %s90 = sphi 0, %s76
    %s94 = sphi 0, %s94
    %s96 = sphi 0, %s94
    %s97 = sphi 0, %s96
    %s111 = sphi 0, %s97
    %s115 = sphi 0, %s115
    %s117 = sphi 0, %s115
    %s118 = sphi 0, %s117
    %s132 = sphi 0, %s118
    %s136 = sphi 0, %s136
    %s138 = sphi 0, %s136
    %s139 = sphi 0, %s138
    %s153 = sphi 0, %s139
    %s157 = sphi 0, %s157
    %s159 = sphi 0, %s157
    %s160 = sphi 0, %s159
    %s174 = sphi 0, %s160
    %s178 = sphi 0, %s178
    %s180 = sphi 0, %s178
    %s181 = sphi 0, %s180
    %s195 = sphi 0, %s181
    %s199 = sphi 0, %s199
    %s201 = sphi 0, %s199
    %s202 = sphi 0, %s201
    %s216 = sphi 0, %s202
    %s220 = sphi 0, %s220
    %s222 = sphi 0, %s220
    %s223 = sphi 0, %s222
    %s237 = sphi 0, %s223
    %s241 = sphi 0, %s241
    %s243 = sphi 0, %s241
    %s244 = sphi 0, %s243
    %s258 = sphi 0, %s244
    %s262 = sphi 0, %s262
    %s264 = sphi 0, %s262
    %s265 = sphi 0, %s264
    %s279 = sphi 0, %s265
    %s285 = sphi 0, %s287
    %s288 = sphi 0, %s285
    %s289 = sphi 0, %s288
    %s305 = sphi 0, %s289
  $region4: #{cnn_lstm_forward.1} parent=0 // loop_header_branch
    %21 = sbr.rel (%p19) target = $region8
  $region5: #{cnn_lstm_forward.1} parent=0 // loop_body
    %s23 = ssub.s32 %s18, 1
    %s24 = ssub.s32 %s18, 2
    %s25 = sadd.s32 %s18, 1
    %s26 = ssub.s32 %s18, %s25
    %p27 = scmp.eq.s32.totalorder %s26, 0
    %s29 = sadd.s32 %s28, 1
    %s30 = scalar_select %p27, %s28, %s29
    %p33 = pneg %p27
    %p34 = scmp.eq.s32.totalorder %s18, 1
    %p35 = por %p33, %p34
    %p36 = scmp.ne.s32.totalorder %s28, %s31
    %p37 = scmp.eq.s32.totalorder %s18, 0
    %p38 = por %p36, %p37
    %p39 = scmp.ne.s32.totalorder %s28, %s31
    %p40 = scmp.eq.s32.totalorder %s23, 1
    %p41 = por %p39, %p40
    %p42 = scmp.ne.s32.totalorder %s31, %s32
    %p43 = scmp.eq.s32.totalorder %s23, 0
    %p44 = por %p42, %p43
    %p45 = scmp.ne.s32.totalorder %s31, %s32
    %p46 = scmp.eq.s32.totalorder %s24, 1
    %p47 = por %p45, %p46
    %p49 = scmp.ne.s32.totalorder %s32, %s48
    %p50 = scmp.eq.s32.totalorder %s24, 0
    %p51 = por %p49, %p50
    %s53 = sadd.s32 %s52, 1
    %p56 = scmp.eq.s32.totalorder %s18, 1
    %p57 = scmp.ne.s32.totalorder %s52, %s54
    %p58 = scmp.eq.s32.totalorder %s18, 0
    %p59 = por %p57, %p58
    %p60 = scmp.ne.s32.totalorder %s52, %s54
    %p61 = scmp.eq.s32.totalorder %s23, 1
    %p62 = por %p60, %p61
    %p63 = scmp.ne.s32.totalorder %s54, %s55
    %p64 = scmp.eq.s32.totalorder %s23, 0
    %p65 = por %p63, %p64
    %p66 = scmp.ne.s32.totalorder %s54, %s55
    %p67 = scmp.eq.s32.totalorder %s24, 1
    %p68 = por %p66, %p67
    %p70 = scmp.ne.s32.totalorder %s55, %s69
    %p71 = scmp.eq.s32.totalorder %s24, 0
    %p72 = por %p70, %p71
    %s74 = sadd.s32 %s73, 1
    %p77 = scmp.eq.s32.totalorder %s18, 1
    %p78 = scmp.ne.s32.totalorder %s73, %s75
    %p79 = scmp.eq.s32.totalorder %s18, 0
    %p80 = por %p78, %p79
    %p81 = scmp.ne.s32.totalorder %s73, %s75
    %p82 = scmp.eq.s32.totalorder %s23, 1
    %p83 = por %p81, %p82
    %p84 = scmp.ne.s32.totalorder %s75, %s76
    %p85 = scmp.eq.s32.totalorder %s23, 0
    %p86 = por %p84, %p85
    %p87 = scmp.ne.s32.totalorder %s75, %s76
    %p88 = scmp.eq.s32.totalorder %s24, 1
    %p89 = por %p87, %p88
    %p91 = scmp.ne.s32.totalorder %s76, %s90
    %p92 = scmp.eq.s32.totalorder %s24, 0
    %p93 = por %p91, %p92
    %s95 = sadd.s32 %s94, 1
    %p98 = scmp.eq.s32.totalorder %s18, 1
    %p99 = scmp.ne.s32.totalorder %s94, %s96
    %p100 = scmp.eq.s32.totalorder %s18, 0
    %p101 = por %p99, %p100
    %p102 = scmp.ne.s32.totalorder %s94, %s96
    %p103 = scmp.eq.s32.totalorder %s23, 1
    %p104 = por %p102, %p103
    %p105 = scmp.ne.s32.totalorder %s96, %s97
    %p106 = scmp.eq.s32.totalorder %s23, 0
    %p107 = por %p105, %p106
    %p108 = scmp.ne.s32.totalorder %s96, %s97
    %p109 = scmp.eq.s32.totalorder %s24, 1
    %p110 = por %p108, %p109
    %p112 = scmp.ne.s32.totalorder %s97, %s111
    %p113 = scmp.eq.s32.totalorder %s24, 0
    %p114 = por %p112, %p113
    %s116 = sadd.s32 %s115, 1
    %p119 = scmp.eq.s32.totalorder %s18, 1
    %p120 = scmp.ne.s32.totalorder %s115, %s117
    %p121 = scmp.eq.s32.totalorder %s18, 0
    %p122 = por %p120, %p121
    %p123 = scmp.ne.s32.totalorder %s115, %s117
    %p124 = scmp.eq.s32.totalorder %s23, 1
    %p125 = por %p123, %p124
    %p126 = scmp.ne.s32.totalorder %s117, %s118
    %p127 = scmp.eq.s32.totalorder %s23, 0
    %p128 = por %p126, %p127
    %p129 = scmp.ne.s32.totalorder %s117, %s118
    %p130 = scmp.eq.s32.totalorder %s24, 1
    %p131 = por %p129, %p130
    %p133 = scmp.ne.s32.totalorder %s118, %s132
    %p134 = scmp.eq.s32.totalorder %s24, 0
    %p135 = por %p133, %p134
    %s137 = sadd.s32 %s136, 1
    %p140 = scmp.eq.s32.totalorder %s18, 1
    %p141 = scmp.ne.s32.totalorder %s136, %s138
    %p142 = scmp.eq.s32.totalorder %s18, 0
    %p143 = por %p141, %p142
    %p144 = scmp.ne.s32.totalorder %s136, %s138
    %p145 = scmp.eq.s32.totalorder %s23, 1
    %p146 = por %p144, %p145
    %p147 = scmp.ne.s32.totalorder %s138, %s139
    %p148 = scmp.eq.s32.totalorder %s23, 0
    %p149 = por %p147, %p148
    %p150 = scmp.ne.s32.totalorder %s138, %s139
    %p151 = scmp.eq.s32.totalorder %s24, 1
    %p152 = por %p150, %p151
    %p154 = scmp.ne.s32.totalorder %s139, %s153
    %p155 = scmp.eq.s32.totalorder %s24, 0
    %p156 = por %p154, %p155
    %s158 = sadd.s32 %s157, 1
    %p161 = scmp.eq.s32.totalorder %s18, 1
    %p162 = scmp.ne.s32.totalorder %s157, %s159
    %p163 = scmp.eq.s32.totalorder %s18, 0
    %p164 = por %p162, %p163
    %p165 = scmp.ne.s32.totalorder %s157, %s159
    %p166 = scmp.eq.s32.totalorder %s23, 1
    %p167 = por %p165, %p166
    %p168 = scmp.ne.s32.totalorder %s159, %s160
    %p169 = scmp.eq.s32.totalorder %s23, 0
    %p170 = por %p168, %p169
    %p171 = scmp.ne.s32.totalorder %s159, %s160
    %p172 = scmp.eq.s32.totalorder %s24, 1
    %p173 = por %p171, %p172
    %p175 = scmp.ne.s32.totalorder %s160, %s174
    %p176 = scmp.eq.s32.totalorder %s24, 0
    %p177 = por %p175, %p176
    %s179 = sadd.s32 %s178, 1
    %p182 = scmp.eq.s32.totalorder %s18, 1
    %p183 = scmp.ne.s32.totalorder %s178, %s180
    %p184 = scmp.eq.s32.totalorder %s18, 0
    %p185 = por %p183, %p184
    %p186 = scmp.ne.s32.totalorder %s178, %s180
    %p187 = scmp.eq.s32.totalorder %s23, 1
    %p188 = por %p186, %p187
    %p189 = scmp.ne.s32.totalorder %s180, %s181
    %p190 = scmp.eq.s32.totalorder %s23, 0
    %p191 = por %p189, %p190
    %p192 = scmp.ne.s32.totalorder %s180, %s181
    %p193 = scmp.eq.s32.totalorder %s24, 1
    %p194 = por %p192, %p193
    %p196 = scmp.ne.s32.totalorder %s181, %s195
    %p197 = scmp.eq.s32.totalorder %s24, 0
    %p198 = por %p196, %p197
    %s200 = sadd.s32 %s199, 1
    %p203 = scmp.eq.s32.totalorder %s18, 1
    %p204 = scmp.ne.s32.totalorder %s199, %s201
    %p205 = scmp.eq.s32.totalorder %s18, 0
    %p206 = por %p204, %p205
    %p207 = scmp.ne.s32.totalorder %s199, %s201
    %p208 = scmp.eq.s32.totalorder %s23, 1
    %p209 = por %p207, %p208
    %p210 = scmp.ne.s32.totalorder %s201, %s202
    %p211 = scmp.eq.s32.totalorder %s23, 0
    %p212 = por %p210, %p211
    %p213 = scmp.ne.s32.totalorder %s201, %s202
    %p214 = scmp.eq.s32.totalorder %s24, 1
    %p215 = por %p213, %p214
    %p217 = scmp.ne.s32.totalorder %s202, %s216
    %p218 = scmp.eq.s32.totalorder %s24, 0
    %p219 = por %p217, %p218
    %s221 = sadd.s32 %s220, 1
    %p224 = scmp.eq.s32.totalorder %s18, 1
    %p225 = scmp.ne.s32.totalorder %s220, %s222
    %p226 = scmp.eq.s32.totalorder %s18, 0
    %p227 = por %p225, %p226
    %p228 = scmp.ne.s32.totalorder %s220, %s222
    %p229 = scmp.eq.s32.totalorder %s23, 1
    %p230 = por %p228, %p229
    %p231 = scmp.ne.s32.totalorder %s222, %s223
    %p232 = scmp.eq.s32.totalorder %s23, 0
    %p233 = por %p231, %p232
    %p234 = scmp.ne.s32.totalorder %s222, %s223
    %p235 = scmp.eq.s32.totalorder %s24, 1
    %p236 = por %p234, %p235
    %p238 = scmp.ne.s32.totalorder %s223, %s237
    %p239 = scmp.eq.s32.totalorder %s24, 0
    %p240 = por %p238, %p239
    %s242 = sadd.s32 %s241, 1
    %p245 = scmp.eq.s32.totalorder %s18, 1
    %p246 = scmp.ne.s32.totalorder %s241, %s243
    %p247 = scmp.eq.s32.totalorder %s18, 0
    %p248 = por %p246, %p247
    %p249 = scmp.ne.s32.totalorder %s241, %s243
    %p250 = scmp.eq.s32.totalorder %s23, 1
    %p251 = por %p249, %p250
    %p252 = scmp.ne.s32.totalorder %s243, %s244
    %p253 = scmp.eq.s32.totalorder %s23, 0
    %p254 = por %p252, %p253
    %p255 = scmp.ne.s32.totalorder %s243, %s244
    %p256 = scmp.eq.s32.totalorder %s24, 1
    %p257 = por %p255, %p256
    %p259 = scmp.ne.s32.totalorder %s244, %s258
    %p260 = scmp.eq.s32.totalorder %s24, 0
    %p261 = por %p259, %p260
    %s263 = sadd.s32 %s262, 1
    %p266 = scmp.eq.s32.totalorder %s18, 1
    %p267 = scmp.ne.s32.totalorder %s262, %s264
    %p268 = scmp.eq.s32.totalorder %s18, 0
    %p269 = por %p267, %p268
    %p270 = scmp.ne.s32.totalorder %s262, %s264
    %p271 = scmp.eq.s32.totalorder %s23, 1
    %p272 = por %p270, %p271
    %p273 = scmp.ne.s32.totalorder %s264, %s265
    %p274 = scmp.eq.s32.totalorder %s23, 0
    %p275 = por %p273, %p274
    %p276 = scmp.ne.s32.totalorder %s264, %s265
    %p277 = scmp.eq.s32.totalorder %s24, 1
    %p278 = por %p276, %p277
    %p280 = scmp.ne.s32.totalorder %s265, %s279
    %p281 = scmp.eq.s32.totalorder %s24, 0
    %p282 = por %p280, %p281
    %s283 = ssub.s32 %s18, %s25
    %p284 = scmp.eq.s32.totalorder %s283, 0
    %s286 = sadd.s32 %s285, 1
    %s287 = scalar_select %p284, %s285, %s286
    %p290 = pneg %p284
    %p291 = scmp.eq.s32.totalorder %s18, 1
    %p292 = por %p290, %p291
    %p293 = scmp.ne.s32.totalorder %s285, %s288
    %p294 = scmp.eq.s32.totalorder %s18, 0
    %p295 = por %p293, %p294
    %p296 = scmp.ne.s32.totalorder %s285, %s288
    %p297 = scmp.eq.s32.totalorder %s23, 1
    %p298 = por %p296, %p297
    %p299 = scmp.ne.s32.totalorder %s288, %s289
    %p300 = scmp.eq.s32.totalorder %s23, 0
    %p301 = por %p299, %p300
    %p302 = scmp.ne.s32.totalorder %s288, %s289
    %p303 = scmp.eq.s32.totalorder %s24, 1
    %p304 = por %p302, %p303
    %p306 = scmp.ne.s32.totalorder %s289, %s305
    %p307 = scmp.eq.s32.totalorder %s24, 0
    %p308 = por %p306, %p307
    %p309 = scmp.le.s32.totalorder 1, %s18
    %p310 = scmp.lt.s32.totalorder %s18, 3
    %p311 = pnand %p309, %p310
    %p312 = pneg %p311
    // Predicated region
    $region9: #{cnn_lstm_forward.1} parent=5 // pred_check
      _
    $region10: #{cnn_lstm_forward.1} parent=5 // pred_check_branch
      %314 = sbr.rel (%p311) target = $region12
    $region11: #{cnn_lstm_forward.1} parent=5 // pred_region
      %s315 = ssub.s32 %s18, 1
      // Predicated region
      $region13: #{cnn_lstm_forward.1} parent=11 // pred_check
        %p316 = pneg %p65
      $region14: #{cnn_lstm_forward.1} parent=11 // pred_check_branch
        %318 = sbr.rel (%p316) target = $region16
      $region15: #{cnn_lstm_forward.1} parent=11 // pred_region
        _
      $region16: #{cnn_lstm_forward.1} parent=11 // pred_fallthru
        _
      // Predicated region
      $region17: #{cnn_lstm_forward.1} parent=11 // pred_check
        %p319 = pneg %p86
      $region18: #{cnn_lstm_forward.1} parent=11 // pred_check_branch
        %321 = sbr.rel (%p319) target = $region20
      $region19: #{cnn_lstm_forward.1} parent=11 // pred_region
        _
      $region20: #{cnn_lstm_forward.1} parent=11 // pred_fallthru
        _
      // Predicated region
      $region21: #{cnn_lstm_forward.1} parent=11 // pred_check
        %p322 = pneg %p107
      $region22: #{cnn_lstm_forward.1} parent=11 // pred_check_branch
        %324 = sbr.rel (%p322) target = $region24
      $region23: #{cnn_lstm_forward.1} parent=11 // pred_region
        _
      $region24: #{cnn_lstm_forward.1} parent=11 // pred_fallthru
        _
      // Predicated region
      $region25: #{cnn_lstm_forward.1} parent=11 // pred_check
        %p325 = pneg %p128
      $region26: #{cnn_lstm_forward.1} parent=11 // pred_check_branch
        %327 = sbr.rel (%p325) target = $region28
      $region27: #{cnn_lstm_forward.1} parent=11 // pred_region
        _
      $region28: #{cnn_lstm_forward.1} parent=11 // pred_fallthru
        _
      // Predicated region
      $region29: #{cnn_lstm_forward.1} parent=11 // pred_check
        %p328 = pneg %p149
      $region30: #{cnn_lstm_forward.1} parent=11 // pred_check_branch
        %330 = sbr.rel (%p328) target = $region32
      $region31: #{cnn_lstm_forward.1} parent=11 // pred_region
        _
      $region32: #{cnn_lstm_forward.1} parent=11 // pred_fallthru
        _
      // Predicated region
      $region33: #{cnn_lstm_forward.1} parent=11 // pred_check
        %p331 = pneg %p170
      $region34: #{cnn_lstm_forward.1} parent=11 // pred_check_branch
        %333 = sbr.rel (%p331) target = $region36
      $region35: #{cnn_lstm_forward.1} parent=11 // pred_region
        _
      $region36: #{cnn_lstm_forward.1} parent=11 // pred_fallthru
        _
      // Predicated region
      $region37: #{cnn_lstm_forward.1} parent=11 // pred_check
        %p334 = pneg %p191
      $region38: #{cnn_lstm_forward.1} parent=11 // pred_check_branch
        %336 = sbr.rel (%p334) target = $region40
      $region39: #{cnn_lstm_forward.1} parent=11 // pred_region
        _
      $region40: #{cnn_lstm_forward.1} parent=11 // pred_fallthru
        _
      // Predicated region
      $region41: #{cnn_lstm_forward.1} parent=11 // pred_check
        %p337 = pneg %p212
      $region42: #{cnn_lstm_forward.1} parent=11 // pred_check_branch
        %339 = sbr.rel (%p337) target = $region44
      $region43: #{cnn_lstm_forward.1} parent=11 // pred_region
        _
      $region44: #{cnn_lstm_forward.1} parent=11 // pred_fallthru
        _
      // Predicated region
      $region45: #{cnn_lstm_forward.1} parent=11 // pred_check
        %p340 = pneg %p233
      $region46: #{cnn_lstm_forward.1} parent=11 // pred_check_branch
        %342 = sbr.rel (%p340) target = $region48
      $region47: #{cnn_lstm_forward.1} parent=11 // pred_region
        _
      $region48: #{cnn_lstm_forward.1} parent=11 // pred_fallthru
        _
      // Predicated region
      $region49: #{cnn_lstm_forward.1} parent=11 // pred_check
        %p343 = pneg %p254
      $region50: #{cnn_lstm_forward.1} parent=11 // pred_check_branch
        %345 = sbr.rel (%p343) target = $region52
      $region51: #{cnn_lstm_forward.1} parent=11 // pred_region
        _
      $region52: #{cnn_lstm_forward.1} parent=11 // pred_fallthru
        _
      // Predicated region
      $region53: #{cnn_lstm_forward.1} parent=11 // pred_check
        %p346 = pneg %p275
      $region54: #{cnn_lstm_forward.1} parent=11 // pred_check_branch
        %348 = sbr.rel (%p346) target = $region56
      $region55: #{cnn_lstm_forward.1} parent=11 // pred_region
        _
      $region56: #{cnn_lstm_forward.1} parent=11 // pred_fallthru
        _
    $region12: #{cnn_lstm_forward.1} parent=5 // pred_fallthru
      _
    %p349 = scmp.lt.s32.totalorder %s18, 2
    // Predicated region
    $region57: #{cnn_lstm_forward.1} parent=5 // pred_check
      %p350 = pneg %p349
    $region58: #{cnn_lstm_forward.1} parent=5 // pred_check_branch
      %352 = sbr.rel (%p350) target = $region60
    $region59: #{cnn_lstm_forward.1} parent=5 // pred_region
      // Predicated region
      $region61: #{cnn_lstm_forward.1} parent=59 // pred_check
        %p353 = pneg %p38
      $region62: #{cnn_lstm_forward.1} parent=59 // pred_check_branch
        %355 = sbr.rel (%p353) target = $region64
      $region63: #{cnn_lstm_forward.1} parent=59 // pred_region
        %s356 = smul.u32 16, %s18
        %p357 = scmp.lt.s32.totalorder %s356, 31
        %s358 = scalar_select %p357, %s356, 31
        %s359 = smul.addr %s358, 8
        %s360 = scalar_lea.vmem %s0, %s359
        %s361 = smul.u32 16, %s18
      $region64: #{cnn_lstm_forward.1} parent=59 // pred_fallthru
        _
    $region60: #{cnn_lstm_forward.1} parent=5 // pred_fallthru
      _
    %p362 = scmp.le.s32.totalorder 1, %s18
    %p363 = scmp.lt.s32.totalorder %s18, 3
    %p364 = pnand %p362, %p363
    %p365 = pneg %p364
    // Predicated region
    $region65: #{cnn_lstm_forward.1} parent=5 // pred_check
      _
    $region66: #{cnn_lstm_forward.1} parent=5 // pred_check_branch
      %367 = sbr.rel (%p364) target = $region68
    $region67: #{cnn_lstm_forward.1} parent=5 // pred_region
      %s368 = ssub.s32 %s18, 1
      %s369 = smul.u32 16, %s23
      %p370 = scmp.lt.s32.totalorder %s369, 31
      %s371 = scalar_select %p370, %s369, 31
      %s372 = smul.addr %s371, 8
      %s373 = scalar_lea.vmem %s0, %s372
      %p374 = pneg %p44
      %p375 = pneg %p41
      %p376 = pneg %p65
      %p377 = pneg %p62
      %p378 = pneg %p86
      %p379 = pneg %p83
      %p380 = pneg %p107
      %p381 = pneg %p104
      %p382 = pneg %p128
      %p383 = pneg %p125
      %p384 = pneg %p149
      %p385 = pneg %p146
      %p386 = pneg %p170
      %p387 = pneg %p167
      %p388 = pneg %p191
      %p389 = pneg %p188
      %p390 = pneg %p212
      %p391 = pneg %p209
      %p392 = pneg %p233
      %p393 = pneg %p230
      %p394 = pneg %p254
      %p395 = pneg %p251
      %p396 = pneg %p275
      %p397 = pneg %p272
      %p398 = pneg %p301
      %p399 = pneg %p298
      %p400 = scmp.lt.s32.totalorder %s23, 1
      %s401 = scalar_select %p400, %s23, 1
      %s402 = smul.addr %s401, 8
      %s403 = scalar_lea.vmem %s12, %s402
      %s404 = smul.u32 16, %s23
      %p405 = scmp.lt.s32.totalorder %s404, 31
      %s406 = scalar_select %p405, %s404, 31
      %s407 = smul.addr %s406, 8
      %s408 = scalar_lea.vmem %s0, %s407
      %s409 = smul.u32 16, %s23
      %p410 = scmp.lt.s32.totalorder %s23, 1
      %s411 = scalar_select %p410, %s23, 1
      %s412 = smul.addr %s411, 8
      %s413 = scalar_lea.vmem %s12, %s412
      %v415 = vlaneseq
      %v416 = vshrl.u32 %v415, 7
      %v417 = vadd.s32 %v416, 8
      %v418 = vadd.s32 %v416, 16
      %v419 = vadd.s32 %v416, 24
      %v420 = vadd.s32 %v416, 32
      %v421 = vadd.s32 %v416, 40
      %v422 = vadd.s32 %v416, 48
      %v423 = vadd.s32 %v416, 56
      %v424 = vadd.s32 %v416, 64
      %v425 = vadd.s32 %v416, 72
      %v426 = vadd.s32 %v416, 80
      %v427 = vadd.s32 %v416, 88
      %v428 = vadd.s32 %v416, 96
      %v429 = vadd.s32 %v416, 104
      %v430 = vadd.s32 %v416, 112
      %v431 = vadd.s32 %v416, 120
      %vm432 = vcmp.lt.s32.totalorder %v416, 0
      %v433 = vsub.s32 0, %v416
      %v434 = vsel %vm432, %v433, %v416
      %v435 = vshrl.u32 %v434, 4
      %v436 = vand.u32 %v434, 15
      %v437 = vsub.s32 0, %v436
      %v438 = vsel %vm432, %v437, %v436
      %vm439 = vcmp.lt.s32.totalorder %v417, 0
      %v440 = vsub.s32 0, %v417
      %v441 = vsel %vm439, %v440, %v417
      %v442 = vshrl.u32 %v441, 4
      %v443 = vand.u32 %v441, 15
      %v444 = vsub.s32 0, %v443
      %v445 = vsel %vm439, %v444, %v443
      %vm446 = vcmp.lt.s32.totalorder %v418, 0
      %v447 = vsub.s32 0, %v418
      %v448 = vsel %vm446, %v447, %v418
      %v449 = vshrl.u32 %v448, 4
      %v450 = vand.u32 %v448, 15
      %v451 = vsub.s32 0, %v450
      %v452 = vsel %vm446, %v451, %v450
      %vm453 = vcmp.lt.s32.totalorder %v419, 0
      %v454 = vsub.s32 0, %v419
      %v455 = vsel %vm453, %v454, %v419
      %v456 = vshrl.u32 %v455, 4
      %v457 = vand.u32 %v455, 15
      %v458 = vsub.s32 0, %v457
      %v459 = vsel %vm453, %v458, %v457
      %vm460 = vcmp.lt.s32.totalorder %v420, 0
      %v461 = vsub.s32 0, %v420
      %v462 = vsel %vm460, %v461, %v420
      %v463 = vshrl.u32 %v462, 4
      %v464 = vand.u32 %v462, 15
      %v465 = vsub.s32 0, %v464
      %v466 = vsel %vm460, %v465, %v464
      %vm467 = vcmp.lt.s32.totalorder %v421, 0
      %v468 = vsub.s32 0, %v421
      %v469 = vsel %vm467, %v468, %v421
      %v470 = vshrl.u32 %v469, 4
      %v471 = vand.u32 %v469, 15
      %v472 = vsub.s32 0, %v471
      %v473 = vsel %vm467, %v472, %v471
      %vm474 = vcmp.lt.s32.totalorder %v422, 0
      %v475 = vsub.s32 0, %v422
      %v476 = vsel %vm474, %v475, %v422
      %v477 = vshrl.u32 %v476, 4
      %v478 = vand.u32 %v476, 15
      %v479 = vsub.s32 0, %v478
      %v480 = vsel %vm474, %v479, %v478
      %vm481 = vcmp.lt.s32.totalorder %v423, 0
      %v482 = vsub.s32 0, %v423
      %v483 = vsel %vm481, %v482, %v423
      %v484 = vshrl.u32 %v483, 4
      %v485 = vand.u32 %v483, 15
      %v486 = vsub.s32 0, %v485
      %v487 = vsel %vm481, %v486, %v485
      %vm488 = vcmp.lt.s32.totalorder %v424, 0
      %v489 = vsub.s32 0, %v424
      %v490 = vsel %vm488, %v489, %v424
      %v491 = vshrl.u32 %v490, 4
      %v492 = vand.u32 %v490, 15
      %v493 = vsub.s32 0, %v492
      %v494 = vsel %vm488, %v493, %v492
      %vm495 = vcmp.lt.s32.totalorder %v425, 0
      %v496 = vsub.s32 0, %v425
      %v497 = vsel %vm495, %v496, %v425
      %v498 = vshrl.u32 %v497, 4
      %v499 = vand.u32 %v497, 15
      %v500 = vsub.s32 0, %v499
      %v501 = vsel %vm495, %v500, %v499
      %vm502 = vcmp.lt.s32.totalorder %v426, 0
      %v503 = vsub.s32 0, %v426
      %v504 = vsel %vm502, %v503, %v426
      %v505 = vshrl.u32 %v504, 4
      %v506 = vand.u32 %v504, 15
      %v507 = vsub.s32 0, %v506
      %v508 = vsel %vm502, %v507, %v506
      %vm509 = vcmp.lt.s32.totalorder %v427, 0
      %v510 = vsub.s32 0, %v427
      %v511 = vsel %vm509, %v510, %v427
      %v512 = vshrl.u32 %v511, 4
      %v513 = vand.u32 %v511, 15
      %v514 = vsub.s32 0, %v513
      %v515 = vsel %vm509, %v514, %v513
      %vm516 = vcmp.lt.s32.totalorder %v428, 0
      %v517 = vsub.s32 0, %v428
      %v518 = vsel %vm516, %v517, %v428
      %v519 = vshrl.u32 %v518, 4
      %v520 = vand.u32 %v518, 15
      %v521 = vsub.s32 0, %v520
      %v522 = vsel %vm516, %v521, %v520
      %vm523 = vcmp.lt.s32.totalorder %v429, 0
      %v524 = vsub.s32 0, %v429
      %v525 = vsel %vm523, %v524, %v429
      %v526 = vshrl.u32 %v525, 4
      %v527 = vand.u32 %v525, 15
      %v528 = vsub.s32 0, %v527
      %v529 = vsel %vm523, %v528, %v527
      %vm530 = vcmp.lt.s32.totalorder %v430, 0
      %v531 = vsub.s32 0, %v430
      %v532 = vsel %vm530, %v531, %v430
      %v533 = vshrl.u32 %v532, 4
      %v534 = vand.u32 %v532, 15
      %v535 = vsub.s32 0, %v534
      %v536 = vsel %vm530, %v535, %v534
      %vm537 = vcmp.lt.s32.totalorder %v431, 0
      %v538 = vsub.s32 0, %v431
      %v539 = vsel %vm537, %v538, %v431
      %v540 = vshrl.u32 %v539, 4
      %v541 = vand.u32 %v539, 15
      %v542 = vsub.s32 0, %v541
      %v543 = vsel %vm537, %v542, %v541
      %vm544 = vcmp.ne.s32.totalorder %v438, 0
      %vm545 = vcmp.ne.s32.totalorder %v445, 0
      %vm546 = vcmp.ne.s32.totalorder %v452, 0
      %vm547 = vcmp.ne.s32.totalorder %v459, 0
      %vm548 = vcmp.ne.s32.totalorder %v466, 0
      %vm549 = vcmp.ne.s32.totalorder %v473, 0
      %vm550 = vcmp.ne.s32.totalorder %v480, 0
      %vm551 = vcmp.ne.s32.totalorder %v487, 0
      %vm552 = vcmp.ne.s32.totalorder %v494, 0
      %vm553 = vcmp.ne.s32.totalorder %v501, 0
      %vm554 = vcmp.ne.s32.totalorder %v508, 0
      %vm555 = vcmp.ne.s32.totalorder %v515, 0
      %vm556 = vcmp.ne.s32.totalorder %v522, 0
      %vm557 = vcmp.ne.s32.totalorder %v529, 0
      %vm558 = vcmp.ne.s32.totalorder %v536, 0
      %vm559 = vcmp.ne.s32.totalorder %v543, 0
      %vm560 = vcmp.lt.s32.totalorder %v438, 0
      %vm561 = vcmp.lt.s32.totalorder %v445, 0
      %vm562 = vcmp.lt.s32.totalorder %v452, 0
      %vm563 = vcmp.lt.s32.totalorder %v459, 0
      %vm564 = vcmp.lt.s32.totalorder %v466, 0
      %vm565 = vcmp.lt.s32.totalorder %v473, 0
      %vm566 = vcmp.lt.s32.totalorder %v480, 0
      %vm567 = vcmp.lt.s32.totalorder %v487, 0
      %vm568 = vcmp.lt.s32.totalorder %v494, 0
      %vm569 = vcmp.lt.s32.totalorder %v501, 0
      %vm570 = vcmp.lt.s32.totalorder %v508, 0
      %vm571 = vcmp.lt.s32.totalorder %v515, 0
      %vm572 = vcmp.lt.s32.totalorder %v522, 0
      %vm573 = vcmp.lt.s32.totalorder %v529, 0
      %vm574 = vcmp.lt.s32.totalorder %v536, 0
      %vm575 = vcmp.lt.s32.totalorder %v543, 0
      %vm576 = vmand %vm560, %vm544
      %vm577 = vmand %vm561, %vm545
      %vm578 = vmand %vm562, %vm546
      %vm579 = vmand %vm563, %vm547
      %vm580 = vmand %vm564, %vm548
      %vm581 = vmand %vm565, %vm549
      %vm582 = vmand %vm566, %vm550
      %vm583 = vmand %vm567, %vm551
      %vm584 = vmand %vm568, %vm552
      %vm585 = vmand %vm569, %vm553
      %vm586 = vmand %vm570, %vm554
      %vm587 = vmand %vm571, %vm555
      %vm588 = vmand %vm572, %vm556
      %vm589 = vmand %vm573, %vm557
      %vm590 = vmand %vm574, %vm558
      %vm591 = vmand %vm575, %vm559
      %v592 = vadd.s32 %v438, 16
      %v593 = vadd.s32 %v445, 16
      %v594 = vadd.s32 %v452, 16
      %v595 = vadd.s32 %v459, 16
      %v596 = vadd.s32 %v466, 16
      %v597 = vadd.s32 %v473, 16
      %v598 = vadd.s32 %v480, 16
      %v599 = vadd.s32 %v487, 16
      %v600 = vadd.s32 %v494, 16
      %v601 = vadd.s32 %v501, 16
      %v602 = vadd.s32 %v508, 16
      %v603 = vadd.s32 %v515, 16
      %v604 = vadd.s32 %v522, 16
      %v605 = vadd.s32 %v529, 16
      %v606 = vadd.s32 %v536, 16
      %v607 = vadd.s32 %v543, 16
      %v608 = vsel %vm576, %v592, %v438
      %v609 = vsel %vm577, %v593, %v445
      %v610 = vsel %vm578, %v594, %v452
      %v611 = vsel %vm579, %v595, %v459
      %v612 = vsel %vm580, %v596, %v466
      %v613 = vsel %vm581, %v597, %v473
      %v614 = vsel %vm582, %v598, %v480
      %v615 = vsel %vm583, %v599, %v487
      %v616 = vsel %vm584, %v600, %v494
      %v617 = vsel %vm585, %v601, %v501
      %v618 = vsel %vm586, %v602, %v508
      %v619 = vsel %vm587, %v603, %v515
      %v620 = vsel %vm588, %v604, %v522
      %v621 = vsel %vm589, %v605, %v529
      %v622 = vsel %vm590, %v606, %v536
      %v623 = vsel %vm591, %v607, %v543
      %vm624 = vcmp.lt.s32.totalorder %v416, 0
      %v625 = vsub.s32 0, %v416
      %v626 = vsel %vm624, %v625, %v416
      %v627 = vshrl.u32 %v626, 3
      %v628 = vand.u32 %v626, 7
      %v629 = vsub.s32 0, %v628
      %v630 = vsel %vm624, %v629, %v628
      %vm631 = vcmp.lt.s32.totalorder %v417, 0
      %v632 = vsub.s32 0, %v417
      %v633 = vsel %vm631, %v632, %v417
      %v634 = vshrl.u32 %v633, 3
      %v635 = vand.u32 %v633, 7
      %v636 = vsub.s32 0, %v635
      %v637 = vsel %vm631, %v636, %v635
      %vm638 = vcmp.lt.s32.totalorder %v418, 0
      %v639 = vsub.s32 0, %v418
      %v640 = vsel %vm638, %v639, %v418
      %v641 = vshrl.u32 %v640, 3
      %v642 = vand.u32 %v640, 7
      %v643 = vsub.s32 0, %v642
      %v644 = vsel %vm638, %v643, %v642
      %vm645 = vcmp.lt.s32.totalorder %v419, 0
      %v646 = vsub.s32 0, %v419
      %v647 = vsel %vm645, %v646, %v419
      %v648 = vshrl.u32 %v647, 3
      %v649 = vand.u32 %v647, 7
      %v650 = vsub.s32 0, %v649
      %v651 = vsel %vm645, %v650, %v649
      %vm652 = vcmp.lt.s32.totalorder %v420, 0
      %v653 = vsub.s32 0, %v420
      %v654 = vsel %vm652, %v653, %v420
      %v655 = vshrl.u32 %v654, 3
      %v656 = vand.u32 %v654, 7
      %v657 = vsub.s32 0, %v656
      %v658 = vsel %vm652, %v657, %v656
      %vm659 = vcmp.lt.s32.totalorder %v421, 0
      %v660 = vsub.s32 0, %v421
      %v661 = vsel %vm659, %v660, %v421
      %v662 = vshrl.u32 %v661, 3
      %v663 = vand.u32 %v661, 7
      %v664 = vsub.s32 0, %v663
      %v665 = vsel %vm659, %v664, %v663
      %vm666 = vcmp.lt.s32.totalorder %v422, 0
      %v667 = vsub.s32 0, %v422
      %v668 = vsel %vm666, %v667, %v422
      %v669 = vshrl.u32 %v668, 3
      %v670 = vand.u32 %v668, 7
      %v671 = vsub.s32 0, %v670
      %v672 = vsel %vm666, %v671, %v670
      %vm673 = vcmp.lt.s32.totalorder %v423, 0
      %v674 = vsub.s32 0, %v423
      %v675 = vsel %vm673, %v674, %v423
      %v676 = vshrl.u32 %v675, 3
      %v677 = vand.u32 %v675, 7
      %v678 = vsub.s32 0, %v677
      %v679 = vsel %vm673, %v678, %v677
      %vm680 = vcmp.ne.s32.totalorder %v630, 0
      %vm681 = vcmp.ne.s32.totalorder %v637, 0
      %vm682 = vcmp.ne.s32.totalorder %v644, 0
      %vm683 = vcmp.ne.s32.totalorder %v651, 0
      %vm684 = vcmp.ne.s32.totalorder %v658, 0
      %vm685 = vcmp.ne.s32.totalorder %v665, 0
      %vm686 = vcmp.ne.s32.totalorder %v672, 0
      %vm687 = vcmp.ne.s32.totalorder %v679, 0
      %vm688 = vcmp.lt.s32.totalorder %v630, 0
      %vm689 = vcmp.lt.s32.totalorder %v637, 0
      %vm690 = vcmp.lt.s32.totalorder %v644, 0
      %vm691 = vcmp.lt.s32.totalorder %v651, 0
      %vm692 = vcmp.lt.s32.totalorder %v658, 0
      %vm693 = vcmp.lt.s32.totalorder %v665, 0
      %vm694 = vcmp.lt.s32.totalorder %v672, 0
      %vm695 = vcmp.lt.s32.totalorder %v679, 0
      %vm696 = vmand %vm688, %vm680
      %vm697 = vmand %vm689, %vm681
      %vm698 = vmand %vm690, %vm682
      %vm699 = vmand %vm691, %vm683
      %vm700 = vmand %vm692, %vm684
      %vm701 = vmand %vm693, %vm685
      %vm702 = vmand %vm694, %vm686
      %vm703 = vmand %vm695, %vm687
      %v704 = vadd.s32 %v630, 8
      %v705 = vadd.s32 %v637, 8
      %v706 = vadd.s32 %v644, 8
      %v707 = vadd.s32 %v651, 8
      %v708 = vadd.s32 %v658, 8
      %v709 = vadd.s32 %v665, 8
      %v710 = vadd.s32 %v672, 8
      %v711 = vadd.s32 %v679, 8
      %v712 = vsel %vm696, %v704, %v630
      %v713 = vsel %vm697, %v705, %v637
      %v714 = vsel %vm698, %v706, %v644
      %v715 = vsel %vm699, %v707, %v651
      %v716 = vsel %vm700, %v708, %v658
      %v717 = vsel %vm701, %v709, %v665
      %v718 = vsel %vm702, %v710, %v672
      %v719 = vsel %vm703, %v711, %v679
      %v720 = vld [vmem:[%s408] sm:$0xff]
      %v721 = vld [vmem:[%s408 + $0x8] sm:$0xff]
      %v722 = vld [vmem:[%s408 + $0x10] sm:$0xff]
      %v723 = vld [vmem:[%s408 + $0x18] sm:$0xff]
      %v724 = vld [vmem:[%s408 + $0x20] sm:$0xff]
      %v725 = vld [vmem:[%s408 + $0x28] sm:$0xff]
      %v726 = vld [vmem:[%s408 + $0x30] sm:$0xff]
      %v727 = vld [vmem:[%s408 + $0x38] sm:$0xff]
      %v728 = vld [vmem:[%s408 + $0x40] sm:$0xff]
      %v729 = vld [vmem:[%s408 + $0x48] sm:$0xff]
      %v730 = vld [vmem:[%s408 + $0x50] sm:$0xff]
      %v731 = vld [vmem:[%s408 + $0x58] sm:$0xff]
      %v732 = vld [vmem:[%s408 + $0x60] sm:$0xff]
      %v733 = vld [vmem:[%s408 + $0x68] sm:$0xff]
      %v734 = vld [vmem:[%s408 + $0x70] sm:$0xff]
      %v735 = vld [vmem:[%s408 + $0x78] sm:$0xff]
      %vm736 = vcmp.eq.s32.totalorder %v608, 0
      %vm737 = vcmp.eq.s32.totalorder %v609, 0
      %vm738 = vcmp.eq.s32.totalorder %v610, 0
      %vm739 = vcmp.eq.s32.totalorder %v611, 0
      %vm740 = vcmp.eq.s32.totalorder %v612, 0
      %vm741 = vcmp.eq.s32.totalorder %v613, 0
      %vm742 = vcmp.eq.s32.totalorder %v614, 0
      %vm743 = vcmp.eq.s32.totalorder %v615, 0
      %vm744 = vcmp.eq.s32.totalorder %v616, 0
      %vm745 = vcmp.eq.s32.totalorder %v617, 0
      %vm746 = vcmp.eq.s32.totalorder %v618, 0
      %vm747 = vcmp.eq.s32.totalorder %v619, 0
      %vm748 = vcmp.eq.s32.totalorder %v620, 0
      %vm749 = vcmp.eq.s32.totalorder %v621, 0
      %vm750 = vcmp.eq.s32.totalorder %v622, 0
      %vm751 = vcmp.eq.s32.totalorder %v623, 0
      %vm752 = vcmp.eq.s32.totalorder %v608, 15
      %vm753 = vcmp.eq.s32.totalorder %v609, 15
      %vm754 = vcmp.eq.s32.totalorder %v610, 15
      %vm755 = vcmp.eq.s32.totalorder %v611, 15
      %vm756 = vcmp.eq.s32.totalorder %v612, 15
      %vm757 = vcmp.eq.s32.totalorder %v613, 15
      %vm758 = vcmp.eq.s32.totalorder %v614, 15
      %vm759 = vcmp.eq.s32.totalorder %v615, 15
      %vm760 = vcmp.eq.s32.totalorder %v616, 15
      %vm761 = vcmp.eq.s32.totalorder %v617, 15
      %vm762 = vcmp.eq.s32.totalorder %v618, 15
      %vm763 = vcmp.eq.s32.totalorder %v619, 15
      %vm764 = vcmp.eq.s32.totalorder %v620, 15
      %vm765 = vcmp.eq.s32.totalorder %v621, 15
      %vm766 = vcmp.eq.s32.totalorder %v622, 15
      %vm767 = vcmp.eq.s32.totalorder %v623, 15
      %v768 = vrot.slane %v720, 7
      %v769 = vrot.slane %v721, 7
      %v770 = vrot.slane %v722, 7
      %v771 = vrot.slane %v723, 7
      %v772 = vrot.slane %v724, 7
      %v773 = vrot.slane %v725, 7
      %v774 = vrot.slane %v726, 7
      %v775 = vrot.slane %v727, 7
      %v776 = vrot.slane %v728, 7
      %v777 = vrot.slane %v729, 7
      %v778 = vrot.slane %v730, 7
      %v779 = vrot.slane %v731, 7
      %v780 = vrot.slane %v732, 7
      %v781 = vrot.slane %v733, 7
      %v782 = vrot.slane %v734, 7
      %v783 = vrot.slane %v735, 7
      %vm784 = vcmp.lt.s32.totalorder %v416, 1
      %v785 = vsel %vm784, %v782, %v783
      %v786 = vsel %vm784, %v781, %v782
      %v787 = vsel %vm784, %v780, %v781
      %v788 = vsel %vm784, %v779, %v780
      %v789 = vsel %vm784, %v778, %v779
      %v790 = vsel %vm784, %v777, %v778
      %v791 = vsel %vm784, %v776, %v777
      %v792 = vsel %vm784, %v775, %v776
      %v793 = vsel %vm784, %v774, %v775
      %v794 = vsel %vm784, %v773, %v774
      %v795 = vsel %vm784, %v772, %v773
      %v796 = vsel %vm784, %v771, %v772
      %v797 = vsel %vm784, %v770, %v771
      %v798 = vsel %vm784, %v769, %v770
      %v799 = vsel %vm784, %v768, %v769
      %v800 = vsel %vm784, %v783, %v768
      %v801 = vsel %vm736, 1, 0
      %v802 = vsel %vm737, 1, 0
      %v803 = vsel %vm738, 1, 0
      %v804 = vsel %vm739, 1, 0
      %v805 = vsel %vm740, 1, 0
      %v806 = vsel %vm741, 1, 0
      %v807 = vsel %vm742, 1, 0
      %v808 = vsel %vm743, 1, 0
      %v809 = vsel %vm744, 1, 0
      %v810 = vsel %vm745, 1, 0
      %v811 = vsel %vm746, 1, 0
      %v812 = vsel %vm747, 1, 0
      %v813 = vsel %vm748, 1, 0
      %v814 = vsel %vm749, 1, 0
      %v815 = vsel %vm750, 1, 0
      %v816 = vsel %vm751, 1, 0
      %vm817 = vcmp.eq.s32.totalorder %v801, 1
      %vm818 = vcmp.eq.s32.totalorder %v802, 1
      %vm819 = vcmp.eq.s32.totalorder %v803, 1
      %vm820 = vcmp.eq.s32.totalorder %v804, 1
      %vm821 = vcmp.eq.s32.totalorder %v805, 1
      %vm822 = vcmp.eq.s32.totalorder %v806, 1
      %vm823 = vcmp.eq.s32.totalorder %v807, 1
      %vm824 = vcmp.eq.s32.totalorder %v808, 1
      %vm825 = vcmp.eq.s32.totalorder %v809, 1
      %vm826 = vcmp.eq.s32.totalorder %v810, 1
      %vm827 = vcmp.eq.s32.totalorder %v811, 1
      %vm828 = vcmp.eq.s32.totalorder %v812, 1
      %vm829 = vcmp.eq.s32.totalorder %v813, 1
      %vm830 = vcmp.eq.s32.totalorder %v814, 1
      %vm831 = vcmp.eq.s32.totalorder %v815, 1
      %vm832 = vcmp.eq.s32.totalorder %v816, 1
      %v833 = vsel %vm817, 0.0, %v800
      %v834 = vsel %vm818, 0.0, %v799
      %v835 = vsel %vm819, 0.0, %v798
      %v836 = vsel %vm820, 0.0, %v797
      %v837 = vsel %vm821, 0.0, %v796
      %v838 = vsel %vm822, 0.0, %v795
      %v839 = vsel %vm823, 0.0, %v794
      %v840 = vsel %vm824, 0.0, %v793
      %v841 = vsel %vm825, 0.0, %v792
      %v842 = vsel %vm826, 0.0, %v791
      %v843 = vsel %vm827, 0.0, %v790
      %v844 = vsel %vm828, 0.0, %v789
      %v845 = vsel %vm829, 0.0, %v788
      %v846 = vsel %vm830, 0.0, %v787
      %v847 = vsel %vm831, 0.0, %v786
      %v848 = vsel %vm832, 0.0, %v785
      %v849 = vrot.slane %v720, 1
      %v850 = vrot.slane %v721, 1
      %v851 = vrot.slane %v722, 1
      %v852 = vrot.slane %v723, 1
      %v853 = vrot.slane %v724, 1
      %v854 = vrot.slane %v725, 1
      %v855 = vrot.slane %v726, 1
      %v856 = vrot.slane %v727, 1
      %v857 = vrot.slane %v728, 1
      %v858 = vrot.slane %v729, 1
      %v859 = vrot.slane %v730, 1
      %v860 = vrot.slane %v731, 1
      %v861 = vrot.slane %v732, 1
      %v862 = vrot.slane %v733, 1
      %v863 = vrot.slane %v734, 1
      %v864 = vrot.slane %v735, 1
      %vm865 = vcmp.lt.s32.totalorder %v416, 7
      %v866 = vsel %vm865, %v863, %v864
      %v867 = vsel %vm865, %v862, %v863
      %v868 = vsel %vm865, %v861, %v862
      %v869 = vsel %vm865, %v860, %v861
      %v870 = vsel %vm865, %v859, %v860
      %v871 = vsel %vm865, %v858, %v859
      %v872 = vsel %vm865, %v857, %v858
      %v873 = vsel %vm865, %v856, %v857
      %v874 = vsel %vm865, %v855, %v856
      %v875 = vsel %vm865, %v854, %v855
      %v876 = vsel %vm865, %v853, %v854
      %v877 = vsel %vm865, %v852, %v853
      %v878 = vsel %vm865, %v851, %v852
      %v879 = vsel %vm865, %v850, %v851
      %v880 = vsel %vm865, %v849, %v850
      %v881 = vsel %vm865, %v864, %v849
      %v882 = vsel %vm752, 1, 0
      %v883 = vsel %vm753, 1, 0
      %v884 = vsel %vm754, 1, 0
      %v885 = vsel %vm755, 1, 0
      %v886 = vsel %vm756, 1, 0
      %v887 = vsel %vm757, 1, 0
      %v888 = vsel %vm758, 1, 0
      %v889 = vsel %vm759, 1, 0
      %v890 = vsel %vm760, 1, 0
      %v891 = vsel %vm761, 1, 0
      %v892 = vsel %vm762, 1, 0
      %v893 = vsel %vm763, 1, 0
      %v894 = vsel %vm764, 1, 0
      %v895 = vsel %vm765, 1, 0
      %v896 = vsel %vm766, 1, 0
      %v897 = vsel %vm767, 1, 0
      %vm898 = vcmp.eq.s32.totalorder %v882, 1
      %vm899 = vcmp.eq.s32.totalorder %v883, 1
      %vm900 = vcmp.eq.s32.totalorder %v884, 1
      %vm901 = vcmp.eq.s32.totalorder %v885, 1
      %vm902 = vcmp.eq.s32.totalorder %v886, 1
      %vm903 = vcmp.eq.s32.totalorder %v887, 1
      %vm904 = vcmp.eq.s32.totalorder %v888, 1
      %vm905 = vcmp.eq.s32.totalorder %v889, 1
      %vm906 = vcmp.eq.s32.totalorder %v890, 1
      %vm907 = vcmp.eq.s32.totalorder %v891, 1
      %vm908 = vcmp.eq.s32.totalorder %v892, 1
      %vm909 = vcmp.eq.s32.totalorder %v893, 1
      %vm910 = vcmp.eq.s32.totalorder %v894, 1
      %vm911 = vcmp.eq.s32.totalorder %v895, 1
      %vm912 = vcmp.eq.s32.totalorder %v896, 1
      %vm913 = vcmp.eq.s32.totalorder %v897, 1
      %v914 = vsel %vm898, 0.0, %v880
      %v915 = vsel %vm899, 0.0, %v879
      %v916 = vsel %vm900, 0.0, %v878
      %v917 = vsel %vm901, 0.0, %v877
      %v918 = vsel %vm902, 0.0, %v876
      %v919 = vsel %vm903, 0.0, %v875
      %v920 = vsel %vm904, 0.0, %v874
      %v921 = vsel %vm905, 0.0, %v873
      %v922 = vsel %vm906, 0.0, %v872
      %v923 = vsel %vm907, 0.0, %v871
      %v924 = vsel %vm908, 0.0, %v870
      %v925 = vsel %vm909, 0.0, %v869
      %v926 = vsel %vm910, 0.0, %v868
      %v927 = vsel %vm911, 0.0, %v867
      %v928 = vsel %vm912, 0.0, %v866
      %v929 = vsel %vm913, 0.0, %v881
      %v930 = vpack.c.bf16 %v834, %v833
      %v931 = vpack.c.bf16 %v836, %v835
      %v932 = vpack.c.bf16 %v838, %v837
      %v933 = vpack.c.bf16 %v840, %v839
      %v934 = vpack.c.bf16 %v842, %v841
      %v935 = vpack.c.bf16 %v844, %v843
      %v936 = vpack.c.bf16 %v846, %v845
      %v937 = vpack.c.bf16 %v848, %v847
      %v938 = vld [vmem:[%s1] sm:$0xf]
      %v939 = vld [vmem:[%s1 + $0x4] sm:$0xf]
      %v940 = vpack.c.bf16 %v721, %v720
      %v941 = vpack.c.bf16 %v723, %v722
      %v942 = vpack.c.bf16 %v725, %v724
      %v943 = vpack.c.bf16 %v727, %v726
      %v944 = vpack.c.bf16 %v729, %v728
      %v945 = vpack.c.bf16 %v731, %v730
      %v946 = vpack.c.bf16 %v733, %v732
      %v947 = vpack.c.bf16 %v735, %v734
      %s948 = scalar_lea.vmem %s1, 8
      %v949 = vld [vmem:[%s948] sm:$0xf]
      %v950 = vld [vmem:[%s948 + $0x4] sm:$0xf]
      %v953 = vunpack.c.l.b16 %v949
      %v954 = vunpack.c.l.b16 %v950
      %v955 = vpack.c.b16 %v954, %v953
      %vm957 = vcmask 130048
      %v959 = vsel %vm957, %v940, 0
      %v962 = vsel %vm957, %v941, 0
      %v965 = vsel %vm957, %v942, 0
      %v968 = vsel %vm957, %v943, 0
      %v971 = vsel %vm957, %v944, 0
      %v974 = vsel %vm957, %v945, 0
      %v977 = vsel %vm957, %v946, 0
      %v980 = vsel %vm957, %v947, 0
      %982 = vmatprep.subr.bf16.mxu0 0
      %983 = vmatpush1.bf16.msra.mxu0 0
      %984 = vmatprep.subr.bf16.mxu0 0
      %985 = vmatpush1.bf16.msra.mxu0 0
      %986 = vmatprep.subr.bf16.mxu0 0
      %987 = vmatpush1.bf16.msra.mxu0 0
      %988 = vmatprep.subr.bf16.mxu0 0
      %989 = vmatpush1.bf16.msra.mxu0 0
      %990 = vmatprep.subr.bf16.mxu0 0
      %991 = vmatpush1.bf16.msra.mxu0 0
      %992 = vmatprep.subr.bf16.mxu0 0
      %993 = vmatpush1.bf16.msra.mxu0 0
      %994 = vmatprep.subr.bf16.mxu0 0
      %995 = vmatpush1.bf16.msra.mxu0 0
      %996 = vmatprep.subr.bf16.mxu0 0
      %997 = vmatpush1.bf16.msra.mxu0 %v955
      %998 = vmatprep.subr.bf16.mxu0 0
      %999 = vmatpush2.bf16.msra.mxu0 0
      %1000 = vmatprep.subr.bf16.mxu0 0
      %1001 = vmatpush2.bf16.msra.mxu0 0
      %1002 = vmatprep.subr.bf16.mxu0 0
      %1003 = vmatpush2.bf16.msra.mxu0 0
      %1004 = vmatprep.subr.bf16.mxu0 0
      %1005 = vmatpush2.bf16.msra.mxu0 0
      %1006 = vmatprep.subr.bf16.mxu0 0
      %1007 = vmatpush2.bf16.msra.mxu0 0
      %1008 = vmatprep.subr.bf16.mxu0 0
      %1009 = vmatpush2.bf16.msra.mxu0 0
      %1010 = vmatprep.subr.bf16.mxu0 0
      %1011 = vmatpush2.bf16.msra.mxu0 0
      %1012 = vmatprep.subr.bf16.mxu0 0
      %1013 = vmatpush2.bf16.msra.mxu0 0
      %1014 = vmatprep.mubr.bf16.mxu0 0
      %1015 = vmatmul.mubr.bf16.gmra.mxu0 %v959
      %v1016 = vpop.f32.mrf.mxu0
      %v1017 = vadd.f32 0.0, %v1016
      %v1018 = vpop.f32.mrf.mxu0
      %v1019 = vpop.f32.mrf.mxu0
      %v1020 = vadd.f32 0.0, %v1019
      %v1021 = vpop.f32.mrf.mxu0
      %1022 = vmatprep.mubr.bf16.mxu0 0
      %1023 = vmatmul.mubr.bf16.gmra.mxu0 %v962
      %v1024 = vpop.f32.mrf.mxu0
      %v1025 = vadd.f32 0.0, %v1024
      %v1026 = vpop.f32.mrf.mxu0
      %v1027 = vpop.f32.mrf.mxu0
      %v1028 = vadd.f32 0.0, %v1027
      %v1029 = vpop.f32.mrf.mxu0
      %1030 = vmatprep.mubr.bf16.mxu0 0
      %1031 = vmatmul.mubr.bf16.gmra.mxu0 %v965
      %v1032 = vpop.f32.mrf.mxu0
      %v1033 = vadd.f32 0.0, %v1032
      %v1034 = vpop.f32.mrf.mxu0
      %v1035 = vpop.f32.mrf.mxu0
      %v1036 = vadd.f32 0.0, %v1035
      %v1037 = vpop.f32.mrf.mxu0
      %1038 = vmatprep.mubr.bf16.mxu0 0
      %1039 = vmatmul.mubr.bf16.gmra.mxu0 %v968
      %v1040 = vpop.f32.mrf.mxu0
      %v1041 = vadd.f32 0.0, %v1040
      %v1042 = vpop.f32.mrf.mxu0
      %v1043 = vpop.f32.mrf.mxu0
      %v1044 = vadd.f32 0.0, %v1043
      %v1045 = vpop.f32.mrf.mxu0
      %1046 = vmatprep.mubr.bf16.mxu0 0
      %1047 = vmatmul.mubr.bf16.gmra.mxu0 %v971
      %v1048 = vpop.f32.mrf.mxu0
      %v1049 = vadd.f32 0.0, %v1048
      %v1050 = vpop.f32.mrf.mxu0
      %v1051 = vpop.f32.mrf.mxu0
      %v1052 = vadd.f32 0.0, %v1051
      %v1053 = vpop.f32.mrf.mxu0
      %1054 = vmatprep.mubr.bf16.mxu0 0
      %1055 = vmatmul.mubr.bf16.gmra.mxu0 %v974
      %v1056 = vpop.f32.mrf.mxu0
      %v1057 = vadd.f32 0.0, %v1056
      %v1058 = vpop.f32.mrf.mxu0
      %v1059 = vpop.f32.mrf.mxu0
      %v1060 = vadd.f32 0.0, %v1059
      %v1061 = vpop.f32.mrf.mxu0
      %1062 = vmatprep.mubr.bf16.mxu0 0
      %1063 = vmatmul.mubr.bf16.gmra.mxu0 %v977
      %v1064 = vpop.f32.mrf.mxu0
      %v1065 = vadd.f32 0.0, %v1064
      %v1066 = vpop.f32.mrf.mxu0
      %v1067 = vpop.f32.mrf.mxu0
      %v1068 = vadd.f32 0.0, %v1067
      %v1069 = vpop.f32.mrf.mxu0
      %1070 = vmatprep.mubr.bf16.mxu0 0
      %1071 = vmatmul.mubr.bf16.gmra.mxu0 %v980
      %v1072 = vpop.f32.mrf.mxu0
      %v1073 = vadd.f32 0.0, %v1072
      %v1074 = vpop.f32.mrf.mxu0
      %v1075 = vpop.f32.mrf.mxu0
      %v1076 = vadd.f32 0.0, %v1075
      %v1077 = vpop.f32.mrf.mxu0
      %1078 = vdwg.mxu0
      %v1081 = vunpack.c.l.b16 %v938
      %v1082 = vunpack.c.l.b16 %v939
      %v1083 = vpack.c.b16 %v1082, %v1081
      %v1086 = vsel %vm957, %v930, 0
      %v1089 = vsel %vm957, %v931, 0
      %v1092 = vsel %vm957, %v932, 0
      %v1095 = vsel %vm957, %v933, 0
      %v1098 = vsel %vm957, %v934, 0
      %v1101 = vsel %vm957, %v935, 0
      %v1104 = vsel %vm957, %v936, 0
      %v1107 = vsel %vm957, %v937, 0
      %1109 = vmatprep.subr.bf16.mxu0 0
      %1110 = vmatpush1.bf16.msra.mxu0 0
      %1111 = vmatprep.subr.bf16.mxu0 0
      %1112 = vmatpush1.bf16.msra.mxu0 0
      %1113 = vmatprep.subr.bf16.mxu0 0
      %1114 = vmatpush1.bf16.msra.mxu0 0
      %1115 = vmatprep.subr.bf16.mxu0 0
      %1116 = vmatpush1.bf16.msra.mxu0 0
      %1117 = vmatprep.subr.bf16.mxu0 0
      %1118 = vmatpush1.bf16.msra.mxu0 0
      %1119 = vmatprep.subr.bf16.mxu0 0
      %1120 = vmatpush1.bf16.msra.mxu0 0
      %1121 = vmatprep.subr.bf16.mxu0 0
      %1122 = vmatpush1.bf16.msra.mxu0 0
      %1123 = vmatprep.subr.bf16.mxu0 0
      %1124 = vmatpush1.bf16.msra.mxu0 %v1083
      %1125 = vmatprep.subr.bf16.mxu0 0
      %1126 = vmatpush2.bf16.msra.mxu0 0
      %1127 = vmatprep.subr.bf16.mxu0 0
      %1128 = vmatpush2.bf16.msra.mxu0 0
      %1129 = vmatprep.subr.bf16.mxu0 0
      %1130 = vmatpush2.bf16.msra.mxu0 0
      %1131 = vmatprep.subr.bf16.mxu0 0
      %1132 = vmatpush2.bf16.msra.mxu0 0
      %1133 = vmatprep.subr.bf16.mxu0 0
      %1134 = vmatpush2.bf16.msra.mxu0 0
      %1135 = vmatprep.subr.bf16.mxu0 0
      %1136 = vmatpush2.bf16.msra.mxu0 0
      %1137 = vmatprep.subr.bf16.mxu0 0
      %1138 = vmatpush2.bf16.msra.mxu0 0
      %1139 = vmatprep.subr.bf16.mxu0 0
      %1140 = vmatpush2.bf16.msra.mxu0 0
      %1141 = vmatprep.mubr.bf16.mxu0 0
      %1142 = vmatmul.mubr.bf16.gmra.mxu0 %v1086
      %v1143 = vpop.f32.mrf.mxu0
      %v1144 = vadd.f32 %v1017, %v1143
      %v1145 = vpop.f32.mrf.mxu0
      %v1146 = vpop.f32.mrf.mxu0
      %v1147 = vadd.f32 %v1020, %v1146
      %v1148 = vpop.f32.mrf.mxu0
      %1149 = vmatprep.mubr.bf16.mxu0 0
      %1150 = vmatmul.mubr.bf16.gmra.mxu0 %v1089
      %v1151 = vpop.f32.mrf.mxu0
      %v1152 = vadd.f32 %v1025, %v1151
      %v1153 = vpop.f32.mrf.mxu0
      %v1154 = vpop.f32.mrf.mxu0
      %v1155 = vadd.f32 %v1028, %v1154
      %v1156 = vpop.f32.mrf.mxu0
      %1157 = vmatprep.mubr.bf16.mxu0 0
      %1158 = vmatmul.mubr.bf16.gmra.mxu0 %v1092
      %v1159 = vpop.f32.mrf.mxu0
      %v1160 = vadd.f32 %v1033, %v1159
      %v1161 = vpop.f32.mrf.mxu0
      %v1162 = vpop.f32.mrf.mxu0
      %v1163 = vadd.f32 %v1036, %v1162
      %v1164 = vpop.f32.mrf.mxu0
      %1165 = vmatprep.mubr.bf16.mxu0 0
      %1166 = vmatmul.mubr.bf16.gmra.mxu0 %v1095
      %v1167 = vpop.f32.mrf.mxu0
      %v1168 = vadd.f32 %v1041, %v1167
      %v1169 = vpop.f32.mrf.mxu0
      %v1170 = vpop.f32.mrf.mxu0
      %v1171 = vadd.f32 %v1044, %v1170
      %v1172 = vpop.f32.mrf.mxu0
      %1173 = vmatprep.mubr.bf16.mxu0 0
      %1174 = vmatmul.mubr.bf16.gmra.mxu0 %v1098
      %v1175 = vpop.f32.mrf.mxu0
      %v1176 = vadd.f32 %v1049, %v1175
      %v1177 = vpop.f32.mrf.mxu0
      %v1178 = vpop.f32.mrf.mxu0
      %v1179 = vadd.f32 %v1052, %v1178
      %v1180 = vpop.f32.mrf.mxu0
      %1181 = vmatprep.mubr.bf16.mxu0 0
      %1182 = vmatmul.mubr.bf16.gmra.mxu0 %v1101
      %v1183 = vpop.f32.mrf.mxu0
      %v1184 = vadd.f32 %v1057, %v1183
      %v1185 = vpop.f32.mrf.mxu0
      %v1186 = vpop.f32.mrf.mxu0
      %v1187 = vadd.f32 %v1060, %v1186
      %v1188 = vpop.f32.mrf.mxu0
      %1189 = vmatprep.mubr.bf16.mxu0 0
      %1190 = vmatmul.mubr.bf16.gmra.mxu0 %v1104
      %v1191 = vpop.f32.mrf.mxu0
      %v1192 = vadd.f32 %v1065, %v1191
      %v1193 = vpop.f32.mrf.mxu0
      %v1194 = vpop.f32.mrf.mxu0
      %v1195 = vadd.f32 %v1068, %v1194
      %v1196 = vpop.f32.mrf.mxu0
      %1197 = vmatprep.mubr.bf16.mxu0 0
      %1198 = vmatmul.mubr.bf16.gmra.mxu0 %v1107
      %v1199 = vpop.f32.mrf.mxu0
      %v1200 = vadd.f32 %v1073, %v1199
      %v1201 = vpop.f32.mrf.mxu0
      %v1202 = vpop.f32.mrf.mxu0
      %v1203 = vadd.f32 %v1076, %v1202
      %v1204 = vpop.f32.mrf.mxu0
      %1205 = vdwg.mxu0
      %v1206 = vpack.c.bf16 %v915, %v914
      %v1207 = vpack.c.bf16 %v917, %v916
      %v1208 = vpack.c.bf16 %v919, %v918
      %v1209 = vpack.c.bf16 %v921, %v920
      %v1210 = vpack.c.bf16 %v923, %v922
      %v1211 = vpack.c.bf16 %v925, %v924
      %v1212 = vpack.c.bf16 %v927, %v926
      %v1213 = vpack.c.bf16 %v929, %v928
      %s1214 = scalar_lea.vmem %s1, 16
      %v1215 = vld [vmem:[%s1214] sm:$0xf]
      %v1216 = vld [vmem:[%s1214 + $0x4] sm:$0xf]
      %v1219 = vunpack.c.l.b16 %v1215
      %v1220 = vunpack.c.l.b16 %v1216
      %v1221 = vpack.c.b16 %v1220, %v1219
      %v1224 = vsel %vm957, %v1206, 0
      %v1227 = vsel %vm957, %v1207, 0
      %v1230 = vsel %vm957, %v1208, 0
      %v1233 = vsel %vm957, %v1209, 0
      %v1236 = vsel %vm957, %v1210, 0
      %v1239 = vsel %vm957, %v1211, 0
      %v1242 = vsel %vm957, %v1212, 0
      %v1245 = vsel %vm957, %v1213, 0
      %1247 = vmatprep.subr.bf16.mxu0 0
      %1248 = vmatpush1.bf16.msra.mxu0 0
      %1249 = vmatprep.subr.bf16.mxu0 0
      %1250 = vmatpush1.bf16.msra.mxu0 0
      %1251 = vmatprep.subr.bf16.mxu0 0
      %1252 = vmatpush1.bf16.msra.mxu0 0
      %1253 = vmatprep.subr.bf16.mxu0 0
      %1254 = vmatpush1.bf16.msra.mxu0 0
      %1255 = vmatprep.subr.bf16.mxu0 0
      %1256 = vmatpush1.bf16.msra.mxu0 0
      %1257 = vmatprep.subr.bf16.mxu0 0
      %1258 = vmatpush1.bf16.msra.mxu0 0
      %1259 = vmatprep.subr.bf16.mxu0 0
      %1260 = vmatpush1.bf16.msra.mxu0 0
      %1261 = vmatprep.subr.bf16.mxu0 0
      %1262 = vmatpush1.bf16.msra.mxu0 %v1221
      %1263 = vmatprep.subr.bf16.mxu0 0
      %1264 = vmatpush2.bf16.msra.mxu0 0
      %1265 = vmatprep.subr.bf16.mxu0 0
      %1266 = vmatpush2.bf16.msra.mxu0 0
      %1267 = vmatprep.subr.bf16.mxu0 0
      %1268 = vmatpush2.bf16.msra.mxu0 0
      %1269 = vmatprep.subr.bf16.mxu0 0
      %1270 = vmatpush2.bf16.msra.mxu0 0
      %1271 = vmatprep.subr.bf16.mxu0 0
      %1272 = vmatpush2.bf16.msra.mxu0 0
      %1273 = vmatprep.subr.bf16.mxu0 0
      %1274 = vmatpush2.bf16.msra.mxu0 0
      %1275 = vmatprep.subr.bf16.mxu0 0
      %1276 = vmatpush2.bf16.msra.mxu0 0
      %1277 = vmatprep.subr.bf16.mxu0 0
      %1278 = vmatpush2.bf16.msra.mxu0 0
      %1279 = vmatprep.mubr.bf16.mxu0 0
      %1280 = vmatmul.mubr.bf16.gmra.mxu0 %v1224
      %v1281 = vpop.f32.mrf.mxu0
      %v1282 = vadd.f32 0.0, %v1281
      %v1283 = vpop.f32.mrf.mxu0
      %v1284 = vpop.f32.mrf.mxu0
      %v1285 = vadd.f32 0.0, %v1284
      %v1286 = vpop.f32.mrf.mxu0
      %1287 = vmatprep.mubr.bf16.mxu0 0
      %1288 = vmatmul.mubr.bf16.gmra.mxu0 %v1227
      %v1289 = vpop.f32.mrf.mxu0
      %v1290 = vadd.f32 0.0, %v1289
      %v1291 = vpop.f32.mrf.mxu0
      %v1292 = vpop.f32.mrf.mxu0
      %v1293 = vadd.f32 0.0, %v1292
      %v1294 = vpop.f32.mrf.mxu0
      %1295 = vmatprep.mubr.bf16.mxu0 0
      %1296 = vmatmul.mubr.bf16.gmra.mxu0 %v1230
      %v1297 = vpop.f32.mrf.mxu0
      %v1298 = vadd.f32 0.0, %v1297
      %v1299 = vpop.f32.mrf.mxu0
      %v1300 = vpop.f32.mrf.mxu0
      %v1301 = vadd.f32 0.0, %v1300
      %v1302 = vpop.f32.mrf.mxu0
      %1303 = vmatprep.mubr.bf16.mxu0 0
      %1304 = vmatmul.mubr.bf16.gmra.mxu0 %v1233
      %v1305 = vpop.f32.mrf.mxu0
      %v1306 = vadd.f32 0.0, %v1305
      %v1307 = vpop.f32.mrf.mxu0
      %v1308 = vpop.f32.mrf.mxu0
      %v1309 = vadd.f32 0.0, %v1308
      %v1310 = vpop.f32.mrf.mxu0
      %1311 = vmatprep.mubr.bf16.mxu0 0
      %1312 = vmatmul.mubr.bf16.gmra.mxu0 %v1236
      %v1313 = vpop.f32.mrf.mxu0
      %v1314 = vadd.f32 0.0, %v1313
      %v1315 = vpop.f32.mrf.mxu0
      %v1316 = vpop.f32.mrf.mxu0
      %v1317 = vadd.f32 0.0, %v1316
      %v1318 = vpop.f32.mrf.mxu0
      %1319 = vmatprep.mubr.bf16.mxu0 0
      %1320 = vmatmul.mubr.bf16.gmra.mxu0 %v1239
      %v1321 = vpop.f32.mrf.mxu0
      %v1322 = vadd.f32 0.0, %v1321
      %v1323 = vpop.f32.mrf.mxu0
      %v1324 = vpop.f32.mrf.mxu0
      %v1325 = vadd.f32 0.0, %v1324
      %v1326 = vpop.f32.mrf.mxu0
      %1327 = vmatprep.mubr.bf16.mxu0 0
      %1328 = vmatmul.mubr.bf16.gmra.mxu0 %v1242
      %v1329 = vpop.f32.mrf.mxu0
      %v1330 = vadd.f32 0.0, %v1329
      %v1331 = vpop.f32.mrf.mxu0
      %v1332 = vpop.f32.mrf.mxu0
      %v1333 = vadd.f32 0.0, %v1332
      %v1334 = vpop.f32.mrf.mxu0
      %1335 = vmatprep.mubr.bf16.mxu0 0
      %1336 = vmatmul.mubr.bf16.gmra.mxu0 %v1245
      %v1337 = vpop.f32.mrf.mxu0
      %v1338 = vadd.f32 0.0, %v1337
      %v1339 = vpop.f32.mrf.mxu0
      %v1340 = vpop.f32.mrf.mxu0
      %v1341 = vadd.f32 0.0, %v1340
      %v1342 = vpop.f32.mrf.mxu0
      %1343 = vdwg.mxu0
      %v1344 = vadd.f32 %v1144, %v1282
      %v1345 = vadd.f32 %v1147, %v1285
      %v1346 = vadd.f32 %v1152, %v1290
      %v1347 = vadd.f32 %v1155, %v1293
      %v1348 = vadd.f32 %v1160, %v1298
      %v1349 = vadd.f32 %v1163, %v1301
      %v1350 = vadd.f32 %v1168, %v1306
      %v1351 = vadd.f32 %v1171, %v1309
      %v1352 = vadd.f32 %v1176, %v1314
      %v1353 = vadd.f32 %v1179, %v1317
      %v1354 = vadd.f32 %v1184, %v1322
      %v1355 = vadd.f32 %v1187, %v1325
      %v1356 = vadd.f32 %v1192, %v1330
      %v1357 = vadd.f32 %v1195, %v1333
      %v1358 = vadd.f32 %v1200, %v1338
      %v1359 = vadd.f32 %v1203, %v1341
      %v1360 = vld [vmem:[%s2] sm:$0x1]
      %v1362 = vlaneseq
      %v1363 = vshrl.u32 %v1362, 7
      %v1364 = vsub.s32 0, %v1363
      %v1365 = vrot.slane %v1360, %v1364
      %v1367 = vadd.f32 %v1344, %v1365
      %v1368 = vadd.f32 %v1345, %v1365
      %v1369 = vadd.f32 %v1346, %v1365
      %v1370 = vadd.f32 %v1347, %v1365
      %v1371 = vadd.f32 %v1348, %v1365
      %v1372 = vadd.f32 %v1349, %v1365
      %v1373 = vadd.f32 %v1350, %v1365
      %v1374 = vadd.f32 %v1351, %v1365
      %v1375 = vadd.f32 %v1352, %v1365
      %v1376 = vadd.f32 %v1353, %v1365
      %v1377 = vadd.f32 %v1354, %v1365
      %v1378 = vadd.f32 %v1355, %v1365
      %v1379 = vadd.f32 %v1356, %v1365
      %v1380 = vadd.f32 %v1357, %v1365
      %v1381 = vadd.f32 %v1358, %v1365
      %v1382 = vadd.f32 %v1359, %v1365
      %v1383 = vmax.f32 %v1367, 0.0
      %v1384 = vmax.f32 %v1368, 0.0
      %v1385 = vmax.f32 %v1369, 0.0
      %v1386 = vmax.f32 %v1370, 0.0
      %v1387 = vmax.f32 %v1371, 0.0
      %v1388 = vmax.f32 %v1372, 0.0
      %v1389 = vmax.f32 %v1373, 0.0
      %v1390 = vmax.f32 %v1374, 0.0
      %v1391 = vmax.f32 %v1375, 0.0
      %v1392 = vmax.f32 %v1376, 0.0
      %v1393 = vmax.f32 %v1377, 0.0
      %v1394 = vmax.f32 %v1378, 0.0
      %v1395 = vmax.f32 %v1379, 0.0
      %v1396 = vmax.f32 %v1380, 0.0
      %v1397 = vmax.f32 %v1381, 0.0
      %v1398 = vmax.f32 %v1382, 0.0
      %vm1399 = vcmask 261120
      %1400 = vst.msk [vmem:[#allocation2] sm:$0xff] %vm1399, %v1383
      %1401 = vst.msk [vmem:[#allocation2 + $0x8] sm:$0xff] %vm1399, %v1384
      %1402 = vst.msk [vmem:[#allocation2 + $0x10] sm:$0xff] %vm1399, %v1385
      %1403 = vst.msk [vmem:[#allocation2 + $0x18] sm:$0xff] %vm1399, %v1386
      %1404 = vst.msk [vmem:[#allocation2 + $0x20] sm:$0xff] %vm1399, %v1387
      %1405 = vst.msk [vmem:[#allocation2 + $0x28] sm:$0xff] %vm1399, %v1388
      %1406 = vst.msk [vmem:[#allocation2 + $0x30] sm:$0xff] %vm1399, %v1389
      %1407 = vst.msk [vmem:[#allocation2 + $0x38] sm:$0xff] %vm1399, %v1390
      %1408 = vst.msk [vmem:[#allocation2 + $0x40] sm:$0xff] %vm1399, %v1391
      %1409 = vst.msk [vmem:[#allocation2 + $0x48] sm:$0xff] %vm1399, %v1392
      %1410 = vst.msk [vmem:[#allocation2 + $0x50] sm:$0xff] %vm1399, %v1393
      %1411 = vst.msk [vmem:[#allocation2 + $0x58] sm:$0xff] %vm1399, %v1394
      %1412 = vst.msk [vmem:[#allocation2 + $0x60] sm:$0xff] %vm1399, %v1395
      %1413 = vst.msk [vmem:[#allocation2 + $0x68] sm:$0xff] %vm1399, %v1396
      %1414 = vst.msk [vmem:[#allocation2 + $0x70] sm:$0xff] %vm1399, %v1397
      %1415 = vst.msk [vmem:[#allocation2 + $0x78] sm:$0xff] %vm1399, %v1398
      %v1416 = vld [vmem:[#allocation2] ss:$2 sm:$0xff]
      %s1417 = scalar_lea.vmem [#allocation2], 16
      %v1418 = vld [vmem:[%s1417] ss:$2 sm:$0xff]
      %s1419 = scalar_lea.vmem [#allocation2], 32
      %v1420 = vld [vmem:[%s1419] ss:$2 sm:$0xff]
      %s1421 = scalar_lea.vmem [#allocation2], 48
      %v1422 = vld [vmem:[%s1421] ss:$2 sm:$0xff]
      %s1423 = scalar_lea.vmem [#allocation2], 64
      %v1424 = vld [vmem:[%s1423] ss:$2 sm:$0xff]
      %s1425 = scalar_lea.vmem [#allocation2], 80
      %v1426 = vld [vmem:[%s1425] ss:$2 sm:$0xff]
      %s1427 = scalar_lea.vmem [#allocation2], 96
      %v1428 = vld [vmem:[%s1427] ss:$2 sm:$0xff]
      %s1429 = scalar_lea.vmem [#allocation2], 112
      %v1430 = vld [vmem:[%s1429] ss:$2 sm:$0xff]
      %s1431 = scalar_lea.vmem [#allocation2], 1
      %v1432 = vld [vmem:[%s1431] ss:$2 sm:$0xff]
      %s1433 = scalar_lea.vmem [#allocation2], 17
      %v1434 = vld [vmem:[%s1433] ss:$2 sm:$0xff]
      %s1435 = scalar_lea.vmem [#allocation2], 33
      %v1436 = vld [vmem:[%s1435] ss:$2 sm:$0xff]
      %s1437 = scalar_lea.vmem [#allocation2], 49
      %v1438 = vld [vmem:[%s1437] ss:$2 sm:$0xff]
      %s1439 = scalar_lea.vmem [#allocation2], 65
      %v1440 = vld [vmem:[%s1439] ss:$2 sm:$0xff]
      %s1441 = scalar_lea.vmem [#allocation2], 81
      %v1442 = vld [vmem:[%s1441] ss:$2 sm:$0xff]
      %s1443 = scalar_lea.vmem [#allocation2], 97
      %v1444 = vld [vmem:[%s1443] ss:$2 sm:$0xff]
      %s1445 = scalar_lea.vmem [#allocation2], 113
      %v1446 = vld [vmem:[%s1445] ss:$2 sm:$0xff]
      %v1447 = vmax.f32 %v1416, %v1432
      %v1448 = vmax.f32 %v1418, %v1434
      %v1449 = vmax.f32 %v1420, %v1436
      %v1450 = vmax.f32 %v1422, %v1438
      %v1451 = vmax.f32 %v1424, %v1440
      %v1452 = vmax.f32 %v1426, %v1442
      %v1453 = vmax.f32 %v1428, %v1444
      %v1454 = vmax.f32 %v1430, %v1446
      %vm1455 = vcmp.eq.s32.totalorder %v712, 0
      %vm1456 = vcmp.eq.s32.totalorder %v713, 0
      %vm1457 = vcmp.eq.s32.totalorder %v714, 0
      %vm1458 = vcmp.eq.s32.totalorder %v715, 0
      %vm1459 = vcmp.eq.s32.totalorder %v716, 0
      %vm1460 = vcmp.eq.s32.totalorder %v717, 0
      %vm1461 = vcmp.eq.s32.totalorder %v718, 0
      %vm1462 = vcmp.eq.s32.totalorder %v719, 0
      %vm1463 = vcmp.eq.s32.totalorder %v712, 7
      %vm1464 = vcmp.eq.s32.totalorder %v713, 7
      %vm1465 = vcmp.eq.s32.totalorder %v714, 7
      %vm1466 = vcmp.eq.s32.totalorder %v715, 7
      %vm1467 = vcmp.eq.s32.totalorder %v716, 7
      %vm1468 = vcmp.eq.s32.totalorder %v717, 7
      %vm1469 = vcmp.eq.s32.totalorder %v718, 7
      %vm1470 = vcmp.eq.s32.totalorder %v719, 7
      %v1471 = vrot.slane %v1447, 7
      %v1472 = vrot.slane %v1448, 7
      %v1473 = vrot.slane %v1449, 7
      %v1474 = vrot.slane %v1450, 7
      %v1475 = vrot.slane %v1451, 7
      %v1476 = vrot.slane %v1452, 7
      %v1477 = vrot.slane %v1453, 7
      %v1478 = vrot.slane %v1454, 7
      %v1479 = vsel %vm784, %v1477, %v1478
      %v1480 = vsel %vm784, %v1476, %v1477
      %v1481 = vsel %vm784, %v1475, %v1476
      %v1482 = vsel %vm784, %v1474, %v1475
      %v1483 = vsel %vm784, %v1473, %v1474
      %v1484 = vsel %vm784, %v1472, %v1473
      %v1485 = vsel %vm784, %v1471, %v1472
      %v1486 = vsel %vm784, %v1478, %v1471
      %v1487 = vsel %vm1455, 1, 0
      %v1488 = vsel %vm1456, 1, 0
      %v1489 = vsel %vm1457, 1, 0
      %v1490 = vsel %vm1458, 1, 0
      %v1491 = vsel %vm1459, 1, 0
      %v1492 = vsel %vm1460, 1, 0
      %v1493 = vsel %vm1461, 1, 0
      %v1494 = vsel %vm1462, 1, 0
      %vm1495 = vcmp.eq.s32.totalorder %v1487, 1
      %vm1496 = vcmp.eq.s32.totalorder %v1488, 1
      %vm1497 = vcmp.eq.s32.totalorder %v1489, 1
      %vm1498 = vcmp.eq.s32.totalorder %v1490, 1
      %vm1499 = vcmp.eq.s32.totalorder %v1491, 1
      %vm1500 = vcmp.eq.s32.totalorder %v1492, 1
      %vm1501 = vcmp.eq.s32.totalorder %v1493, 1
      %vm1502 = vcmp.eq.s32.totalorder %v1494, 1
      %v1503 = vsel %vm1495, 0.0, %v1486
      %v1504 = vsel %vm1496, 0.0, %v1485
      %v1505 = vsel %vm1497, 0.0, %v1484
      %v1506 = vsel %vm1498, 0.0, %v1483
      %v1507 = vsel %vm1499, 0.0, %v1482
      %v1508 = vsel %vm1500, 0.0, %v1481
      %v1509 = vsel %vm1501, 0.0, %v1480
      %v1510 = vsel %vm1502, 0.0, %v1479
      %v1511 = vrot.slane %v1447, 1
      %v1512 = vrot.slane %v1448, 1
      %v1513 = vrot.slane %v1449, 1
      %v1514 = vrot.slane %v1450, 1
      %v1515 = vrot.slane %v1451, 1
      %v1516 = vrot.slane %v1452, 1
      %v1517 = vrot.slane %v1453, 1
      %v1518 = vrot.slane %v1454, 1
      %v1519 = vsel %vm865, %v1517, %v1518
      %v1520 = vsel %vm865, %v1516, %v1517
      %v1521 = vsel %vm865, %v1515, %v1516
      %v1522 = vsel %vm865, %v1514, %v1515
      %v1523 = vsel %vm865, %v1513, %v1514
      %v1524 = vsel %vm865, %v1512, %v1513
      %v1525 = vsel %vm865, %v1511, %v1512
      %v1526 = vsel %vm865, %v1518, %v1511
      %v1527 = vsel %vm1463, 1, 0
      %v1528 = vsel %vm1464, 1, 0
      %v1529 = vsel %vm1465, 1, 0
      %v1530 = vsel %vm1466, 1, 0
      %v1531 = vsel %vm1467, 1, 0
      %v1532 = vsel %vm1468, 1, 0
      %v1533 = vsel %vm1469, 1, 0
      %v1534 = vsel %vm1470, 1, 0
      %vm1535 = vcmp.eq.s32.totalorder %v1527, 1
      %vm1536 = vcmp.eq.s32.totalorder %v1528, 1
      %vm1537 = vcmp.eq.s32.totalorder %v1529, 1
      %vm1538 = vcmp.eq.s32.totalorder %v1530, 1
      %vm1539 = vcmp.eq.s32.totalorder %v1531, 1
      %vm1540 = vcmp.eq.s32.totalorder %v1532, 1
      %vm1541 = vcmp.eq.s32.totalorder %v1533, 1
      %vm1542 = vcmp.eq.s32.totalorder %v1534, 1
      %v1543 = vsel %vm1535, 0.0, %v1525
      %v1544 = vsel %vm1536, 0.0, %v1524
      %v1545 = vsel %vm1537, 0.0, %v1523
      %v1546 = vsel %vm1538, 0.0, %v1522
      %v1547 = vsel %vm1539, 0.0, %v1521
      %v1548 = vsel %vm1540, 0.0, %v1520
      %v1549 = vsel %vm1541, 0.0, %v1519
      %v1550 = vsel %vm1542, 0.0, %v1526
      %v1551 = vpack.c.bf16 %v1504, %v1503
      %v1552 = vpack.c.bf16 %v1506, %v1505
      %v1553 = vpack.c.bf16 %v1508, %v1507
      %v1554 = vpack.c.bf16 %v1510, %v1509
      %v1555 = vld [vmem:[%s3] sm:$0xf]
      %v1556 = vld [vmem:[%s3 + $0x4] sm:$0xf]
      %v1557 = vld [vmem:[%s3 + $0x8] sm:$0xf]
      %v1558 = vld [vmem:[%s3 + $0xc] sm:$0xf]
      %v1559 = vpack.c.bf16 %v1448, %v1447
      %v1560 = vpack.c.bf16 %v1450, %v1449
      %v1561 = vpack.c.bf16 %v1452, %v1451
      %v1562 = vpack.c.bf16 %v1454, %v1453
      %s1563 = scalar_lea.vmem %s3, 16
      %v1564 = vld [vmem:[%s1563] sm:$0xf]
      %v1565 = vld [vmem:[%s1563 + $0x4] sm:$0xf]
      %v1566 = vld [vmem:[%s1563 + $0x8] sm:$0xf]
      %v1567 = vld [vmem:[%s1563 + $0xc] sm:$0xf]
      %v1572 = vunpack.c.l.b16 %v1564
      %v1573 = vunpack.c.l.b16 %v1565
      %v1574 = vunpack.c.l.b16 %v1566
      %v1575 = vunpack.c.l.b16 %v1567
      %v1576 = vpack.c.b16 %v1573, %v1572
      %v1577 = vpack.c.b16 %v1575, %v1574
      %v1581 = vsel %vm1399, %v1559, 0
      %v1584 = vsel %vm1399, %v1560, 0
      %v1587 = vsel %vm1399, %v1561, 0
      %v1590 = vsel %vm1399, %v1562, 0
      %1592 = vmatprep.subr.bf16.mxu0 0
      %1593 = vmatpush1.bf16.msra.mxu0 0
      %1594 = vmatprep.subr.bf16.mxu0 0
      %1595 = vmatpush1.bf16.msra.mxu0 0
      %1596 = vmatprep.subr.bf16.mxu0 0
      %1597 = vmatpush1.bf16.msra.mxu0 0
      %1598 = vmatprep.subr.bf16.mxu0 0
      %1599 = vmatpush1.bf16.msra.mxu0 0
      %1600 = vmatprep.subr.bf16.mxu0 0
      %1601 = vmatpush1.bf16.msra.mxu0 0
      %1602 = vmatprep.subr.bf16.mxu0 0
      %1603 = vmatpush1.bf16.msra.mxu0 0
      %1604 = vmatprep.subr.bf16.mxu0 0
      %1605 = vmatpush1.bf16.msra.mxu0 %v1577
      %1606 = vmatprep.subr.bf16.mxu0 0
      %1607 = vmatpush1.bf16.msra.mxu0 %v1576
      %1608 = vmatprep.subr.bf16.mxu0 0
      %1609 = vmatpush2.bf16.msra.mxu0 0
      %1610 = vmatprep.subr.bf16.mxu0 0
      %1611 = vmatpush2.bf16.msra.mxu0 0
      %1612 = vmatprep.subr.bf16.mxu0 0
      %1613 = vmatpush2.bf16.msra.mxu0 0
      %1614 = vmatprep.subr.bf16.mxu0 0
      %1615 = vmatpush2.bf16.msra.mxu0 0
      %1616 = vmatprep.subr.bf16.mxu0 0
      %1617 = vmatpush2.bf16.msra.mxu0 0
      %1618 = vmatprep.subr.bf16.mxu0 0
      %1619 = vmatpush2.bf16.msra.mxu0 0
      %1620 = vmatprep.subr.bf16.mxu0 0
      %1621 = vmatpush2.bf16.msra.mxu0 0
      %1622 = vmatprep.subr.bf16.mxu0 0
      %1623 = vmatpush2.bf16.msra.mxu0 0
      %1624 = vmatprep.mubr.bf16.mxu0 0
      %1625 = vmatmul.mubr.bf16.gmra.mxu0 %v1581
      %v1626 = vpop.f32.mrf.mxu0
      %v1627 = vadd.f32 0.0, %v1626
      %v1628 = vpop.f32.mrf.mxu0
      %v1629 = vpop.f32.mrf.mxu0
      %v1630 = vadd.f32 0.0, %v1629
      %v1631 = vpop.f32.mrf.mxu0
      %1632 = vmatprep.mubr.bf16.mxu0 0
      %1633 = vmatmul.mubr.bf16.gmra.mxu0 %v1584
      %v1634 = vpop.f32.mrf.mxu0
      %v1635 = vadd.f32 0.0, %v1634
      %v1636 = vpop.f32.mrf.mxu0
      %v1637 = vpop.f32.mrf.mxu0
      %v1638 = vadd.f32 0.0, %v1637
      %v1639 = vpop.f32.mrf.mxu0
      %1640 = vmatprep.mubr.bf16.mxu0 0
      %1641 = vmatmul.mubr.bf16.gmra.mxu0 %v1587
      %v1642 = vpop.f32.mrf.mxu0
      %v1643 = vadd.f32 0.0, %v1642
      %v1644 = vpop.f32.mrf.mxu0
      %v1645 = vpop.f32.mrf.mxu0
      %v1646 = vadd.f32 0.0, %v1645
      %v1647 = vpop.f32.mrf.mxu0
      %1648 = vmatprep.mubr.bf16.mxu0 0
      %1649 = vmatmul.mubr.bf16.gmra.mxu0 %v1590
      %v1650 = vpop.f32.mrf.mxu0
      %v1651 = vadd.f32 0.0, %v1650
      %v1652 = vpop.f32.mrf.mxu0
      %v1653 = vpop.f32.mrf.mxu0
      %v1654 = vadd.f32 0.0, %v1653
      %v1655 = vpop.f32.mrf.mxu0
      %1656 = vdwg.mxu0
      %v1661 = vunpack.c.l.b16 %v1555
      %v1662 = vunpack.c.l.b16 %v1556
      %v1663 = vunpack.c.l.b16 %v1557
      %v1664 = vunpack.c.l.b16 %v1558
      %v1665 = vpack.c.b16 %v1662, %v1661
      %v1666 = vpack.c.b16 %v1664, %v1663
      %v1670 = vsel %vm1399, %v1551, 0
      %v1673 = vsel %vm1399, %v1552, 0
      %v1676 = vsel %vm1399, %v1553, 0
      %v1679 = vsel %vm1399, %v1554, 0
      %1681 = vmatprep.subr.bf16.mxu0 0
      %1682 = vmatpush1.bf16.msra.mxu0 0
      %1683 = vmatprep.subr.bf16.mxu0 0
      %1684 = vmatpush1.bf16.msra.mxu0 0
      %1685 = vmatprep.subr.bf16.mxu0 0
      %1686 = vmatpush1.bf16.msra.mxu0 0
      %1687 = vmatprep.subr.bf16.mxu0 0
      %1688 = vmatpush1.bf16.msra.mxu0 0
      %1689 = vmatprep.subr.bf16.mxu0 0
      %1690 = vmatpush1.bf16.msra.mxu0 0
      %1691 = vmatprep.subr.bf16.mxu0 0
      %1692 = vmatpush1.bf16.msra.mxu0 0
      %1693 = vmatprep.subr.bf16.mxu0 0
      %1694 = vmatpush1.bf16.msra.mxu0 %v1666
      %1695 = vmatprep.subr.bf16.mxu0 0
      %1696 = vmatpush1.bf16.msra.mxu0 %v1665
      %1697 = vmatprep.subr.bf16.mxu0 0
      %1698 = vmatpush2.bf16.msra.mxu0 0
      %1699 = vmatprep.subr.bf16.mxu0 0
      %1700 = vmatpush2.bf16.msra.mxu0 0
      %1701 = vmatprep.subr.bf16.mxu0 0
      %1702 = vmatpush2.bf16.msra.mxu0 0
      %1703 = vmatprep.subr.bf16.mxu0 0
      %1704 = vmatpush2.bf16.msra.mxu0 0
      %1705 = vmatprep.subr.bf16.mxu0 0
      %1706 = vmatpush2.bf16.msra.mxu0 0
      %1707 = vmatprep.subr.bf16.mxu0 0
      %1708 = vmatpush2.bf16.msra.mxu0 0
      %1709 = vmatprep.subr.bf16.mxu0 0
      %1710 = vmatpush2.bf16.msra.mxu0 0
      %1711 = vmatprep.subr.bf16.mxu0 0
      %1712 = vmatpush2.bf16.msra.mxu0 0
      %1713 = vmatprep.mubr.bf16.mxu0 0
      %1714 = vmatmul.mubr.bf16.gmra.mxu0 %v1670
      %v1715 = vpop.f32.mrf.mxu0
      %v1716 = vadd.f32 %v1627, %v1715
      %v1717 = vpop.f32.mrf.mxu0
      %v1718 = vpop.f32.mrf.mxu0
      %v1719 = vadd.f32 %v1630, %v1718
      %v1720 = vpop.f32.mrf.mxu0
      %1721 = vmatprep.mubr.bf16.mxu0 0
      %1722 = vmatmul.mubr.bf16.gmra.mxu0 %v1673
      %v1723 = vpop.f32.mrf.mxu0
      %v1724 = vadd.f32 %v1635, %v1723
      %v1725 = vpop.f32.mrf.mxu0
      %v1726 = vpop.f32.mrf.mxu0
      %v1727 = vadd.f32 %v1638, %v1726
      %v1728 = vpop.f32.mrf.mxu0
      %1729 = vmatprep.mubr.bf16.mxu0 0
      %1730 = vmatmul.mubr.bf16.gmra.mxu0 %v1676
      %v1731 = vpop.f32.mrf.mxu0
      %v1732 = vadd.f32 %v1643, %v1731
      %v1733 = vpop.f32.mrf.mxu0
      %v1734 = vpop.f32.mrf.mxu0
      %v1735 = vadd.f32 %v1646, %v1734
      %v1736 = vpop.f32.mrf.mxu0
      %1737 = vmatprep.mubr.bf16.mxu0 0
      %1738 = vmatmul.mubr.bf16.gmra.mxu0 %v1679
      %v1739 = vpop.f32.mrf.mxu0
      %v1740 = vadd.f32 %v1651, %v1739
      %v1741 = vpop.f32.mrf.mxu0
      %v1742 = vpop.f32.mrf.mxu0
      %v1743 = vadd.f32 %v1654, %v1742
      %v1744 = vpop.f32.mrf.mxu0
      %1745 = vdwg.mxu0
      %v1746 = vpack.c.bf16 %v1544, %v1543
      %v1747 = vpack.c.bf16 %v1546, %v1545
      %v1748 = vpack.c.bf16 %v1548, %v1547
      %v1749 = vpack.c.bf16 %v1550, %v1549
      %s1750 = scalar_lea.vmem %s3, 32
      %v1751 = vld [vmem:[%s1750] sm:$0xf]
      %v1752 = vld [vmem:[%s1750 + $0x4] sm:$0xf]
      %v1753 = vld [vmem:[%s1750 + $0x8] sm:$0xf]
      %v1754 = vld [vmem:[%s1750 + $0xc] sm:$0xf]
      %v1759 = vunpack.c.l.b16 %v1751
      %v1760 = vunpack.c.l.b16 %v1752
      %v1761 = vunpack.c.l.b16 %v1753
      %v1762 = vunpack.c.l.b16 %v1754
      %v1763 = vpack.c.b16 %v1760, %v1759
      %v1764 = vpack.c.b16 %v1762, %v1761
      %v1768 = vsel %vm1399, %v1746, 0
      %v1771 = vsel %vm1399, %v1747, 0
      %v1774 = vsel %vm1399, %v1748, 0
      %v1777 = vsel %vm1399, %v1749, 0
      %1779 = vmatprep.subr.bf16.mxu0 0
      %1780 = vmatpush1.bf16.msra.mxu0 0
      %1781 = vmatprep.subr.bf16.mxu0 0
      %1782 = vmatpush1.bf16.msra.mxu0 0
      %1783 = vmatprep.subr.bf16.mxu0 0
      %1784 = vmatpush1.bf16.msra.mxu0 0
      %1785 = vmatprep.subr.bf16.mxu0 0
      %1786 = vmatpush1.bf16.msra.mxu0 0
      %1787 = vmatprep.subr.bf16.mxu0 0
      %1788 = vmatpush1.bf16.msra.mxu0 0
      %1789 = vmatprep.subr.bf16.mxu0 0
      %1790 = vmatpush1.bf16.msra.mxu0 0
      %1791 = vmatprep.subr.bf16.mxu0 0
      %1792 = vmatpush1.bf16.msra.mxu0 %v1764
      %1793 = vmatprep.subr.bf16.mxu0 0
      %1794 = vmatpush1.bf16.msra.mxu0 %v1763
      %1795 = vmatprep.subr.bf16.mxu0 0
      %1796 = vmatpush2.bf16.msra.mxu0 0
      %1797 = vmatprep.subr.bf16.mxu0 0
      %1798 = vmatpush2.bf16.msra.mxu0 0
      %1799 = vmatprep.subr.bf16.mxu0 0
      %1800 = vmatpush2.bf16.msra.mxu0 0
      %1801 = vmatprep.subr.bf16.mxu0 0
      %1802 = vmatpush2.bf16.msra.mxu0 0
      %1803 = vmatprep.subr.bf16.mxu0 0
      %1804 = vmatpush2.bf16.msra.mxu0 0
      %1805 = vmatprep.subr.bf16.mxu0 0
      %1806 = vmatpush2.bf16.msra.mxu0 0
      %1807 = vmatprep.subr.bf16.mxu0 0
      %1808 = vmatpush2.bf16.msra.mxu0 0
      %1809 = vmatprep.subr.bf16.mxu0 0
      %1810 = vmatpush2.bf16.msra.mxu0 0
      %1811 = vmatprep.mubr.bf16.mxu0 0
      %1812 = vmatmul.mubr.bf16.gmra.mxu0 %v1768
      %v1813 = vpop.f32.mrf.mxu0
      %v1814 = vadd.f32 0.0, %v1813
      %v1815 = vpop.f32.mrf.mxu0
      %v1816 = vpop.f32.mrf.mxu0
      %v1817 = vadd.f32 0.0, %v1816
      %v1818 = vpop.f32.mrf.mxu0
      %1819 = vmatprep.mubr.bf16.mxu0 0
      %1820 = vmatmul.mubr.bf16.gmra.mxu0 %v1771
      %v1821 = vpop.f32.mrf.mxu0
      %v1822 = vadd.f32 0.0, %v1821
      %v1823 = vpop.f32.mrf.mxu0
      %v1824 = vpop.f32.mrf.mxu0
      %v1825 = vadd.f32 0.0, %v1824
      %v1826 = vpop.f32.mrf.mxu0
      %1827 = vmatprep.mubr.bf16.mxu0 0
      %1828 = vmatmul.mubr.bf16.gmra.mxu0 %v1774
      %v1829 = vpop.f32.mrf.mxu0
      %v1830 = vadd.f32 0.0, %v1829
      %v1831 = vpop.f32.mrf.mxu0
      %v1832 = vpop.f32.mrf.mxu0
      %v1833 = vadd.f32 0.0, %v1832
      %v1834 = vpop.f32.mrf.mxu0
      %1835 = vmatprep.mubr.bf16.mxu0 0
      %1836 = vmatmul.mubr.bf16.gmra.mxu0 %v1777
      %v1837 = vpop.f32.mrf.mxu0
      %v1838 = vadd.f32 0.0, %v1837
      %v1839 = vpop.f32.mrf.mxu0
      %v1840 = vpop.f32.mrf.mxu0
      %v1841 = vadd.f32 0.0, %v1840
      %v1842 = vpop.f32.mrf.mxu0
      %1843 = vdwg.mxu0
      %v1844 = vadd.f32 %v1716, %v1814
      %v1845 = vadd.f32 %v1719, %v1817
      %v1846 = vadd.f32 %v1724, %v1822
      %v1847 = vadd.f32 %v1727, %v1825
      %v1848 = vadd.f32 %v1732, %v1830
      %v1849 = vadd.f32 %v1735, %v1833
      %v1850 = vadd.f32 %v1740, %v1838
      %v1851 = vadd.f32 %v1743, %v1841
      %v1852 = vld [vmem:[%s4] sm:$0x1]
      %v1854 = vlaneseq
      %v1855 = vshrl.u32 %v1854, 7
      %v1856 = vsub.s32 0, %v1855
      %v1857 = vrot.slane %v1852, %v1856
      %v1859 = vadd.f32 %v1844, %v1857
      %v1860 = vadd.f32 %v1845, %v1857
      %v1861 = vadd.f32 %v1846, %v1857
      %v1862 = vadd.f32 %v1847, %v1857
      %v1863 = vadd.f32 %v1848, %v1857
      %v1864 = vadd.f32 %v1849, %v1857
      %v1865 = vadd.f32 %v1850, %v1857
      %v1866 = vadd.f32 %v1851, %v1857
      %v1867 = vmax.f32 %v1859, 0.0
      %v1868 = vmax.f32 %v1860, 0.0
      %v1869 = vmax.f32 %v1861, 0.0
      %v1870 = vmax.f32 %v1862, 0.0
      %v1871 = vmax.f32 %v1863, 0.0
      %v1872 = vmax.f32 %v1864, 0.0
      %v1873 = vmax.f32 %v1865, 0.0
      %v1874 = vmax.f32 %v1866, 0.0
      %v1875 = vrot.slane %v1867, 7
      %v1876 = vrot.slane %v1868, 7
      %v1877 = vrot.slane %v1869, 7
      %v1878 = vrot.slane %v1870, 7
      %v1879 = vrot.slane %v1871, 7
      %v1880 = vrot.slane %v1872, 7
      %v1881 = vrot.slane %v1873, 7
      %v1882 = vrot.slane %v1874, 7
      %v1883 = vsel %vm784, %v1881, %v1882
      %v1884 = vsel %vm784, %v1880, %v1881
      %v1885 = vsel %vm784, %v1879, %v1880
      %v1886 = vsel %vm784, %v1878, %v1879
      %v1887 = vsel %vm784, %v1877, %v1878
      %v1888 = vsel %vm784, %v1876, %v1877
      %v1889 = vsel %vm784, %v1875, %v1876
      %v1890 = vsel %vm784, %v1882, %v1875
      %v1891 = vsel %vm1495, 0.0, %v1890
      %v1892 = vsel %vm1496, 0.0, %v1889
      %v1893 = vsel %vm1497, 0.0, %v1888
      %v1894 = vsel %vm1498, 0.0, %v1887
      %v1895 = vsel %vm1499, 0.0, %v1886
      %v1896 = vsel %vm1500, 0.0, %v1885
      %v1897 = vsel %vm1501, 0.0, %v1884
      %v1898 = vsel %vm1502, 0.0, %v1883
      %v1899 = vrot.slane %v1867, 1
      %v1900 = vrot.slane %v1868, 1
      %v1901 = vrot.slane %v1869, 1
      %v1902 = vrot.slane %v1870, 1
      %v1903 = vrot.slane %v1871, 1
      %v1904 = vrot.slane %v1872, 1
      %v1905 = vrot.slane %v1873, 1
      %v1906 = vrot.slane %v1874, 1
      %v1907 = vsel %vm865, %v1905, %v1906
      %v1908 = vsel %vm865, %v1904, %v1905
      %v1909 = vsel %vm865, %v1903, %v1904
      %v1910 = vsel %vm865, %v1902, %v1903
      %v1911 = vsel %vm865, %v1901, %v1902
      %v1912 = vsel %vm865, %v1900, %v1901
      %v1913 = vsel %vm865, %v1899, %v1900
      %v1914 = vsel %vm865, %v1906, %v1899
      %v1915 = vsel %vm1535, 0.0, %v1913
      %v1916 = vsel %vm1536, 0.0, %v1912
      %v1917 = vsel %vm1537, 0.0, %v1911
      %v1918 = vsel %vm1538, 0.0, %v1910
      %v1919 = vsel %vm1539, 0.0, %v1909
      %v1920 = vsel %vm1540, 0.0, %v1908
      %v1921 = vsel %vm1541, 0.0, %v1907
      %v1922 = vsel %vm1542, 0.0, %v1914
      %v1923 = vpack.c.bf16 %v1892, %v1891
      %v1924 = vpack.c.bf16 %v1894, %v1893
      %v1925 = vpack.c.bf16 %v1896, %v1895
      %v1926 = vpack.c.bf16 %v1898, %v1897
      %v1927 = vld [vmem:[%s5] sm:$0xf]
      %v1928 = vld [vmem:[%s5 + $0x4] sm:$0xf]
      %v1929 = vld [vmem:[%s5 + $0x8] sm:$0xf]
      %v1930 = vld [vmem:[%s5 + $0xc] sm:$0xf]
      %v1931 = vld [vmem:[%s5 + $0x10] sm:$0xf]
      %v1932 = vld [vmem:[%s5 + $0x14] sm:$0xf]
      %v1933 = vld [vmem:[%s5 + $0x18] sm:$0xf]
      %v1934 = vld [vmem:[%s5 + $0x1c] sm:$0xf]
      %v1935 = vpack.c.bf16 %v1868, %v1867
      %v1936 = vpack.c.bf16 %v1870, %v1869
      %v1937 = vpack.c.bf16 %v1872, %v1871
      %v1938 = vpack.c.bf16 %v1874, %v1873
      %s1939 = scalar_lea.vmem %s5, 32
      %v1940 = vld [vmem:[%s1939] sm:$0xf]
      %v1941 = vld [vmem:[%s1939 + $0x4] sm:$0xf]
      %v1942 = vld [vmem:[%s1939 + $0x8] sm:$0xf]
      %v1943 = vld [vmem:[%s1939 + $0xc] sm:$0xf]
      %v1944 = vld [vmem:[%s1939 + $0x10] sm:$0xf]
      %v1945 = vld [vmem:[%s1939 + $0x14] sm:$0xf]
      %v1946 = vld [vmem:[%s1939 + $0x18] sm:$0xf]
      %v1947 = vld [vmem:[%s1939 + $0x1c] sm:$0xf]
      %v1956 = vunpack.c.l.b16 %v1940
      %v1957 = vunpack.c.l.b16 %v1941
      %v1958 = vunpack.c.l.b16 %v1942
      %v1959 = vunpack.c.l.b16 %v1943
      %v1960 = vunpack.c.l.b16 %v1944
      %v1961 = vunpack.c.l.b16 %v1945
      %v1962 = vunpack.c.l.b16 %v1946
      %v1963 = vunpack.c.l.b16 %v1947
      %v1964 = vpack.c.b16 %v1957, %v1956
      %v1965 = vpack.c.b16 %v1959, %v1958
      %v1966 = vpack.c.b16 %v1961, %v1960
      %v1967 = vpack.c.b16 %v1963, %v1962
      %vm1972 = vcmask 523264
      %v1974 = vsel %vm1972, %v1935, 0
      %v1977 = vsel %vm1972, %v1936, 0
      %v1980 = vsel %vm1972, %v1937, 0
      %v1983 = vsel %vm1972, %v1938, 0
      %1985 = vmatprep.subr.bf16.mxu0 0
      %1986 = vmatpush1.bf16.msra.mxu0 0
      %1987 = vmatprep.subr.bf16.mxu0 0
      %1988 = vmatpush1.bf16.msra.mxu0 0
      %1989 = vmatprep.subr.bf16.mxu0 0
      %1990 = vmatpush1.bf16.msra.mxu0 0
      %1991 = vmatprep.subr.bf16.mxu0 0
      %1992 = vmatpush1.bf16.msra.mxu0 0
      %1993 = vmatprep.subr.bf16.mxu0 0
      %1994 = vmatpush1.bf16.msra.mxu0 %v1967
      %1995 = vmatprep.subr.bf16.mxu0 0
      %1996 = vmatpush1.bf16.msra.mxu0 %v1966
      %1997 = vmatprep.subr.bf16.mxu0 0
      %1998 = vmatpush1.bf16.msra.mxu0 %v1965
      %1999 = vmatprep.subr.bf16.mxu0 0
      %2000 = vmatpush1.bf16.msra.mxu0 %v1964
      %2001 = vmatprep.subr.bf16.mxu0 0
      %2002 = vmatpush2.bf16.msra.mxu0 0
      %2003 = vmatprep.subr.bf16.mxu0 0
      %2004 = vmatpush2.bf16.msra.mxu0 0
      %2005 = vmatprep.subr.bf16.mxu0 0
      %2006 = vmatpush2.bf16.msra.mxu0 0
      %2007 = vmatprep.subr.bf16.mxu0 0
      %2008 = vmatpush2.bf16.msra.mxu0 0
      %2009 = vmatprep.subr.bf16.mxu0 0
      %2010 = vmatpush2.bf16.msra.mxu0 0
      %2011 = vmatprep.subr.bf16.mxu0 0
      %2012 = vmatpush2.bf16.msra.mxu0 0
      %2013 = vmatprep.subr.bf16.mxu0 0
      %2014 = vmatpush2.bf16.msra.mxu0 0
      %2015 = vmatprep.subr.bf16.mxu0 0
      %2016 = vmatpush2.bf16.msra.mxu0 0
      %2017 = vmatprep.mubr.bf16.mxu0 0
      %2018 = vmatmul.mubr.bf16.gmra.mxu0 %v1974
      %v2019 = vpop.f32.mrf.mxu0
      %v2020 = vadd.f32 0.0, %v2019
      %v2021 = vpop.f32.mrf.mxu0
      %v2022 = vpop.f32.mrf.mxu0
      %v2023 = vadd.f32 0.0, %v2022
      %v2024 = vpop.f32.mrf.mxu0
      %2025 = vmatprep.mubr.bf16.mxu0 0
      %2026 = vmatmul.mubr.bf16.gmra.mxu0 %v1977
      %v2027 = vpop.f32.mrf.mxu0
      %v2028 = vadd.f32 0.0, %v2027
      %v2029 = vpop.f32.mrf.mxu0
      %v2030 = vpop.f32.mrf.mxu0
      %v2031 = vadd.f32 0.0, %v2030
      %v2032 = vpop.f32.mrf.mxu0
      %2033 = vmatprep.mubr.bf16.mxu0 0
      %2034 = vmatmul.mubr.bf16.gmra.mxu0 %v1980
      %v2035 = vpop.f32.mrf.mxu0
      %v2036 = vadd.f32 0.0, %v2035
      %v2037 = vpop.f32.mrf.mxu0
      %v2038 = vpop.f32.mrf.mxu0
      %v2039 = vadd.f32 0.0, %v2038
      %v2040 = vpop.f32.mrf.mxu0
      %2041 = vmatprep.mubr.bf16.mxu0 0
      %2042 = vmatmul.mubr.bf16.gmra.mxu0 %v1983
      %v2043 = vpop.f32.mrf.mxu0
      %v2044 = vadd.f32 0.0, %v2043
      %v2045 = vpop.f32.mrf.mxu0
      %v2046 = vpop.f32.mrf.mxu0
      %v2047 = vadd.f32 0.0, %v2046
      %v2048 = vpop.f32.mrf.mxu0
      %2049 = vdwg.mxu0
      %v2058 = vunpack.c.l.b16 %v1927
      %v2059 = vunpack.c.l.b16 %v1928
      %v2060 = vunpack.c.l.b16 %v1929
      %v2061 = vunpack.c.l.b16 %v1930
      %v2062 = vunpack.c.l.b16 %v1931
      %v2063 = vunpack.c.l.b16 %v1932
      %v2064 = vunpack.c.l.b16 %v1933
      %v2065 = vunpack.c.l.b16 %v1934
      %v2066 = vpack.c.b16 %v2059, %v2058
      %v2067 = vpack.c.b16 %v2061, %v2060
      %v2068 = vpack.c.b16 %v2063, %v2062
      %v2069 = vpack.c.b16 %v2065, %v2064
      %v2075 = vsel %vm1972, %v1923, 0
      %v2078 = vsel %vm1972, %v1924, 0
      %v2081 = vsel %vm1972, %v1925, 0
      %v2084 = vsel %vm1972, %v1926, 0
      %2086 = vmatprep.subr.bf16.mxu0 0
      %2087 = vmatpush1.bf16.msra.mxu0 0
      %2088 = vmatprep.subr.bf16.mxu0 0
      %2089 = vmatpush1.bf16.msra.mxu0 0
      %2090 = vmatprep.subr.bf16.mxu0 0
      %2091 = vmatpush1.bf16.msra.mxu0 0
      %2092 = vmatprep.subr.bf16.mxu0 0
      %2093 = vmatpush1.bf16.msra.mxu0 0
      %2094 = vmatprep.subr.bf16.mxu0 0
      %2095 = vmatpush1.bf16.msra.mxu0 %v2069
      %2096 = vmatprep.subr.bf16.mxu0 0
      %2097 = vmatpush1.bf16.msra.mxu0 %v2068
      %2098 = vmatprep.subr.bf16.mxu0 0
      %2099 = vmatpush1.bf16.msra.mxu0 %v2067
      %2100 = vmatprep.subr.bf16.mxu0 0
      %2101 = vmatpush1.bf16.msra.mxu0 %v2066
      %2102 = vmatprep.subr.bf16.mxu0 0
      %2103 = vmatpush2.bf16.msra.mxu0 0
      %2104 = vmatprep.subr.bf16.mxu0 0
      %2105 = vmatpush2.bf16.msra.mxu0 0
      %2106 = vmatprep.subr.bf16.mxu0 0
      %2107 = vmatpush2.bf16.msra.mxu0 0
      %2108 = vmatprep.subr.bf16.mxu0 0
      %2109 = vmatpush2.bf16.msra.mxu0 0
      %2110 = vmatprep.subr.bf16.mxu0 0
      %2111 = vmatpush2.bf16.msra.mxu0 0
      %2112 = vmatprep.subr.bf16.mxu0 0
      %2113 = vmatpush2.bf16.msra.mxu0 0
      %2114 = vmatprep.subr.bf16.mxu0 0
      %2115 = vmatpush2.bf16.msra.mxu0 0
      %2116 = vmatprep.subr.bf16.mxu0 0
      %2117 = vmatpush2.bf16.msra.mxu0 0
      %2118 = vmatprep.mubr.bf16.mxu0 0
      %2119 = vmatmul.mubr.bf16.gmra.mxu0 %v2075
      %v2120 = vpop.f32.mrf.mxu0
      %v2121 = vadd.f32 %v2020, %v2120
      %v2122 = vpop.f32.mrf.mxu0
      %v2123 = vpop.f32.mrf.mxu0
      %v2124 = vadd.f32 %v2023, %v2123
      %v2125 = vpop.f32.mrf.mxu0
      %2126 = vmatprep.mubr.bf16.mxu0 0
      %2127 = vmatmul.mubr.bf16.gmra.mxu0 %v2078
      %v2128 = vpop.f32.mrf.mxu0
      %v2129 = vadd.f32 %v2028, %v2128
      %v2130 = vpop.f32.mrf.mxu0
      %v2131 = vpop.f32.mrf.mxu0
      %v2132 = vadd.f32 %v2031, %v2131
      %v2133 = vpop.f32.mrf.mxu0
      %2134 = vmatprep.mubr.bf16.mxu0 0
      %2135 = vmatmul.mubr.bf16.gmra.mxu0 %v2081
      %v2136 = vpop.f32.mrf.mxu0
      %v2137 = vadd.f32 %v2036, %v2136
      %v2138 = vpop.f32.mrf.mxu0
      %v2139 = vpop.f32.mrf.mxu0
      %v2140 = vadd.f32 %v2039, %v2139
      %v2141 = vpop.f32.mrf.mxu0
      %2142 = vmatprep.mubr.bf16.mxu0 0
      %2143 = vmatmul.mubr.bf16.gmra.mxu0 %v2084
      %v2144 = vpop.f32.mrf.mxu0
      %v2145 = vadd.f32 %v2044, %v2144
      %v2146 = vpop.f32.mrf.mxu0
      %v2147 = vpop.f32.mrf.mxu0
      %v2148 = vadd.f32 %v2047, %v2147
      %v2149 = vpop.f32.mrf.mxu0
      %2150 = vdwg.mxu0
      %v2151 = vpack.c.bf16 %v1916, %v1915
      %v2152 = vpack.c.bf16 %v1918, %v1917
      %v2153 = vpack.c.bf16 %v1920, %v1919
      %v2154 = vpack.c.bf16 %v1922, %v1921
      %s2155 = scalar_lea.vmem %s5, 64
      %v2156 = vld [vmem:[%s2155] sm:$0xf]
      %v2157 = vld [vmem:[%s2155 + $0x4] sm:$0xf]
      %v2158 = vld [vmem:[%s2155 + $0x8] sm:$0xf]
      %v2159 = vld [vmem:[%s2155 + $0xc] sm:$0xf]
      %v2160 = vld [vmem:[%s2155 + $0x10] sm:$0xf]
      %v2161 = vld [vmem:[%s2155 + $0x14] sm:$0xf]
      %v2162 = vld [vmem:[%s2155 + $0x18] sm:$0xf]
      %v2163 = vld [vmem:[%s2155 + $0x1c] sm:$0xf]
      %v2172 = vunpack.c.l.b16 %v2156
      %v2173 = vunpack.c.l.b16 %v2157
      %v2174 = vunpack.c.l.b16 %v2158
      %v2175 = vunpack.c.l.b16 %v2159
      %v2176 = vunpack.c.l.b16 %v2160
      %v2177 = vunpack.c.l.b16 %v2161
      %v2178 = vunpack.c.l.b16 %v2162
      %v2179 = vunpack.c.l.b16 %v2163
      %v2180 = vpack.c.b16 %v2173, %v2172
      %v2181 = vpack.c.b16 %v2175, %v2174
      %v2182 = vpack.c.b16 %v2177, %v2176
      %v2183 = vpack.c.b16 %v2179, %v2178
      %v2189 = vsel %vm1972, %v2151, 0
      %v2192 = vsel %vm1972, %v2152, 0
      %v2195 = vsel %vm1972, %v2153, 0
      %v2198 = vsel %vm1972, %v2154, 0
      %2200 = vmatprep.subr.bf16.mxu0 0
      %2201 = vmatpush1.bf16.msra.mxu0 0
      %2202 = vmatprep.subr.bf16.mxu0 0
      %2203 = vmatpush1.bf16.msra.mxu0 0
      %2204 = vmatprep.subr.bf16.mxu0 0
      %2205 = vmatpush1.bf16.msra.mxu0 0
      %2206 = vmatprep.subr.bf16.mxu0 0
      %2207 = vmatpush1.bf16.msra.mxu0 0
      %2208 = vmatprep.subr.bf16.mxu0 0
      %2209 = vmatpush1.bf16.msra.mxu0 %v2183
      %2210 = vmatprep.subr.bf16.mxu0 0
      %2211 = vmatpush1.bf16.msra.mxu0 %v2182
      %2212 = vmatprep.subr.bf16.mxu0 0
      %2213 = vmatpush1.bf16.msra.mxu0 %v2181
      %2214 = vmatprep.subr.bf16.mxu0 0
      %2215 = vmatpush1.bf16.msra.mxu0 %v2180
      %2216 = vmatprep.subr.bf16.mxu0 0
      %2217 = vmatpush2.bf16.msra.mxu0 0
      %2218 = vmatprep.subr.bf16.mxu0 0
      %2219 = vmatpush2.bf16.msra.mxu0 0
      %2220 = vmatprep.subr.bf16.mxu0 0
      %2221 = vmatpush2.bf16.msra.mxu0 0
      %2222 = vmatprep.subr.bf16.mxu0 0
      %2223 = vmatpush2.bf16.msra.mxu0 0
      %2224 = vmatprep.subr.bf16.mxu0 0
      %2225 = vmatpush2.bf16.msra.mxu0 0
      %2226 = vmatprep.subr.bf16.mxu0 0
      %2227 = vmatpush2.bf16.msra.mxu0 0
      %2228 = vmatprep.subr.bf16.mxu0 0
      %2229 = vmatpush2.bf16.msra.mxu0 0
      %2230 = vmatprep.subr.bf16.mxu0 0
      %2231 = vmatpush2.bf16.msra.mxu0 0
      %2232 = vmatprep.mubr.bf16.mxu0 0
      %2233 = vmatmul.mubr.bf16.gmra.mxu0 %v2189
      %v2234 = vpop.f32.mrf.mxu0
      %v2235 = vadd.f32 0.0, %v2234
      %v2236 = vpop.f32.mrf.mxu0
      %v2237 = vpop.f32.mrf.mxu0
      %v2238 = vadd.f32 0.0, %v2237
      %v2239 = vpop.f32.mrf.mxu0
      %2240 = vmatprep.mubr.bf16.mxu0 0
      %2241 = vmatmul.mubr.bf16.gmra.mxu0 %v2192
      %v2242 = vpop.f32.mrf.mxu0
      %v2243 = vadd.f32 0.0, %v2242
      %v2244 = vpop.f32.mrf.mxu0
      %v2245 = vpop.f32.mrf.mxu0
      %v2246 = vadd.f32 0.0, %v2245
      %v2247 = vpop.f32.mrf.mxu0
      %2248 = vmatprep.mubr.bf16.mxu0 0
      %2249 = vmatmul.mubr.bf16.gmra.mxu0 %v2195
      %v2250 = vpop.f32.mrf.mxu0
      %v2251 = vadd.f32 0.0, %v2250
      %v2252 = vpop.f32.mrf.mxu0
      %v2253 = vpop.f32.mrf.mxu0
      %v2254 = vadd.f32 0.0, %v2253
      %v2255 = vpop.f32.mrf.mxu0
      %2256 = vmatprep.mubr.bf16.mxu0 0
      %2257 = vmatmul.mubr.bf16.gmra.mxu0 %v2198
      %v2258 = vpop.f32.mrf.mxu0
      %v2259 = vadd.f32 0.0, %v2258
      %v2260 = vpop.f32.mrf.mxu0
      %v2261 = vpop.f32.mrf.mxu0
      %v2262 = vadd.f32 0.0, %v2261
      %v2263 = vpop.f32.mrf.mxu0
      %2264 = vdwg.mxu0
      %v2265 = vadd.f32 %v2121, %v2235
      %v2266 = vadd.f32 %v2124, %v2238
      %v2267 = vadd.f32 %v2129, %v2243
      %v2268 = vadd.f32 %v2132, %v2246
      %v2269 = vadd.f32 %v2137, %v2251
      %v2270 = vadd.f32 %v2140, %v2254
      %v2271 = vadd.f32 %v2145, %v2259
      %v2272 = vadd.f32 %v2148, %v2262
      %v2273 = vld [vmem:[%s6] sm:$0x1]
      %v2275 = vlaneseq
      %v2276 = vshrl.u32 %v2275, 7
      %v2277 = vsub.s32 0, %v2276
      %v2278 = vrot.slane %v2273, %v2277
      %v2280 = vadd.f32 %v2265, %v2278
      %v2281 = vadd.f32 %v2266, %v2278
      %v2282 = vadd.f32 %v2267, %v2278
      %v2283 = vadd.f32 %v2268, %v2278
      %v2284 = vadd.f32 %v2269, %v2278
      %v2285 = vadd.f32 %v2270, %v2278
      %v2286 = vadd.f32 %v2271, %v2278
      %v2287 = vadd.f32 %v2272, %v2278
      %v2288 = vmax.f32 %v2280, 0.0
      %v2289 = vmax.f32 %v2281, 0.0
      %v2290 = vmax.f32 %v2282, 0.0
      %v2291 = vmax.f32 %v2283, 0.0
      %v2292 = vmax.f32 %v2284, 0.0
      %v2293 = vmax.f32 %v2285, 0.0
      %v2294 = vmax.f32 %v2286, 0.0
      %v2295 = vmax.f32 %v2287, 0.0
      %v2296 = vpack.c.bf16 %v2289, %v2288
      %v2297 = vpack.c.bf16 %v2291, %v2290
      %v2298 = vpack.c.bf16 %v2293, %v2292
      %v2299 = vpack.c.bf16 %v2295, %v2294
      %v2300 = vld [vmem:[%s7] sm:$0xf]
      %v2301 = vld [vmem:[%s7 + $0x4] sm:$0xf]
      %v2302 = vld [vmem:[%s7 + $0x8] sm:$0xf]
      %v2303 = vld [vmem:[%s7 + $0xc] sm:$0xf]
      %v2304 = vld [vmem:[%s7 + $0x10] sm:$0xf]
      %v2305 = vld [vmem:[%s7 + $0x14] sm:$0xf]
      %v2306 = vld [vmem:[%s7 + $0x18] sm:$0xf]
      %v2307 = vld [vmem:[%s7 + $0x1c] sm:$0xf]
      %v2308 = vld [vmem:[%s7 + $0x20] sm:$0xf]
      %v2309 = vld [vmem:[%s7 + $0x24] sm:$0xf]
      %v2310 = vld [vmem:[%s7 + $0x28] sm:$0xf]
      %v2311 = vld [vmem:[%s7 + $0x2c] sm:$0xf]
      %v2312 = vld [vmem:[%s7 + $0x30] sm:$0xf]
      %v2313 = vld [vmem:[%s7 + $0x34] sm:$0xf]
      %v2314 = vld [vmem:[%s7 + $0x38] sm:$0xf]
      %v2315 = vld [vmem:[%s7 + $0x3c] sm:$0xf]
      %v2316 = vld [vmem:[%s9] sm:$0x1]
      %v2318 = vlaneseq
      %v2319 = vshrl.u32 %v2318, 7
      %v2320 = vsub.s32 0, %v2319
      %v2321 = vrot.slane %v2316, %v2320
      %v2339 = vunpack.c.l.b16 %v2300
      %v2340 = vunpack.c.l.b16 %v2301
      %v2341 = vunpack.c.l.b16 %v2302
      %v2342 = vunpack.c.l.b16 %v2303
      %v2343 = vunpack.c.l.b16 %v2304
      %v2344 = vunpack.c.l.b16 %v2305
      %v2345 = vunpack.c.l.b16 %v2306
      %v2346 = vunpack.c.l.b16 %v2307
      %v2347 = vunpack.c.l.b16 %v2308
      %v2348 = vunpack.c.l.b16 %v2309
      %v2349 = vunpack.c.l.b16 %v2310
      %v2350 = vunpack.c.l.b16 %v2311
      %v2351 = vunpack.c.l.b16 %v2312
      %v2352 = vunpack.c.l.b16 %v2313
      %v2353 = vunpack.c.l.b16 %v2314
      %v2354 = vunpack.c.l.b16 %v2315
      %v2355 = vpack.c.b16 %v2340, %v2339
      %v2356 = vpack.c.b16 %v2342, %v2341
      %v2357 = vpack.c.b16 %v2344, %v2343
      %v2358 = vpack.c.b16 %v2346, %v2345
      %v2359 = vpack.c.b16 %v2348, %v2347
      %v2360 = vpack.c.b16 %v2350, %v2349
      %v2361 = vpack.c.b16 %v2352, %v2351
      %v2362 = vpack.c.b16 %v2354, %v2353
      %2371 = vmatprep.subr.bf16.mxu0 0
      %2372 = vmatpush1.bf16.msra.mxu0 %v2362
      %2373 = vmatprep.subr.bf16.mxu0 0
      %2374 = vmatpush1.bf16.msra.mxu0 %v2361
      %2375 = vmatprep.subr.bf16.mxu0 0
      %2376 = vmatpush1.bf16.msra.mxu0 %v2360
      %2377 = vmatprep.subr.bf16.mxu0 0
      %2378 = vmatpush1.bf16.msra.mxu0 %v2359
      %2379 = vmatprep.subr.bf16.mxu0 0
      %2380 = vmatpush1.bf16.msra.mxu0 %v2358
      %2381 = vmatprep.subr.bf16.mxu0 0
      %2382 = vmatpush1.bf16.msra.mxu0 %v2357
      %2383 = vmatprep.subr.bf16.mxu0 0
      %2384 = vmatpush1.bf16.msra.mxu0 %v2356
      %2385 = vmatprep.subr.bf16.mxu0 0
      %2386 = vmatpush1.bf16.msra.mxu0 %v2355
      %2387 = vmatprep.subr.bf16.mxu0 0
      %2388 = vmatpush2.bf16.msra.mxu0 0
      %2389 = vmatprep.subr.bf16.mxu0 0
      %2390 = vmatpush2.bf16.msra.mxu0 0
      %2391 = vmatprep.subr.bf16.mxu0 0
      %2392 = vmatpush2.bf16.msra.mxu0 0
      %2393 = vmatprep.subr.bf16.mxu0 0
      %2394 = vmatpush2.bf16.msra.mxu0 0
      %2395 = vmatprep.subr.bf16.mxu0 0
      %2396 = vmatpush2.bf16.msra.mxu0 0
      %2397 = vmatprep.subr.bf16.mxu0 0
      %2398 = vmatpush2.bf16.msra.mxu0 0
      %2399 = vmatprep.subr.bf16.mxu0 0
      %2400 = vmatpush2.bf16.msra.mxu0 0
      %2401 = vmatprep.subr.bf16.mxu0 0
      %2402 = vmatpush2.bf16.msra.mxu0 0
      %2403 = vmatprep.mubr.bf16.mxu0 0
      %2404 = vmatmul.mubr.bf16.gmra.mxu0 %v2296
      %v2405 = vpop.f32.mrf.mxu0
      %v2406 = vadd.f32 %v2321, %v2405
      %v2407 = vpop.f32.mrf.mxu0
      %v2408 = vpop.f32.mrf.mxu0
      %v2409 = vadd.f32 %v2321, %v2408
      %v2410 = vpop.f32.mrf.mxu0
      %2411 = vmatprep.mubr.bf16.mxu0 0
      %2412 = vmatmul.mubr.bf16.gmra.mxu0 %v2297
      %v2413 = vpop.f32.mrf.mxu0
      %v2414 = vadd.f32 %v2321, %v2413
      %v2415 = vpop.f32.mrf.mxu0
      %v2416 = vpop.f32.mrf.mxu0
      %v2417 = vadd.f32 %v2321, %v2416
      %v2418 = vpop.f32.mrf.mxu0
      %2419 = vmatprep.mubr.bf16.mxu0 0
      %2420 = vmatmul.mubr.bf16.gmra.mxu0 %v2298
      %v2421 = vpop.f32.mrf.mxu0
      %v2422 = vadd.f32 %v2321, %v2421
      %v2423 = vpop.f32.mrf.mxu0
      %v2424 = vpop.f32.mrf.mxu0
      %v2425 = vadd.f32 %v2321, %v2424
      %v2426 = vpop.f32.mrf.mxu0
      %2427 = vmatprep.mubr.bf16.mxu0 0
      %2428 = vmatmul.mubr.bf16.gmra.mxu0 %v2299
      %v2429 = vpop.f32.mrf.mxu0
      %v2430 = vadd.f32 %v2321, %v2429
      %v2431 = vpop.f32.mrf.mxu0
      %v2432 = vpop.f32.mrf.mxu0
      %v2433 = vadd.f32 %v2321, %v2432
      %v2434 = vpop.f32.mrf.mxu0
      %2435 = vdwg.mxu0
      %2436 = vst [vmem:[#allocation3] sm:$0xff] %v2406
      %2437 = vst [vmem:[#allocation3 + $0x8] sm:$0xff] %v2409
      %2438 = vst [vmem:[#allocation3 + $0x10] sm:$0xff] %v2414
      %2439 = vst [vmem:[#allocation3 + $0x18] sm:$0xff] %v2417
      %2440 = vst [vmem:[#allocation3 + $0x20] sm:$0xff] %v2422
      %2441 = vst [vmem:[#allocation3 + $0x28] sm:$0xff] %v2425
      %2442 = vst [vmem:[#allocation3 + $0x30] sm:$0xff] %v2430
      %2443 = vst [vmem:[#allocation3 + $0x38] sm:$0xff] %v2433
      %v2444 = vld [vmem:[%s8] sm:$0xff]
      %v2445 = vld [vmem:[%s8 + $0x8] sm:$0xff]
      %v2446 = vld [vmem:[%s8 + $0x10] sm:$0xff]
      %v2447 = vld [vmem:[%s8 + $0x18] sm:$0xff]
      %v2448 = vld [vmem:[#allocation3] ss:$8 sm:$0xf]
      %v2449 = vld [vmem:[#allocation3] ss:$8 sm:$0xf0]
      %v2450 = vor.u32 %v2448, %v2449
      %v2452 = vsel %vm1399, 0.0, 0
      %2454 = vmatprep.subr.mxu0 0.0
      %2455 = vmatpush1.msra.mxu0 0.0
      %2456 = vmatprep.subr.mxu0 0.0
      %2457 = vmatpush1.msra.mxu0 0.0
      %2458 = vmatprep.subr.mxu0 0.0
      %2459 = vmatpush1.msra.mxu0 0.0
      %2460 = vmatprep.subr.mxu0 0.0
      %2461 = vmatpush1.msra.mxu0 0.0
      %2462 = vmatprep.subr.mxu0 0.0
      %2463 = vmatpush1.msra.mxu0 0.0
      %2464 = vmatprep.subr.mxu0 0.0
      %2465 = vmatpush1.msra.mxu0 0.0
      %2466 = vmatprep.subr.mxu0 0.0
      %2467 = vmatpush1.msra.mxu0 0.0
      %2468 = vmatprep.subr.mxu0 0.0
      %2469 = vmatpush1.msra.mxu0 0.0
      %2470 = vmatprep.subr.mxu0 0.0
      %2471 = vmatpush1.msra.mxu0 0.0
      %2472 = vmatprep.subr.mxu0 0.0
      %2473 = vmatpush1.msra.mxu0 0.0
      %2474 = vmatprep.subr.mxu0 0.0
      %2475 = vmatpush1.msra.mxu0 0.0
      %2476 = vmatprep.subr.mxu0 0.0
      %2477 = vmatpush1.msra.mxu0 0.0
      %2478 = vmatprep.subr.mxu0 0.0
      %2479 = vmatpush1.msra.mxu0 %v2447
      %2480 = vmatprep.subr.mxu0 0.0
      %2481 = vmatpush1.msra.mxu0 %v2446
      %2482 = vmatprep.subr.mxu0 0.0
      %2483 = vmatpush1.msra.mxu0 %v2445
      %2484 = vmatprep.subr.mxu0 0.0
      %2485 = vmatpush1.msra.mxu0 %v2444
      %2486 = vmatprep.subr.mxu0 0.0
      %2487 = vmatpush2.msra.mxu0 0.0
      %2488 = vmatprep.subr.mxu0 0.0
      %2489 = vmatpush2.msra.mxu0 0.0
      %2490 = vmatprep.subr.mxu0 0.0
      %2491 = vmatpush2.msra.mxu0 0.0
      %2492 = vmatprep.subr.mxu0 0.0
      %2493 = vmatpush2.msra.mxu0 0.0
      %2494 = vmatprep.subr.mxu0 0.0
      %2495 = vmatpush2.msra.mxu0 0.0
      %2496 = vmatprep.subr.mxu0 0.0
      %2497 = vmatpush2.msra.mxu0 0.0
      %2498 = vmatprep.subr.mxu0 0.0
      %2499 = vmatpush2.msra.mxu0 0.0
      %2500 = vmatprep.subr.mxu0 0.0
      %2501 = vmatpush2.msra.mxu0 0.0
      %2502 = vmatprep.subr.mxu0 0.0
      %2503 = vmatpush2.msra.mxu0 0.0
      %2504 = vmatprep.subr.mxu0 0.0
      %2505 = vmatpush2.msra.mxu0 0.0
      %2506 = vmatprep.subr.mxu0 0.0
      %2507 = vmatpush2.msra.mxu0 0.0
      %2508 = vmatprep.subr.mxu0 0.0
      %2509 = vmatpush2.msra.mxu0 0.0
      %2510 = vmatprep.subr.mxu0 0.0
      %2511 = vmatpush2.msra.mxu0 0.0
      %2512 = vmatprep.subr.mxu0 0.0
      %2513 = vmatpush2.msra.mxu0 0.0
      %2514 = vmatprep.subr.mxu0 0.0
      %2515 = vmatpush2.msra.mxu0 0.0
      %2516 = vmatprep.subr.mxu0 0.0
      %2517 = vmatpush2.msra.mxu0 0.0
      %2518 = vmatprep.mubr.f32.mxu0 0.0
      %2519 = vmatmul.mubr.f32.gmra.mxu0 %v2452
      %v2520 = vpop.f32.mrf.mxu0
      %v2521 = vadd.f32 0.0, %v2520
      %v2522 = vpop.f32.mrf.mxu0
      %2523 = vdwg.mxu0
      %v2524 = vadd.f32 %v2450, %v2521
      %v2525 = vxor.u32 %v2524, 2147483648
      %v2526 = vmul.f32 %v2525, 1.442695
      %v2527 = vpow.pop %v2526
      %v2528 = vadd.f32 %v2527, 1.0
      %v2529 = vrcp.pop %v2528
      %v2530 = vmul.f32 1.0, %v2529
      %v2531 = vtanh.pop %v2524
      %v2532 = vmul.f32 %v2530, 0.0
      %2534 = vrot.lane.b32.xlu0 %v2531, 64
      %v2535 = vpop.permute.xlu0 %2534
      %v2537 = vmul.f32 %v2530, %v2535
      %2539 = vrot.lane.b32.xlu0 %v2537, 32
      %v2540 = vpop.permute.xlu0 %2539
      %v2542 = vadd.f32 %v2532, %v2540
      %v2543 = vtanh.pop %v2542
      %2545 = vrot.lane.b32.xlu0 %v2543, 64
      %v2546 = vpop.permute.xlu0 %2545
      %v2548 = vmul.f32 %v2530, %v2546
      %v2549 = vpack.c.bf16 %v2548, %v2548
      %v2550 = vld [vmem:[%s10] sm:$0xf]
      %v2551 = vld [vmem:[%s10 + $0x4] sm:$0xf]
      %v2552 = vld [vmem:[%s10 + $0x8] sm:$0xf]
      %v2553 = vld [vmem:[%s10 + $0xc] sm:$0xf]
      %s2554 = scalar_lea.vmem [#allocation3], 1
      %v2555 = vld [vmem:[%s2554] ss:$8 sm:$0xf]
      %v2556 = vld [vmem:[%s2554] ss:$8 sm:$0xf0]
      %v2557 = vor.u32 %v2555, %v2556
      %2559 = vrot.lane.b32.xlu0 %v2548, 32
      %v2560 = vpop.permute.xlu0 %2559
      %v2561 = vsel %vm1399, %v2560, 0
      %2563 = vmatprep.subr.mxu0 0.0
      %2564 = vmatpush1.msra.mxu0 0.0
      %2565 = vmatprep.subr.mxu0 0.0
      %2566 = vmatpush1.msra.mxu0 0.0
      %2567 = vmatprep.subr.mxu0 0.0
      %2568 = vmatpush1.msra.mxu0 0.0
      %2569 = vmatprep.subr.mxu0 0.0
      %2570 = vmatpush1.msra.mxu0 0.0
      %2571 = vmatprep.subr.mxu0 0.0
      %2572 = vmatpush1.msra.mxu0 0.0
      %2573 = vmatprep.subr.mxu0 0.0
      %2574 = vmatpush1.msra.mxu0 0.0
      %2575 = vmatprep.subr.mxu0 0.0
      %2576 = vmatpush1.msra.mxu0 0.0
      %2577 = vmatprep.subr.mxu0 0.0
      %2578 = vmatpush1.msra.mxu0 0.0
      %2579 = vmatprep.subr.mxu0 0.0
      %2580 = vmatpush1.msra.mxu0 0.0
      %2581 = vmatprep.subr.mxu0 0.0
      %2582 = vmatpush1.msra.mxu0 0.0
      %2583 = vmatprep.subr.mxu0 0.0
      %2584 = vmatpush1.msra.mxu0 0.0
      %2585 = vmatprep.subr.mxu0 0.0
      %2586 = vmatpush1.msra.mxu0 0.0
      %2587 = vmatprep.subr.mxu0 0.0
      %2588 = vmatpush1.msra.mxu0 %v2447
      %2589 = vmatprep.subr.mxu0 0.0
      %2590 = vmatpush1.msra.mxu0 %v2446
      %2591 = vmatprep.subr.mxu0 0.0
      %2592 = vmatpush1.msra.mxu0 %v2445
      %2593 = vmatprep.subr.mxu0 0.0
      %2594 = vmatpush1.msra.mxu0 %v2444
      %2595 = vmatprep.subr.mxu0 0.0
      %2596 = vmatpush2.msra.mxu0 0.0
      %2597 = vmatprep.subr.mxu0 0.0
      %2598 = vmatpush2.msra.mxu0 0.0
      %2599 = vmatprep.subr.mxu0 0.0
      %2600 = vmatpush2.msra.mxu0 0.0
      %2601 = vmatprep.subr.mxu0 0.0
      %2602 = vmatpush2.msra.mxu0 0.0
      %2603 = vmatprep.subr.mxu0 0.0
      %2604 = vmatpush2.msra.mxu0 0.0
      %2605 = vmatprep.subr.mxu0 0.0
      %2606 = vmatpush2.msra.mxu0 0.0
      %2607 = vmatprep.subr.mxu0 0.0
      %2608 = vmatpush2.msra.mxu0 0.0
      %2609 = vmatprep.subr.mxu0 0.0
      %2610 = vmatpush2.msra.mxu0 0.0
      %2611 = vmatprep.subr.mxu0 0.0
      %2612 = vmatpush2.msra.mxu0 0.0
      %2613 = vmatprep.subr.mxu0 0.0
      %2614 = vmatpush2.msra.mxu0 0.0
      %2615 = vmatprep.subr.mxu0 0.0
      %2616 = vmatpush2.msra.mxu0 0.0
      %2617 = vmatprep.subr.mxu0 0.0
      %2618 = vmatpush2.msra.mxu0 0.0
      %2619 = vmatprep.subr.mxu0 0.0
      %2620 = vmatpush2.msra.mxu0 0.0
      %2621 = vmatprep.subr.mxu0 0.0
      %2622 = vmatpush2.msra.mxu0 0.0
      %2623 = vmatprep.subr.mxu0 0.0
      %2624 = vmatpush2.msra.mxu0 0.0
      %2625 = vmatprep.subr.mxu0 0.0
      %2626 = vmatpush2.msra.mxu0 0.0
      %2627 = vmatprep.mubr.f32.mxu0 0.0
      %2628 = vmatmul.mubr.f32.gmra.mxu0 %v2561
      %v2629 = vpop.f32.mrf.mxu0
      %v2630 = vadd.f32 0.0, %v2629
      %v2631 = vpop.f32.mrf.mxu0
      %2632 = vdwg.mxu0
      %v2633 = vadd.f32 %v2557, %v2630
      %v2634 = vxor.u32 %v2633, 2147483648
      %v2635 = vmul.f32 %v2634, 1.442695
      %v2636 = vpow.pop %v2635
      %v2637 = vadd.f32 %v2636, 1.0
      %v2638 = vrcp.pop %v2637
      %v2639 = vmul.f32 1.0, %v2638
      %v2640 = vtanh.pop %v2633
      %v2641 = vmul.f32 %v2639, %v2542
      %2643 = vrot.lane.b32.xlu0 %v2640, 64
      %v2644 = vpop.permute.xlu0 %2643
      %v2646 = vmul.f32 %v2639, %v2644
      %2648 = vrot.lane.b32.xlu0 %v2646, 32
      %v2649 = vpop.permute.xlu0 %2648
      %v2651 = vadd.f32 %v2641, %v2649
      %v2652 = vtanh.pop %v2651
      %2654 = vrot.lane.b32.xlu0 %v2652, 64
      %v2655 = vpop.permute.xlu0 %2654
      %v2657 = vmul.f32 %v2639, %v2655
      %v2658 = vpack.c.bf16 %v2657, %v2657
      %v2659 = vld [vmem:[%s10 + $0x10] sm:$0xf]
      %v2660 = vld [vmem:[%s10 + $0x14] sm:$0xf]
      %v2661 = vld [vmem:[%s10 + $0x18] sm:$0xf]
      %v2662 = vld [vmem:[%s10 + $0x1c] sm:$0xf]
      %2664 = vrot.lane.b32.xlu0 %v2658, 32
      %v2665 = vpop.permute.xlu0 %2664
      %v2670 = vunpack.c.l.b16 %v2659
      %v2671 = vunpack.c.l.b16 %v2660
      %v2672 = vunpack.c.l.b16 %v2661
      %v2673 = vunpack.c.l.b16 %v2662
      %v2674 = vpack.c.b16 %v2671, %v2670
      %v2675 = vpack.c.b16 %v2673, %v2672
      %v2679 = vsel %vm1399, %v2665, 0
      %2681 = vmatprep.subr.bf16.mxu0 0
      %2682 = vmatpush1.bf16.msra.mxu0 0
      %2683 = vmatprep.subr.bf16.mxu0 0
      %2684 = vmatpush1.bf16.msra.mxu0 0
      %2685 = vmatprep.subr.bf16.mxu0 0
      %2686 = vmatpush1.bf16.msra.mxu0 0
      %2687 = vmatprep.subr.bf16.mxu0 0
      %2688 = vmatpush1.bf16.msra.mxu0 0
      %2689 = vmatprep.subr.bf16.mxu0 0
      %2690 = vmatpush1.bf16.msra.mxu0 0
      %2691 = vmatprep.subr.bf16.mxu0 0
      %2692 = vmatpush1.bf16.msra.mxu0 0
      %2693 = vmatprep.subr.bf16.mxu0 0
      %2694 = vmatpush1.bf16.msra.mxu0 %v2675
      %2695 = vmatprep.subr.bf16.mxu0 0
      %2696 = vmatpush1.bf16.msra.mxu0 %v2674
      %2697 = vmatprep.subr.bf16.mxu0 0
      %2698 = vmatpush2.bf16.msra.mxu0 0
      %2699 = vmatprep.subr.bf16.mxu0 0
      %2700 = vmatpush2.bf16.msra.mxu0 0
      %2701 = vmatprep.subr.bf16.mxu0 0
      %2702 = vmatpush2.bf16.msra.mxu0 0
      %2703 = vmatprep.subr.bf16.mxu0 0
      %2704 = vmatpush2.bf16.msra.mxu0 0
      %2705 = vmatprep.subr.bf16.mxu0 0
      %2706 = vmatpush2.bf16.msra.mxu0 0
      %2707 = vmatprep.subr.bf16.mxu0 0
      %2708 = vmatpush2.bf16.msra.mxu0 0
      %2709 = vmatprep.subr.bf16.mxu0 0
      %2710 = vmatpush2.bf16.msra.mxu0 0
      %2711 = vmatprep.subr.bf16.mxu0 0
      %2712 = vmatpush2.bf16.msra.mxu0 0
      %2713 = vmatprep.mubr.bf16.mxu0 0
      %2714 = vmatmul.mubr.bf16.gmra.mxu0 %v2679
      %v2715 = vpop.f32.mrf.mxu0
      %v2716 = vadd.f32 0.0, %v2715
      %v2717 = vpop.f32.mrf.mxu0
      %v2718 = vpop.f32.mrf.mxu0
      %v2719 = vpop.f32.mrf.mxu0
      %2720 = vdwg.mxu0
      %2722 = vrot.lane.b32.xlu0 %v2549, 32
      %v2723 = vpop.permute.xlu0 %2722
      %v2728 = vunpack.c.l.b16 %v2550
      %v2729 = vunpack.c.l.b16 %v2551
      %v2730 = vunpack.c.l.b16 %v2552
      %v2731 = vunpack.c.l.b16 %v2553
      %v2732 = vpack.c.b16 %v2729, %v2728
      %v2733 = vpack.c.b16 %v2731, %v2730
      %v2737 = vsel %vm1399, %v2723, 0
      %2739 = vmatprep.subr.bf16.mxu0 0
      %2740 = vmatpush1.bf16.msra.mxu0 0
      %2741 = vmatprep.subr.bf16.mxu0 0
      %2742 = vmatpush1.bf16.msra.mxu0 0
      %2743 = vmatprep.subr.bf16.mxu0 0
      %2744 = vmatpush1.bf16.msra.mxu0 0
      %2745 = vmatprep.subr.bf16.mxu0 0
      %2746 = vmatpush1.bf16.msra.mxu0 0
      %2747 = vmatprep.subr.bf16.mxu0 0
      %2748 = vmatpush1.bf16.msra.mxu0 0
      %2749 = vmatprep.subr.bf16.mxu0 0
      %2750 = vmatpush1.bf16.msra.mxu0 0
      %2751 = vmatprep.subr.bf16.mxu0 0
      %2752 = vmatpush1.bf16.msra.mxu0 %v2733
      %2753 = vmatprep.subr.bf16.mxu0 0
      %2754 = vmatpush1.bf16.msra.mxu0 %v2732
      %2755 = vmatprep.subr.bf16.mxu0 0
      %2756 = vmatpush2.bf16.msra.mxu0 0
      %2757 = vmatprep.subr.bf16.mxu0 0
      %2758 = vmatpush2.bf16.msra.mxu0 0
      %2759 = vmatprep.subr.bf16.mxu0 0
      %2760 = vmatpush2.bf16.msra.mxu0 0
      %2761 = vmatprep.subr.bf16.mxu0 0
      %2762 = vmatpush2.bf16.msra.mxu0 0
      %2763 = vmatprep.subr.bf16.mxu0 0
      %2764 = vmatpush2.bf16.msra.mxu0 0
      %2765 = vmatprep.subr.bf16.mxu0 0
      %2766 = vmatpush2.bf16.msra.mxu0 0
      %2767 = vmatprep.subr.bf16.mxu0 0
      %2768 = vmatpush2.bf16.msra.mxu0 0
      %2769 = vmatprep.subr.bf16.mxu0 0
      %2770 = vmatpush2.bf16.msra.mxu0 0
      %2771 = vmatprep.mubr.bf16.mxu0 0
      %2772 = vmatmul.mubr.bf16.gmra.mxu0 %v2737
      %v2773 = vpop.f32.mrf.mxu0
      %v2774 = vadd.f32 %v2716, %v2773
      %v2775 = vpop.f32.mrf.mxu0
      %v2776 = vpop.f32.mrf.mxu0
      %v2777 = vpop.f32.mrf.mxu0
      %2778 = vdwg.mxu0
      %s2779 = scalar_lea.vmem [#allocation3], 2
      %v2780 = vld [vmem:[%s2779] ss:$8 sm:$0xf]
      %v2781 = vld [vmem:[%s2779] ss:$8 sm:$0xf0]
      %v2782 = vor.u32 %v2780, %v2781
      %2784 = vrot.lane.b32.xlu0 %v2657, 32
      %v2785 = vpop.permute.xlu0 %2784
      %v2786 = vsel %vm1399, %v2785, 0
      %2788 = vmatprep.subr.mxu0 0.0
      %2789 = vmatpush1.msra.mxu0 0.0
      %2790 = vmatprep.subr.mxu0 0.0
      %2791 = vmatpush1.msra.mxu0 0.0
      %2792 = vmatprep.subr.mxu0 0.0
      %2793 = vmatpush1.msra.mxu0 0.0
      %2794 = vmatprep.subr.mxu0 0.0
      %2795 = vmatpush1.msra.mxu0 0.0
      %2796 = vmatprep.subr.mxu0 0.0
      %2797 = vmatpush1.msra.mxu0 0.0
      %2798 = vmatprep.subr.mxu0 0.0
      %2799 = vmatpush1.msra.mxu0 0.0
      %2800 = vmatprep.subr.mxu0 0.0
      %2801 = vmatpush1.msra.mxu0 0.0
      %2802 = vmatprep.subr.mxu0 0.0
      %2803 = vmatpush1.msra.mxu0 0.0
      %2804 = vmatprep.subr.mxu0 0.0
      %2805 = vmatpush1.msra.mxu0 0.0
      %2806 = vmatprep.subr.mxu0 0.0
      %2807 = vmatpush1.msra.mxu0 0.0
      %2808 = vmatprep.subr.mxu0 0.0
      %2809 = vmatpush1.msra.mxu0 0.0
      %2810 = vmatprep.subr.mxu0 0.0
      %2811 = vmatpush1.msra.mxu0 0.0
      %2812 = vmatprep.subr.mxu0 0.0
      %2813 = vmatpush1.msra.mxu0 %v2447
      %2814 = vmatprep.subr.mxu0 0.0
      %2815 = vmatpush1.msra.mxu0 %v2446
      %2816 = vmatprep.subr.mxu0 0.0
      %2817 = vmatpush1.msra.mxu0 %v2445
      %2818 = vmatprep.subr.mxu0 0.0
      %2819 = vmatpush1.msra.mxu0 %v2444
      %2820 = vmatprep.subr.mxu0 0.0
      %2821 = vmatpush2.msra.mxu0 0.0
      %2822 = vmatprep.subr.mxu0 0.0
      %2823 = vmatpush2.msra.mxu0 0.0
      %2824 = vmatprep.subr.mxu0 0.0
      %2825 = vmatpush2.msra.mxu0 0.0
      %2826 = vmatprep.subr.mxu0 0.0
      %2827 = vmatpush2.msra.mxu0 0.0
      %2828 = vmatprep.subr.mxu0 0.0
      %2829 = vmatpush2.msra.mxu0 0.0
      %2830 = vmatprep.subr.mxu0 0.0
      %2831 = vmatpush2.msra.mxu0 0.0
      %2832 = vmatprep.subr.mxu0 0.0
      %2833 = vmatpush2.msra.mxu0 0.0
      %2834 = vmatprep.subr.mxu0 0.0
      %2835 = vmatpush2.msra.mxu0 0.0
      %2836 = vmatprep.subr.mxu0 0.0
      %2837 = vmatpush2.msra.mxu0 0.0
      %2838 = vmatprep.subr.mxu0 0.0
      %2839 = vmatpush2.msra.mxu0 0.0
      %2840 = vmatprep.subr.mxu0 0.0
      %2841 = vmatpush2.msra.mxu0 0.0
      %2842 = vmatprep.subr.mxu0 0.0
      %2843 = vmatpush2.msra.mxu0 0.0
      %2844 = vmatprep.subr.mxu0 0.0
      %2845 = vmatpush2.msra.mxu0 0.0
      %2846 = vmatprep.subr.mxu0 0.0
      %2847 = vmatpush2.msra.mxu0 0.0
      %2848 = vmatprep.subr.mxu0 0.0
      %2849 = vmatpush2.msra.mxu0 0.0
      %2850 = vmatprep.subr.mxu0 0.0
      %2851 = vmatpush2.msra.mxu0 0.0
      %2852 = vmatprep.mubr.f32.mxu0 0.0
      %2853 = vmatmul.mubr.f32.gmra.mxu0 %v2786
      %v2854 = vpop.f32.mrf.mxu0
      %v2855 = vadd.f32 0.0, %v2854
      %v2856 = vpop.f32.mrf.mxu0
      %2857 = vdwg.mxu0
      %v2858 = vadd.f32 %v2782, %v2855
      %v2859 = vxor.u32 %v2858, 2147483648
      %v2860 = vmul.f32 %v2859, 1.442695
      %v2861 = vpow.pop %v2860
      %v2862 = vadd.f32 %v2861, 1.0
      %v2863 = vrcp.pop %v2862
      %v2864 = vmul.f32 1.0, %v2863
      %v2865 = vtanh.pop %v2858
      %v2866 = vmul.f32 %v2864, %v2651
      %2868 = vrot.lane.b32.xlu0 %v2865, 64
      %v2869 = vpop.permute.xlu0 %2868
      %v2871 = vmul.f32 %v2864, %v2869
      %2873 = vrot.lane.b32.xlu0 %v2871, 32
      %v2874 = vpop.permute.xlu0 %2873
      %v2876 = vadd.f32 %v2866, %v2874
      %v2877 = vtanh.pop %v2876
      %2879 = vrot.lane.b32.xlu0 %v2877, 64
      %v2880 = vpop.permute.xlu0 %2879
      %v2882 = vmul.f32 %v2864, %v2880
      %v2883 = vpack.c.bf16 %v2882, %v2882
      %v2884 = vld [vmem:[%s10 + $0x20] sm:$0xf]
      %v2885 = vld [vmem:[%s10 + $0x24] sm:$0xf]
      %v2886 = vld [vmem:[%s10 + $0x28] sm:$0xf]
      %v2887 = vld [vmem:[%s10 + $0x2c] sm:$0xf]
      %2889 = vrot.lane.b32.xlu0 %v2883, 32
      %v2890 = vpop.permute.xlu0 %2889
      %v2895 = vunpack.c.l.b16 %v2884
      %v2896 = vunpack.c.l.b16 %v2885
      %v2897 = vunpack.c.l.b16 %v2886
      %v2898 = vunpack.c.l.b16 %v2887
      %v2899 = vpack.c.b16 %v2896, %v2895
      %v2900 = vpack.c.b16 %v2898, %v2897
      %v2904 = vsel %vm1399, %v2890, 0
      %2906 = vmatprep.subr.bf16.mxu0 0
      %2907 = vmatpush1.bf16.msra.mxu0 0
      %2908 = vmatprep.subr.bf16.mxu0 0
      %2909 = vmatpush1.bf16.msra.mxu0 0
      %2910 = vmatprep.subr.bf16.mxu0 0
      %2911 = vmatpush1.bf16.msra.mxu0 0
      %2912 = vmatprep.subr.bf16.mxu0 0
      %2913 = vmatpush1.bf16.msra.mxu0 0
      %2914 = vmatprep.subr.bf16.mxu0 0
      %2915 = vmatpush1.bf16.msra.mxu0 0
      %2916 = vmatprep.subr.bf16.mxu0 0
      %2917 = vmatpush1.bf16.msra.mxu0 0
      %2918 = vmatprep.subr.bf16.mxu0 0
      %2919 = vmatpush1.bf16.msra.mxu0 %v2900
      %2920 = vmatprep.subr.bf16.mxu0 0
      %2921 = vmatpush1.bf16.msra.mxu0 %v2899
      %2922 = vmatprep.subr.bf16.mxu0 0
      %2923 = vmatpush2.bf16.msra.mxu0 0
      %2924 = vmatprep.subr.bf16.mxu0 0
      %2925 = vmatpush2.bf16.msra.mxu0 0
      %2926 = vmatprep.subr.bf16.mxu0 0
      %2927 = vmatpush2.bf16.msra.mxu0 0
      %2928 = vmatprep.subr.bf16.mxu0 0
      %2929 = vmatpush2.bf16.msra.mxu0 0
      %2930 = vmatprep.subr.bf16.mxu0 0
      %2931 = vmatpush2.bf16.msra.mxu0 0
      %2932 = vmatprep.subr.bf16.mxu0 0
      %2933 = vmatpush2.bf16.msra.mxu0 0
      %2934 = vmatprep.subr.bf16.mxu0 0
      %2935 = vmatpush2.bf16.msra.mxu0 0
      %2936 = vmatprep.subr.bf16.mxu0 0
      %2937 = vmatpush2.bf16.msra.mxu0 0
      %2938 = vmatprep.mubr.bf16.mxu0 0
      %2939 = vmatmul.mubr.bf16.gmra.mxu0 %v2904
      %v2940 = vpop.f32.mrf.mxu0
      %v2941 = vadd.f32 0.0, %v2940
      %v2942 = vpop.f32.mrf.mxu0
      %v2943 = vpop.f32.mrf.mxu0
      %v2944 = vpop.f32.mrf.mxu0
      %2945 = vdwg.mxu0
      %v2946 = vadd.f32 %v2774, %v2941
      %s2947 = scalar_lea.vmem [#allocation3], 3
      %v2948 = vld [vmem:[%s2947] ss:$8 sm:$0xf]
      %v2949 = vld [vmem:[%s2947] ss:$8 sm:$0xf0]
      %v2950 = vor.u32 %v2948, %v2949
      %2952 = vrot.lane.b32.xlu0 %v2882, 32
      %v2953 = vpop.permute.xlu0 %2952
      %v2954 = vsel %vm1399, %v2953, 0
      %2956 = vmatprep.subr.mxu0 0.0
      %2957 = vmatpush1.msra.mxu0 0.0
      %2958 = vmatprep.subr.mxu0 0.0
      %2959 = vmatpush1.msra.mxu0 0.0
      %2960 = vmatprep.subr.mxu0 0.0
      %2961 = vmatpush1.msra.mxu0 0.0
      %2962 = vmatprep.subr.mxu0 0.0
      %2963 = vmatpush1.msra.mxu0 0.0
      %2964 = vmatprep.subr.mxu0 0.0
      %2965 = vmatpush1.msra.mxu0 0.0
      %2966 = vmatprep.subr.mxu0 0.0
      %2967 = vmatpush1.msra.mxu0 0.0
      %2968 = vmatprep.subr.mxu0 0.0
      %2969 = vmatpush1.msra.mxu0 0.0
      %2970 = vmatprep.subr.mxu0 0.0
      %2971 = vmatpush1.msra.mxu0 0.0
      %2972 = vmatprep.subr.mxu0 0.0
      %2973 = vmatpush1.msra.mxu0 0.0
      %2974 = vmatprep.subr.mxu0 0.0
      %2975 = vmatpush1.msra.mxu0 0.0
      %2976 = vmatprep.subr.mxu0 0.0
      %2977 = vmatpush1.msra.mxu0 0.0
      %2978 = vmatprep.subr.mxu0 0.0
      %2979 = vmatpush1.msra.mxu0 0.0
      %2980 = vmatprep.subr.mxu0 0.0
      %2981 = vmatpush1.msra.mxu0 %v2447
      %2982 = vmatprep.subr.mxu0 0.0
      %2983 = vmatpush1.msra.mxu0 %v2446
      %2984 = vmatprep.subr.mxu0 0.0
      %2985 = vmatpush1.msra.mxu0 %v2445
      %2986 = vmatprep.subr.mxu0 0.0
      %2987 = vmatpush1.msra.mxu0 %v2444
      %2988 = vmatprep.subr.mxu0 0.0
      %2989 = vmatpush2.msra.mxu0 0.0
      %2990 = vmatprep.subr.mxu0 0.0
      %2991 = vmatpush2.msra.mxu0 0.0
      %2992 = vmatprep.subr.mxu0 0.0
      %2993 = vmatpush2.msra.mxu0 0.0
      %2994 = vmatprep.subr.mxu0 0.0
      %2995 = vmatpush2.msra.mxu0 0.0
      %2996 = vmatprep.subr.mxu0 0.0
      %2997 = vmatpush2.msra.mxu0 0.0
      %2998 = vmatprep.subr.mxu0 0.0
      %2999 = vmatpush2.msra.mxu0 0.0
      %3000 = vmatprep.subr.mxu0 0.0
      %3001 = vmatpush2.msra.mxu0 0.0
      %3002 = vmatprep.subr.mxu0 0.0
      %3003 = vmatpush2.msra.mxu0 0.0
      %3004 = vmatprep.subr.mxu0 0.0
      %3005 = vmatpush2.msra.mxu0 0.0
      %3006 = vmatprep.subr.mxu0 0.0
      %3007 = vmatpush2.msra.mxu0 0.0
      %3008 = vmatprep.subr.mxu0 0.0
      %3009 = vmatpush2.msra.mxu0 0.0
      %3010 = vmatprep.subr.mxu0 0.0
      %3011 = vmatpush2.msra.mxu0 0.0
      %3012 = vmatprep.subr.mxu0 0.0
      %3013 = vmatpush2.msra.mxu0 0.0
      %3014 = vmatprep.subr.mxu0 0.0
      %3015 = vmatpush2.msra.mxu0 0.0
      %3016 = vmatprep.subr.mxu0 0.0
      %3017 = vmatpush2.msra.mxu0 0.0
      %3018 = vmatprep.subr.mxu0 0.0
      %3019 = vmatpush2.msra.mxu0 0.0
      %3020 = vmatprep.mubr.f32.mxu0 0.0
      %3021 = vmatmul.mubr.f32.gmra.mxu0 %v2954
      %v3022 = vpop.f32.mrf.mxu0
      %v3023 = vadd.f32 0.0, %v3022
      %v3024 = vpop.f32.mrf.mxu0
      %3025 = vdwg.mxu0
      %v3026 = vadd.f32 %v2950, %v3023
      %v3027 = vxor.u32 %v3026, 2147483648
      %v3028 = vmul.f32 %v3027, 1.442695
      %v3029 = vpow.pop %v3028
      %v3030 = vadd.f32 %v3029, 1.0
      %v3031 = vrcp.pop %v3030
      %v3032 = vmul.f32 1.0, %v3031
      %v3033 = vtanh.pop %v3026
      %v3034 = vmul.f32 %v3032, %v2876
      %3036 = vrot.lane.b32.xlu0 %v3033, 64
      %v3037 = vpop.permute.xlu0 %3036
      %v3039 = vmul.f32 %v3032, %v3037
      %3041 = vrot.lane.b32.xlu0 %v3039, 32
      %v3042 = vpop.permute.xlu0 %3041
      %v3044 = vadd.f32 %v3034, %v3042
      %v3045 = vtanh.pop %v3044
      %3047 = vrot.lane.b32.xlu0 %v3045, 64
      %v3048 = vpop.permute.xlu0 %3047
      %v3050 = vmul.f32 %v3032, %v3048
      %v3051 = vpack.c.bf16 %v3050, %v3050
      %v3052 = vld [vmem:[%s10 + $0x30] sm:$0xf]
      %v3053 = vld [vmem:[%s10 + $0x34] sm:$0xf]
      %v3054 = vld [vmem:[%s10 + $0x38] sm:$0xf]
      %v3055 = vld [vmem:[%s10 + $0x3c] sm:$0xf]
      %3057 = vrot.lane.b32.xlu0 %v3051, 32
      %v3058 = vpop.permute.xlu0 %3057
      %v3063 = vunpack.c.l.b16 %v3052
      %v3064 = vunpack.c.l.b16 %v3053
      %v3065 = vunpack.c.l.b16 %v3054
      %v3066 = vunpack.c.l.b16 %v3055
      %v3067 = vpack.c.b16 %v3064, %v3063
      %v3068 = vpack.c.b16 %v3066, %v3065
      %v3072 = vsel %vm1399, %v3058, 0
      %3074 = vmatprep.subr.bf16.mxu0 0
      %3075 = vmatpush1.bf16.msra.mxu0 0
      %3076 = vmatprep.subr.bf16.mxu0 0
      %3077 = vmatpush1.bf16.msra.mxu0 0
      %3078 = vmatprep.subr.bf16.mxu0 0
      %3079 = vmatpush1.bf16.msra.mxu0 0
      %3080 = vmatprep.subr.bf16.mxu0 0
      %3081 = vmatpush1.bf16.msra.mxu0 0
      %3082 = vmatprep.subr.bf16.mxu0 0
      %3083 = vmatpush1.bf16.msra.mxu0 0
      %3084 = vmatprep.subr.bf16.mxu0 0
      %3085 = vmatpush1.bf16.msra.mxu0 0
      %3086 = vmatprep.subr.bf16.mxu0 0
      %3087 = vmatpush1.bf16.msra.mxu0 %v3068
      %3088 = vmatprep.subr.bf16.mxu0 0
      %3089 = vmatpush1.bf16.msra.mxu0 %v3067
      %3090 = vmatprep.subr.bf16.mxu0 0
      %3091 = vmatpush2.bf16.msra.mxu0 0
      %3092 = vmatprep.subr.bf16.mxu0 0
      %3093 = vmatpush2.bf16.msra.mxu0 0
      %3094 = vmatprep.subr.bf16.mxu0 0
      %3095 = vmatpush2.bf16.msra.mxu0 0
      %3096 = vmatprep.subr.bf16.mxu0 0
      %3097 = vmatpush2.bf16.msra.mxu0 0
      %3098 = vmatprep.subr.bf16.mxu0 0
      %3099 = vmatpush2.bf16.msra.mxu0 0
      %3100 = vmatprep.subr.bf16.mxu0 0
      %3101 = vmatpush2.bf16.msra.mxu0 0
      %3102 = vmatprep.subr.bf16.mxu0 0
      %3103 = vmatpush2.bf16.msra.mxu0 0
      %3104 = vmatprep.subr.bf16.mxu0 0
      %3105 = vmatpush2.bf16.msra.mxu0 0
      %3106 = vmatprep.mubr.bf16.mxu0 0
      %3107 = vmatmul.mubr.bf16.gmra.mxu0 %v3072
      %v3108 = vpop.f32.mrf.mxu0
      %v3109 = vadd.f32 0.0, %v3108
      %v3110 = vpop.f32.mrf.mxu0
      %v3111 = vpop.f32.mrf.mxu0
      %v3112 = vpop.f32.mrf.mxu0
      %3113 = vdwg.mxu0
      %v3114 = vadd.f32 %v2946, %v3109
      %s3115 = scalar_lea.vmem [#allocation3], 4
      %v3116 = vld [vmem:[%s3115] ss:$8 sm:$0xf]
      %v3117 = vld [vmem:[%s3115] ss:$8 sm:$0xf0]
      %v3118 = vor.u32 %v3116, %v3117
      %3120 = vrot.lane.b32.xlu0 %v3050, 32
      %v3121 = vpop.permute.xlu0 %3120
      %v3122 = vsel %vm1399, %v3121, 0
      %3124 = vmatprep.subr.mxu0 0.0
      %3125 = vmatpush1.msra.mxu0 0.0
      %3126 = vmatprep.subr.mxu0 0.0
      %3127 = vmatpush1.msra.mxu0 0.0
      %3128 = vmatprep.subr.mxu0 0.0
      %3129 = vmatpush1.msra.mxu0 0.0
      %3130 = vmatprep.subr.mxu0 0.0
      %3131 = vmatpush1.msra.mxu0 0.0
      %3132 = vmatprep.subr.mxu0 0.0
      %3133 = vmatpush1.msra.mxu0 0.0
      %3134 = vmatprep.subr.mxu0 0.0
      %3135 = vmatpush1.msra.mxu0 0.0
      %3136 = vmatprep.subr.mxu0 0.0
      %3137 = vmatpush1.msra.mxu0 0.0
      %3138 = vmatprep.subr.mxu0 0.0
      %3139 = vmatpush1.msra.mxu0 0.0
      %3140 = vmatprep.subr.mxu0 0.0
      %3141 = vmatpush1.msra.mxu0 0.0
      %3142 = vmatprep.subr.mxu0 0.0
      %3143 = vmatpush1.msra.mxu0 0.0
      %3144 = vmatprep.subr.mxu0 0.0
      %3145 = vmatpush1.msra.mxu0 0.0
      %3146 = vmatprep.subr.mxu0 0.0
      %3147 = vmatpush1.msra.mxu0 0.0
      %3148 = vmatprep.subr.mxu0 0.0
      %3149 = vmatpush1.msra.mxu0 %v2447
      %3150 = vmatprep.subr.mxu0 0.0
      %3151 = vmatpush1.msra.mxu0 %v2446
      %3152 = vmatprep.subr.mxu0 0.0
      %3153 = vmatpush1.msra.mxu0 %v2445
      %3154 = vmatprep.subr.mxu0 0.0
      %3155 = vmatpush1.msra.mxu0 %v2444
      %3156 = vmatprep.subr.mxu0 0.0
      %3157 = vmatpush2.msra.mxu0 0.0
      %3158 = vmatprep.subr.mxu0 0.0
      %3159 = vmatpush2.msra.mxu0 0.0
      %3160 = vmatprep.subr.mxu0 0.0
      %3161 = vmatpush2.msra.mxu0 0.0
      %3162 = vmatprep.subr.mxu0 0.0
      %3163 = vmatpush2.msra.mxu0 0.0
      %3164 = vmatprep.subr.mxu0 0.0
      %3165 = vmatpush2.msra.mxu0 0.0
      %3166 = vmatprep.subr.mxu0 0.0
      %3167 = vmatpush2.msra.mxu0 0.0
      %3168 = vmatprep.subr.mxu0 0.0
      %3169 = vmatpush2.msra.mxu0 0.0
      %3170 = vmatprep.subr.mxu0 0.0
      %3171 = vmatpush2.msra.mxu0 0.0
      %3172 = vmatprep.subr.mxu0 0.0
      %3173 = vmatpush2.msra.mxu0 0.0
      %3174 = vmatprep.subr.mxu0 0.0
      %3175 = vmatpush2.msra.mxu0 0.0
      %3176 = vmatprep.subr.mxu0 0.0
      %3177 = vmatpush2.msra.mxu0 0.0
      %3178 = vmatprep.subr.mxu0 0.0
      %3179 = vmatpush2.msra.mxu0 0.0
      %3180 = vmatprep.subr.mxu0 0.0
      %3181 = vmatpush2.msra.mxu0 0.0
      %3182 = vmatprep.subr.mxu0 0.0
      %3183 = vmatpush2.msra.mxu0 0.0
      %3184 = vmatprep.subr.mxu0 0.0
      %3185 = vmatpush2.msra.mxu0 0.0
      %3186 = vmatprep.subr.mxu0 0.0
      %3187 = vmatpush2.msra.mxu0 0.0
      %3188 = vmatprep.mubr.f32.mxu0 0.0
      %3189 = vmatmul.mubr.f32.gmra.mxu0 %v3122
      %v3190 = vpop.f32.mrf.mxu0
      %v3191 = vadd.f32 0.0, %v3190
      %v3192 = vpop.f32.mrf.mxu0
      %3193 = vdwg.mxu0
      %v3194 = vadd.f32 %v3118, %v3191
      %v3195 = vxor.u32 %v3194, 2147483648
      %v3196 = vmul.f32 %v3195, 1.442695
      %v3197 = vpow.pop %v3196
      %v3198 = vadd.f32 %v3197, 1.0
      %v3199 = vrcp.pop %v3198
      %v3200 = vmul.f32 1.0, %v3199
      %v3201 = vtanh.pop %v3194
      %v3202 = vmul.f32 %v3200, %v3044
      %3204 = vrot.lane.b32.xlu0 %v3201, 64
      %v3205 = vpop.permute.xlu0 %3204
      %v3207 = vmul.f32 %v3200, %v3205
      %3209 = vrot.lane.b32.xlu0 %v3207, 32
      %v3210 = vpop.permute.xlu0 %3209
      %v3212 = vadd.f32 %v3202, %v3210
      %v3213 = vtanh.pop %v3212
      %3215 = vrot.lane.b32.xlu0 %v3213, 64
      %v3216 = vpop.permute.xlu0 %3215
      %v3218 = vmul.f32 %v3200, %v3216
      %v3219 = vpack.c.bf16 %v3218, %v3218
      %v3220 = vld [vmem:[%s10 + $0x40] sm:$0xf]
      %v3221 = vld [vmem:[%s10 + $0x44] sm:$0xf]
      %v3222 = vld [vmem:[%s10 + $0x48] sm:$0xf]
      %v3223 = vld [vmem:[%s10 + $0x4c] sm:$0xf]
      %3225 = vrot.lane.b32.xlu0 %v3219, 32
      %v3226 = vpop.permute.xlu0 %3225
      %v3231 = vunpack.c.l.b16 %v3220
      %v3232 = vunpack.c.l.b16 %v3221
      %v3233 = vunpack.c.l.b16 %v3222
      %v3234 = vunpack.c.l.b16 %v3223
      %v3235 = vpack.c.b16 %v3232, %v3231
      %v3236 = vpack.c.b16 %v3234, %v3233
      %v3240 = vsel %vm1399, %v3226, 0
      %3242 = vmatprep.subr.bf16.mxu0 0
      %3243 = vmatpush1.bf16.msra.mxu0 0
      %3244 = vmatprep.subr.bf16.mxu0 0
      %3245 = vmatpush1.bf16.msra.mxu0 0
      %3246 = vmatprep.subr.bf16.mxu0 0
      %3247 = vmatpush1.bf16.msra.mxu0 0
      %3248 = vmatprep.subr.bf16.mxu0 0
      %3249 = vmatpush1.bf16.msra.mxu0 0
      %3250 = vmatprep.subr.bf16.mxu0 0
      %3251 = vmatpush1.bf16.msra.mxu0 0
      %3252 = vmatprep.subr.bf16.mxu0 0
      %3253 = vmatpush1.bf16.msra.mxu0 0
      %3254 = vmatprep.subr.bf16.mxu0 0
      %3255 = vmatpush1.bf16.msra.mxu0 %v3236
      %3256 = vmatprep.subr.bf16.mxu0 0
      %3257 = vmatpush1.bf16.msra.mxu0 %v3235
      %3258 = vmatprep.subr.bf16.mxu0 0
      %3259 = vmatpush2.bf16.msra.mxu0 0
      %3260 = vmatprep.subr.bf16.mxu0 0
      %3261 = vmatpush2.bf16.msra.mxu0 0
      %3262 = vmatprep.subr.bf16.mxu0 0
      %3263 = vmatpush2.bf16.msra.mxu0 0
      %3264 = vmatprep.subr.bf16.mxu0 0
      %3265 = vmatpush2.bf16.msra.mxu0 0
      %3266 = vmatprep.subr.bf16.mxu0 0
      %3267 = vmatpush2.bf16.msra.mxu0 0
      %3268 = vmatprep.subr.bf16.mxu0 0
      %3269 = vmatpush2.bf16.msra.mxu0 0
      %3270 = vmatprep.subr.bf16.mxu0 0
      %3271 = vmatpush2.bf16.msra.mxu0 0
      %3272 = vmatprep.subr.bf16.mxu0 0
      %3273 = vmatpush2.bf16.msra.mxu0 0
      %3274 = vmatprep.mubr.bf16.mxu0 0
      %3275 = vmatmul.mubr.bf16.gmra.mxu0 %v3240
      %v3276 = vpop.f32.mrf.mxu0
      %v3277 = vadd.f32 0.0, %v3276
      %v3278 = vpop.f32.mrf.mxu0
      %v3279 = vpop.f32.mrf.mxu0
      %v3280 = vpop.f32.mrf.mxu0
      %3281 = vdwg.mxu0
      %v3282 = vadd.f32 %v3114, %v3277
      %s3283 = scalar_lea.vmem [#allocation3], 5
      %v3284 = vld [vmem:[%s3283] ss:$8 sm:$0xf]
      %v3285 = vld [vmem:[%s3283] ss:$8 sm:$0xf0]
      %v3286 = vor.u32 %v3284, %v3285
      %3288 = vrot.lane.b32.xlu0 %v3218, 32
      %v3289 = vpop.permute.xlu0 %3288
      %v3290 = vsel %vm1399, %v3289, 0
      %3292 = vmatprep.subr.mxu0 0.0
      %3293 = vmatpush1.msra.mxu0 0.0
      %3294 = vmatprep.subr.mxu0 0.0
      %3295 = vmatpush1.msra.mxu0 0.0
      %3296 = vmatprep.subr.mxu0 0.0
      %3297 = vmatpush1.msra.mxu0 0.0
      %3298 = vmatprep.subr.mxu0 0.0
      %3299 = vmatpush1.msra.mxu0 0.0
      %3300 = vmatprep.subr.mxu0 0.0
      %3301 = vmatpush1.msra.mxu0 0.0
      %3302 = vmatprep.subr.mxu0 0.0
      %3303 = vmatpush1.msra.mxu0 0.0
      %3304 = vmatprep.subr.mxu0 0.0
      %3305 = vmatpush1.msra.mxu0 0.0
      %3306 = vmatprep.subr.mxu0 0.0
      %3307 = vmatpush1.msra.mxu0 0.0
      %3308 = vmatprep.subr.mxu0 0.0
      %3309 = vmatpush1.msra.mxu0 0.0
      %3310 = vmatprep.subr.mxu0 0.0
      %3311 = vmatpush1.msra.mxu0 0.0
      %3312 = vmatprep.subr.mxu0 0.0
      %3313 = vmatpush1.msra.mxu0 0.0
      %3314 = vmatprep.subr.mxu0 0.0
      %3315 = vmatpush1.msra.mxu0 0.0
      %3316 = vmatprep.subr.mxu0 0.0
      %3317 = vmatpush1.msra.mxu0 %v2447
      %3318 = vmatprep.subr.mxu0 0.0
      %3319 = vmatpush1.msra.mxu0 %v2446
      %3320 = vmatprep.subr.mxu0 0.0
      %3321 = vmatpush1.msra.mxu0 %v2445
      %3322 = vmatprep.subr.mxu0 0.0
      %3323 = vmatpush1.msra.mxu0 %v2444
      %3324 = vmatprep.subr.mxu0 0.0
      %3325 = vmatpush2.msra.mxu0 0.0
      %3326 = vmatprep.subr.mxu0 0.0
      %3327 = vmatpush2.msra.mxu0 0.0
      %3328 = vmatprep.subr.mxu0 0.0
      %3329 = vmatpush2.msra.mxu0 0.0
      %3330 = vmatprep.subr.mxu0 0.0
      %3331 = vmatpush2.msra.mxu0 0.0
      %3332 = vmatprep.subr.mxu0 0.0
      %3333 = vmatpush2.msra.mxu0 0.0
      %3334 = vmatprep.subr.mxu0 0.0
      %3335 = vmatpush2.msra.mxu0 0.0
      %3336 = vmatprep.subr.mxu0 0.0
      %3337 = vmatpush2.msra.mxu0 0.0
      %3338 = vmatprep.subr.mxu0 0.0
      %3339 = vmatpush2.msra.mxu0 0.0
      %3340 = vmatprep.subr.mxu0 0.0
      %3341 = vmatpush2.msra.mxu0 0.0
      %3342 = vmatprep.subr.mxu0 0.0
      %3343 = vmatpush2.msra.mxu0 0.0
      %3344 = vmatprep.subr.mxu0 0.0
      %3345 = vmatpush2.msra.mxu0 0.0
      %3346 = vmatprep.subr.mxu0 0.0
      %3347 = vmatpush2.msra.mxu0 0.0
      %3348 = vmatprep.subr.mxu0 0.0
      %3349 = vmatpush2.msra.mxu0 0.0
      %3350 = vmatprep.subr.mxu0 0.0
      %3351 = vmatpush2.msra.mxu0 0.0
      %3352 = vmatprep.subr.mxu0 0.0
      %3353 = vmatpush2.msra.mxu0 0.0
      %3354 = vmatprep.subr.mxu0 0.0
      %3355 = vmatpush2.msra.mxu0 0.0
      %3356 = vmatprep.mubr.f32.mxu0 0.0
      %3357 = vmatmul.mubr.f32.gmra.mxu0 %v3290
      %v3358 = vpop.f32.mrf.mxu0
      %v3359 = vadd.f32 0.0, %v3358
      %v3360 = vpop.f32.mrf.mxu0
      %3361 = vdwg.mxu0
      %v3362 = vadd.f32 %v3286, %v3359
      %v3363 = vxor.u32 %v3362, 2147483648
      %v3364 = vmul.f32 %v3363, 1.442695
      %v3365 = vpow.pop %v3364
      %v3366 = vadd.f32 %v3365, 1.0
      %v3367 = vrcp.pop %v3366
      %v3368 = vmul.f32 1.0, %v3367
      %v3369 = vtanh.pop %v3362
      %v3370 = vmul.f32 %v3368, %v3212
      %3372 = vrot.lane.b32.xlu0 %v3369, 64
      %v3373 = vpop.permute.xlu0 %3372
      %v3375 = vmul.f32 %v3368, %v3373
      %3377 = vrot.lane.b32.xlu0 %v3375, 32
      %v3378 = vpop.permute.xlu0 %3377
      %v3380 = vadd.f32 %v3370, %v3378
      %v3381 = vtanh.pop %v3380
      %3383 = vrot.lane.b32.xlu0 %v3381, 64
      %v3384 = vpop.permute.xlu0 %3383
      %v3386 = vmul.f32 %v3368, %v3384
      %v3387 = vpack.c.bf16 %v3386, %v3386
      %v3388 = vld [vmem:[%s10 + $0x50] sm:$0xf]
      %v3389 = vld [vmem:[%s10 + $0x54] sm:$0xf]
      %v3390 = vld [vmem:[%s10 + $0x58] sm:$0xf]
      %v3391 = vld [vmem:[%s10 + $0x5c] sm:$0xf]
      %3393 = vrot.lane.b32.xlu0 %v3387, 32
      %v3394 = vpop.permute.xlu0 %3393
      %v3399 = vunpack.c.l.b16 %v3388
      %v3400 = vunpack.c.l.b16 %v3389
      %v3401 = vunpack.c.l.b16 %v3390
      %v3402 = vunpack.c.l.b16 %v3391
      %v3403 = vpack.c.b16 %v3400, %v3399
      %v3404 = vpack.c.b16 %v3402, %v3401
      %v3408 = vsel %vm1399, %v3394, 0
      %3410 = vmatprep.subr.bf16.mxu0 0
      %3411 = vmatpush1.bf16.msra.mxu0 0
      %3412 = vmatprep.subr.bf16.mxu0 0
      %3413 = vmatpush1.bf16.msra.mxu0 0
      %3414 = vmatprep.subr.bf16.mxu0 0
      %3415 = vmatpush1.bf16.msra.mxu0 0
      %3416 = vmatprep.subr.bf16.mxu0 0
      %3417 = vmatpush1.bf16.msra.mxu0 0
      %3418 = vmatprep.subr.bf16.mxu0 0
      %3419 = vmatpush1.bf16.msra.mxu0 0
      %3420 = vmatprep.subr.bf16.mxu0 0
      %3421 = vmatpush1.bf16.msra.mxu0 0
      %3422 = vmatprep.subr.bf16.mxu0 0
      %3423 = vmatpush1.bf16.msra.mxu0 %v3404
      %3424 = vmatprep.subr.bf16.mxu0 0
      %3425 = vmatpush1.bf16.msra.mxu0 %v3403
      %3426 = vmatprep.subr.bf16.mxu0 0
      %3427 = vmatpush2.bf16.msra.mxu0 0
      %3428 = vmatprep.subr.bf16.mxu0 0
      %3429 = vmatpush2.bf16.msra.mxu0 0
      %3430 = vmatprep.subr.bf16.mxu0 0
      %3431 = vmatpush2.bf16.msra.mxu0 0
      %3432 = vmatprep.subr.bf16.mxu0 0
      %3433 = vmatpush2.bf16.msra.mxu0 0
      %3434 = vmatprep.subr.bf16.mxu0 0
      %3435 = vmatpush2.bf16.msra.mxu0 0
      %3436 = vmatprep.subr.bf16.mxu0 0
      %3437 = vmatpush2.bf16.msra.mxu0 0
      %3438 = vmatprep.subr.bf16.mxu0 0
      %3439 = vmatpush2.bf16.msra.mxu0 0
      %3440 = vmatprep.subr.bf16.mxu0 0
      %3441 = vmatpush2.bf16.msra.mxu0 0
      %3442 = vmatprep.mubr.bf16.mxu0 0
      %3443 = vmatmul.mubr.bf16.gmra.mxu0 %v3408
      %v3444 = vpop.f32.mrf.mxu0
      %v3445 = vadd.f32 0.0, %v3444
      %v3446 = vpop.f32.mrf.mxu0
      %v3447 = vpop.f32.mrf.mxu0
      %v3448 = vpop.f32.mrf.mxu0
      %3449 = vdwg.mxu0
      %v3450 = vadd.f32 %v3282, %v3445
      %s3451 = scalar_lea.vmem [#allocation3], 6
      %v3452 = vld [vmem:[%s3451] ss:$8 sm:$0xf]
      %v3453 = vld [vmem:[%s3451] ss:$8 sm:$0xf0]
      %v3454 = vor.u32 %v3452, %v3453
      %3456 = vrot.lane.b32.xlu0 %v3386, 32
      %v3457 = vpop.permute.xlu0 %3456
      %v3458 = vsel %vm1399, %v3457, 0
      %3460 = vmatprep.subr.mxu0 0.0
      %3461 = vmatpush1.msra.mxu0 0.0
      %3462 = vmatprep.subr.mxu0 0.0
      %3463 = vmatpush1.msra.mxu0 0.0
      %3464 = vmatprep.subr.mxu0 0.0
      %3465 = vmatpush1.msra.mxu0 0.0
      %3466 = vmatprep.subr.mxu0 0.0
      %3467 = vmatpush1.msra.mxu0 0.0
      %3468 = vmatprep.subr.mxu0 0.0
      %3469 = vmatpush1.msra.mxu0 0.0
      %3470 = vmatprep.subr.mxu0 0.0
      %3471 = vmatpush1.msra.mxu0 0.0
      %3472 = vmatprep.subr.mxu0 0.0
      %3473 = vmatpush1.msra.mxu0 0.0
      %3474 = vmatprep.subr.mxu0 0.0
      %3475 = vmatpush1.msra.mxu0 0.0
      %3476 = vmatprep.subr.mxu0 0.0
      %3477 = vmatpush1.msra.mxu0 0.0
      %3478 = vmatprep.subr.mxu0 0.0
      %3479 = vmatpush1.msra.mxu0 0.0
      %3480 = vmatprep.subr.mxu0 0.0
      %3481 = vmatpush1.msra.mxu0 0.0
      %3482 = vmatprep.subr.mxu0 0.0
      %3483 = vmatpush1.msra.mxu0 0.0
      %3484 = vmatprep.subr.mxu0 0.0
      %3485 = vmatpush1.msra.mxu0 %v2447
      %3486 = vmatprep.subr.mxu0 0.0
      %3487 = vmatpush1.msra.mxu0 %v2446
      %3488 = vmatprep.subr.mxu0 0.0
      %3489 = vmatpush1.msra.mxu0 %v2445
      %3490 = vmatprep.subr.mxu0 0.0
      %3491 = vmatpush1.msra.mxu0 %v2444
      %3492 = vmatprep.subr.mxu0 0.0
      %3493 = vmatpush2.msra.mxu0 0.0
      %3494 = vmatprep.subr.mxu0 0.0
      %3495 = vmatpush2.msra.mxu0 0.0
      %3496 = vmatprep.subr.mxu0 0.0
      %3497 = vmatpush2.msra.mxu0 0.0
      %3498 = vmatprep.subr.mxu0 0.0
      %3499 = vmatpush2.msra.mxu0 0.0
      %3500 = vmatprep.subr.mxu0 0.0
      %3501 = vmatpush2.msra.mxu0 0.0
      %3502 = vmatprep.subr.mxu0 0.0
      %3503 = vmatpush2.msra.mxu0 0.0
      %3504 = vmatprep.subr.mxu0 0.0
      %3505 = vmatpush2.msra.mxu0 0.0
      %3506 = vmatprep.subr.mxu0 0.0
      %3507 = vmatpush2.msra.mxu0 0.0
      %3508 = vmatprep.subr.mxu0 0.0
      %3509 = vmatpush2.msra.mxu0 0.0
      %3510 = vmatprep.subr.mxu0 0.0
      %3511 = vmatpush2.msra.mxu0 0.0
      %3512 = vmatprep.subr.mxu0 0.0
      %3513 = vmatpush2.msra.mxu0 0.0
      %3514 = vmatprep.subr.mxu0 0.0
      %3515 = vmatpush2.msra.mxu0 0.0
      %3516 = vmatprep.subr.mxu0 0.0
      %3517 = vmatpush2.msra.mxu0 0.0
      %3518 = vmatprep.subr.mxu0 0.0
      %3519 = vmatpush2.msra.mxu0 0.0
      %3520 = vmatprep.subr.mxu0 0.0
      %3521 = vmatpush2.msra.mxu0 0.0
      %3522 = vmatprep.subr.mxu0 0.0
      %3523 = vmatpush2.msra.mxu0 0.0
      %3524 = vmatprep.mubr.f32.mxu0 0.0
      %3525 = vmatmul.mubr.f32.gmra.mxu0 %v3458
      %v3526 = vpop.f32.mrf.mxu0
      %v3527 = vadd.f32 0.0, %v3526
      %v3528 = vpop.f32.mrf.mxu0
      %3529 = vdwg.mxu0
      %v3530 = vadd.f32 %v3454, %v3527
      %v3531 = vxor.u32 %v3530, 2147483648
      %v3532 = vmul.f32 %v3531, 1.442695
      %v3533 = vpow.pop %v3532
      %v3534 = vadd.f32 %v3533, 1.0
      %v3535 = vrcp.pop %v3534
      %v3536 = vmul.f32 1.0, %v3535
      %v3537 = vtanh.pop %v3530
      %v3538 = vmul.f32 %v3536, %v3380
      %3540 = vrot.lane.b32.xlu0 %v3537, 64
      %v3541 = vpop.permute.xlu0 %3540
      %v3543 = vmul.f32 %v3536, %v3541
      %3545 = vrot.lane.b32.xlu0 %v3543, 32
      %v3546 = vpop.permute.xlu0 %3545
      %v3548 = vadd.f32 %v3538, %v3546
      %v3549 = vtanh.pop %v3548
      %3551 = vrot.lane.b32.xlu0 %v3549, 64
      %v3552 = vpop.permute.xlu0 %3551
      %v3554 = vmul.f32 %v3536, %v3552
      %v3555 = vpack.c.bf16 %v3554, %v3554
      %v3556 = vld [vmem:[%s10 + $0x60] sm:$0xf]
      %v3557 = vld [vmem:[%s10 + $0x64] sm:$0xf]
      %v3558 = vld [vmem:[%s10 + $0x68] sm:$0xf]
      %v3559 = vld [vmem:[%s10 + $0x6c] sm:$0xf]
      %3561 = vrot.lane.b32.xlu0 %v3555, 32
      %v3562 = vpop.permute.xlu0 %3561
      %v3567 = vunpack.c.l.b16 %v3556
      %v3568 = vunpack.c.l.b16 %v3557
      %v3569 = vunpack.c.l.b16 %v3558
      %v3570 = vunpack.c.l.b16 %v3559
      %v3571 = vpack.c.b16 %v3568, %v3567
      %v3572 = vpack.c.b16 %v3570, %v3569
      %v3576 = vsel %vm1399, %v3562, 0
      %3578 = vmatprep.subr.bf16.mxu0 0
      %3579 = vmatpush1.bf16.msra.mxu0 0
      %3580 = vmatprep.subr.bf16.mxu0 0
      %3581 = vmatpush1.bf16.msra.mxu0 0
      %3582 = vmatprep.subr.bf16.mxu0 0
      %3583 = vmatpush1.bf16.msra.mxu0 0
      %3584 = vmatprep.subr.bf16.mxu0 0
      %3585 = vmatpush1.bf16.msra.mxu0 0
      %3586 = vmatprep.subr.bf16.mxu0 0
      %3587 = vmatpush1.bf16.msra.mxu0 0
      %3588 = vmatprep.subr.bf16.mxu0 0
      %3589 = vmatpush1.bf16.msra.mxu0 0
      %3590 = vmatprep.subr.bf16.mxu0 0
      %3591 = vmatpush1.bf16.msra.mxu0 %v3572
      %3592 = vmatprep.subr.bf16.mxu0 0
      %3593 = vmatpush1.bf16.msra.mxu0 %v3571
      %3594 = vmatprep.subr.bf16.mxu0 0
      %3595 = vmatpush2.bf16.msra.mxu0 0
      %3596 = vmatprep.subr.bf16.mxu0 0
      %3597 = vmatpush2.bf16.msra.mxu0 0
      %3598 = vmatprep.subr.bf16.mxu0 0
      %3599 = vmatpush2.bf16.msra.mxu0 0
      %3600 = vmatprep.subr.bf16.mxu0 0
      %3601 = vmatpush2.bf16.msra.mxu0 0
      %3602 = vmatprep.subr.bf16.mxu0 0
      %3603 = vmatpush2.bf16.msra.mxu0 0
      %3604 = vmatprep.subr.bf16.mxu0 0
      %3605 = vmatpush2.bf16.msra.mxu0 0
      %3606 = vmatprep.subr.bf16.mxu0 0
      %3607 = vmatpush2.bf16.msra.mxu0 0
      %3608 = vmatprep.subr.bf16.mxu0 0
      %3609 = vmatpush2.bf16.msra.mxu0 0
      %3610 = vmatprep.mubr.bf16.mxu0 0
      %3611 = vmatmul.mubr.bf16.gmra.mxu0 %v3576
      %v3612 = vpop.f32.mrf.mxu0
      %v3613 = vadd.f32 0.0, %v3612
      %v3614 = vpop.f32.mrf.mxu0
      %v3615 = vpop.f32.mrf.mxu0
      %v3616 = vpop.f32.mrf.mxu0
      %3617 = vdwg.mxu0
      %v3618 = vadd.f32 %v3450, %v3613
      %s3619 = scalar_lea.vmem [#allocation3], 7
      %v3620 = vld [vmem:[%s3619] ss:$8 sm:$0xf]
      %v3621 = vld [vmem:[%s3619] ss:$8 sm:$0xf0]
      %v3622 = vor.u32 %v3620, %v3621
      %3624 = vrot.lane.b32.xlu0 %v3554, 32
      %v3625 = vpop.permute.xlu0 %3624
      %v3626 = vsel %vm1399, %v3625, 0
      %3628 = vmatprep.subr.mxu0 0.0
      %3629 = vmatpush1.msra.mxu0 0.0
      %3630 = vmatprep.subr.mxu0 0.0
      %3631 = vmatpush1.msra.mxu0 0.0
      %3632 = vmatprep.subr.mxu0 0.0
      %3633 = vmatpush1.msra.mxu0 0.0
      %3634 = vmatprep.subr.mxu0 0.0
      %3635 = vmatpush1.msra.mxu0 0.0
      %3636 = vmatprep.subr.mxu0 0.0
      %3637 = vmatpush1.msra.mxu0 0.0
      %3638 = vmatprep.subr.mxu0 0.0
      %3639 = vmatpush1.msra.mxu0 0.0
      %3640 = vmatprep.subr.mxu0 0.0
      %3641 = vmatpush1.msra.mxu0 0.0
      %3642 = vmatprep.subr.mxu0 0.0
      %3643 = vmatpush1.msra.mxu0 0.0
      %3644 = vmatprep.subr.mxu0 0.0
      %3645 = vmatpush1.msra.mxu0 0.0
      %3646 = vmatprep.subr.mxu0 0.0
      %3647 = vmatpush1.msra.mxu0 0.0
      %3648 = vmatprep.subr.mxu0 0.0
      %3649 = vmatpush1.msra.mxu0 0.0
      %3650 = vmatprep.subr.mxu0 0.0
      %3651 = vmatpush1.msra.mxu0 0.0
      %3652 = vmatprep.subr.mxu0 0.0
      %3653 = vmatpush1.msra.mxu0 %v2447
      %3654 = vmatprep.subr.mxu0 0.0
      %3655 = vmatpush1.msra.mxu0 %v2446
      %3656 = vmatprep.subr.mxu0 0.0
      %3657 = vmatpush1.msra.mxu0 %v2445
      %3658 = vmatprep.subr.mxu0 0.0
      %3659 = vmatpush1.msra.mxu0 %v2444
      %3660 = vmatprep.subr.mxu0 0.0
      %3661 = vmatpush2.msra.mxu0 0.0
      %3662 = vmatprep.subr.mxu0 0.0
      %3663 = vmatpush2.msra.mxu0 0.0
      %3664 = vmatprep.subr.mxu0 0.0
      %3665 = vmatpush2.msra.mxu0 0.0
      %3666 = vmatprep.subr.mxu0 0.0
      %3667 = vmatpush2.msra.mxu0 0.0
      %3668 = vmatprep.subr.mxu0 0.0
      %3669 = vmatpush2.msra.mxu0 0.0
      %3670 = vmatprep.subr.mxu0 0.0
      %3671 = vmatpush2.msra.mxu0 0.0
      %3672 = vmatprep.subr.mxu0 0.0
      %3673 = vmatpush2.msra.mxu0 0.0
      %3674 = vmatprep.subr.mxu0 0.0
      %3675 = vmatpush2.msra.mxu0 0.0
      %3676 = vmatprep.subr.mxu0 0.0
      %3677 = vmatpush2.msra.mxu0 0.0
      %3678 = vmatprep.subr.mxu0 0.0
      %3679 = vmatpush2.msra.mxu0 0.0
      %3680 = vmatprep.subr.mxu0 0.0
      %3681 = vmatpush2.msra.mxu0 0.0
      %3682 = vmatprep.subr.mxu0 0.0
      %3683 = vmatpush2.msra.mxu0 0.0
      %3684 = vmatprep.subr.mxu0 0.0
      %3685 = vmatpush2.msra.mxu0 0.0
      %3686 = vmatprep.subr.mxu0 0.0
      %3687 = vmatpush2.msra.mxu0 0.0
      %3688 = vmatprep.subr.mxu0 0.0
      %3689 = vmatpush2.msra.mxu0 0.0
      %3690 = vmatprep.subr.mxu0 0.0
      %3691 = vmatpush2.msra.mxu0 0.0
      %3692 = vmatprep.mubr.f32.mxu0 0.0
      %3693 = vmatmul.mubr.f32.gmra.mxu0 %v3626
      %v3694 = vpop.f32.mrf.mxu0
      %v3695 = vadd.f32 0.0, %v3694
      %v3696 = vpop.f32.mrf.mxu0
      %3697 = vdwg.mxu0
      %v3698 = vadd.f32 %v3622, %v3695
      %v3699 = vxor.u32 %v3698, 2147483648
      %v3700 = vmul.f32 %v3699, 1.442695
      %v3701 = vpow.pop %v3700
      %v3702 = vadd.f32 %v3701, 1.0
      %v3703 = vrcp.pop %v3702
      %v3704 = vmul.f32 1.0, %v3703
      %v3705 = vtanh.pop %v3698
      %v3706 = vmul.f32 %v3704, %v3548
      %3708 = vrot.lane.b32.xlu0 %v3705, 64
      %v3709 = vpop.permute.xlu0 %3708
      %v3711 = vmul.f32 %v3704, %v3709
      %3713 = vrot.lane.b32.xlu0 %v3711, 32
      %v3714 = vpop.permute.xlu0 %3713
      %v3716 = vadd.f32 %v3706, %v3714
      %v3717 = vtanh.pop %v3716
      %3719 = vrot.lane.b32.xlu0 %v3717, 64
      %v3720 = vpop.permute.xlu0 %3719
      %v3722 = vmul.f32 %v3704, %v3720
      %v3723 = vpack.c.bf16 %v3722, %v3722
      %v3724 = vld [vmem:[%s10 + $0x70] sm:$0xf]
      %v3725 = vld [vmem:[%s10 + $0x74] sm:$0xf]
      %v3726 = vld [vmem:[%s10 + $0x78] sm:$0xf]
      %v3727 = vld [vmem:[%s10 + $0x7c] sm:$0xf]
      %3729 = vrot.lane.b32.xlu0 %v3723, 32
      %v3730 = vpop.permute.xlu0 %3729
      %v3735 = vunpack.c.l.b16 %v3724
      %v3736 = vunpack.c.l.b16 %v3725
      %v3737 = vunpack.c.l.b16 %v3726
      %v3738 = vunpack.c.l.b16 %v3727
      %v3739 = vpack.c.b16 %v3736, %v3735
      %v3740 = vpack.c.b16 %v3738, %v3737
      %v3744 = vsel %vm1399, %v3730, 0
      %3746 = vmatprep.subr.bf16.mxu0 0
      %3747 = vmatpush1.bf16.msra.mxu0 0
      %3748 = vmatprep.subr.bf16.mxu0 0
      %3749 = vmatpush1.bf16.msra.mxu0 0
      %3750 = vmatprep.subr.bf16.mxu0 0
      %3751 = vmatpush1.bf16.msra.mxu0 0
      %3752 = vmatprep.subr.bf16.mxu0 0
      %3753 = vmatpush1.bf16.msra.mxu0 0
      %3754 = vmatprep.subr.bf16.mxu0 0
      %3755 = vmatpush1.bf16.msra.mxu0 0
      %3756 = vmatprep.subr.bf16.mxu0 0
      %3757 = vmatpush1.bf16.msra.mxu0 0
      %3758 = vmatprep.subr.bf16.mxu0 0
      %3759 = vmatpush1.bf16.msra.mxu0 %v3740
      %3760 = vmatprep.subr.bf16.mxu0 0
      %3761 = vmatpush1.bf16.msra.mxu0 %v3739
      %3762 = vmatprep.subr.bf16.mxu0 0
      %3763 = vmatpush2.bf16.msra.mxu0 0
      %3764 = vmatprep.subr.bf16.mxu0 0
      %3765 = vmatpush2.bf16.msra.mxu0 0
      %3766 = vmatprep.subr.bf16.mxu0 0
      %3767 = vmatpush2.bf16.msra.mxu0 0
      %3768 = vmatprep.subr.bf16.mxu0 0
      %3769 = vmatpush2.bf16.msra.mxu0 0
      %3770 = vmatprep.subr.bf16.mxu0 0
      %3771 = vmatpush2.bf16.msra.mxu0 0
      %3772 = vmatprep.subr.bf16.mxu0 0
      %3773 = vmatpush2.bf16.msra.mxu0 0
      %3774 = vmatprep.subr.bf16.mxu0 0
      %3775 = vmatpush2.bf16.msra.mxu0 0
      %3776 = vmatprep.subr.bf16.mxu0 0
      %3777 = vmatpush2.bf16.msra.mxu0 0
      %3778 = vmatprep.mubr.bf16.mxu0 0
      %3779 = vmatmul.mubr.bf16.gmra.mxu0 %v3744
      %v3780 = vpop.f32.mrf.mxu0
      %v3781 = vadd.f32 0.0, %v3780
      %v3782 = vpop.f32.mrf.mxu0
      %v3783 = vpop.f32.mrf.mxu0
      %v3784 = vpop.f32.mrf.mxu0
      %3785 = vdwg.mxu0
      %v3786 = vadd.f32 %v3618, %v3781
      %v3787 = vld [vmem:[%s11] sm:$0x1]
      %v3789 = vlaneseq
      %v3790 = vshrl.u32 %v3789, 7
      %v3791 = vsub.s32 0, %v3790
      %v3792 = vrot.slane %v3787, %v3791
      %v3794 = vadd.f32 %v3786, %v3792
      %3795 = vst [vmem:[%s413] sm:$0xff] %v3794
      %p3796 = scmp.lt.s32.totalorder %s23, 1
      %s3797 = scalar_select %p3796, %s23, 1
      %s3798 = smul.addr %s3797, 8
      %s3799 = scalar_lea.vmem %s12, %s3798
      // Predicated region
      $region69: #{cnn_lstm_forward.1} parent=67 // pred_check
        %p3800 = pneg %p298
      $region70: #{cnn_lstm_forward.1} parent=67 // pred_check_branch
        %3802 = sbr.rel (%p3800) target = $region72
      $region71: #{cnn_lstm_forward.1} parent=67 // pred_region
        _
      $region72: #{cnn_lstm_forward.1} parent=67 // pred_fallthru
        _
    $region68: #{cnn_lstm_forward.1} parent=5 // pred_fallthru
      _
    %p3803 = scmp.le.s32.totalorder 2, %s18
    // Predicated region
    $region73: #{cnn_lstm_forward.1} parent=5 // pred_check
      %p3804 = pneg %p3803
    $region74: #{cnn_lstm_forward.1} parent=5 // pred_check_branch
      %3806 = sbr.rel (%p3804) target = $region76
    $region75: #{cnn_lstm_forward.1} parent=5 // pred_region
      %s3807 = ssub.s32 %s18, 2
      // Predicated region
      $region77: #{cnn_lstm_forward.1} parent=75 // pred_check
        %p3808 = pneg %p304
      $region78: #{cnn_lstm_forward.1} parent=75 // pred_check_branch
        %3810 = sbr.rel (%p3808) target = $region80
      $region79: #{cnn_lstm_forward.1} parent=75 // pred_region
        %p3811 = scmp.lt.s32.totalorder %s24, 1
        %s3812 = scalar_select %p3811, %s24, 1
        %s3813 = smul.addr %s3812, 8
        %s3814 = scalar_lea.vmem %s12, %s3813
      $region80: #{cnn_lstm_forward.1} parent=75 // pred_fallthru
        _
    $region76: #{cnn_lstm_forward.1} parent=5 // pred_fallthru
      _
  $region6: #{cnn_lstm_forward.1} parent=0 // loop_footer
    %s22 = sadd.s32 1, %s18
  $region7: #{cnn_lstm_forward.1} parent=0 // loop_footer_branch
    %17 = sbr.rel target = $region3
  $region8: #{cnn_lstm_forward.1} parent=0 // loop_exit
    _

</llo_original>
